<compile_context>
chip_gen: v7x
topology: tpu7x:2x2x1
jax: 0.10.0
libtpu: 0.0.40
codegen_flags: <defaults>
</compile_context>

<pallas_src>
import functools
import math

import jax
import jax.numpy as jnp
from jax.experimental import pallas as pl
from jax.experimental.pallas import tpu as pltpu

MODEL_SCALE = 1.0
RESIDUAL_DEPTH = 384            # to_nearest_64(384 * log2(1 + 1.0))
NUM_BLOCKS = 8                  # round(8 * log2(1 + 1.0))
GROUP_SIZE = 2
QK_DIM_DIV = 8                  # assumed LatentBlock constant
EXPAND_FACTOR = 2               # assumed LatentBlock constant
QK_DIM = RESIDUAL_DEPTH // QK_DIM_DIV        # 48
QK_PAD = 128                    # q / k column groups padded to one lane group
EXPAND_DIM = RESIDUAL_DEPTH * EXPAND_FACTOR  # 768
V_DIM = RESIDUAL_DEPTH                       # 384
OUT_DIM = 100
OUT_PAD = 128                   # lane-dense head output, sliced back outside
LN_EPS = 1e-5

# bf16 weights + bf16 MXU path (f32 accumulation); LayerNorm / softmax / the
# residual stay in f32.
WEIGHT_DTYPE = jnp.bfloat16
MATMUL_DTYPE = jnp.bfloat16


# ---------------------------------------------------------------- helpers ---
def _layer_norm(x, w, b):
    mean = jnp.mean(x, axis=-1, keepdims=True)
    var = jnp.mean(jnp.square(x - mean), axis=-1, keepdims=True)
    return (x - mean) * jax.lax.rsqrt(var + LN_EPS) * w + b


def _erf(x):
    # Abramowitz & Stegun 7.1.26 polynomial, |abs err| < 1.5e-7 (~f32 ulp);
    # avoids depending on a lax.erf lowering inside Mosaic.
    a1, a2, a3, a4, a5 = 0.254829592, -0.284496736, 1.421413741, -1.453152027, 1.061405429
    p = 0.3275911
    s = jnp.where(x >= 0.0, 1.0, -1.0)
    ax = jnp.abs(x)
    t = 1.0 / (1.0 + p * ax)
    poly = ((((a5 * t + a4) * t + a3) * t + a2) * t + a1) * t
    return s * (1.0 - poly * jnp.exp(-ax * ax))


def _gelu_exact(x):
    # matches torch.nn.functional.gelu default (erf-based) to f32 precision
    return 0.5 * x * (1.0 + _erf(x * (1.0 / math.sqrt(2.0))))


def _mm(a, b):
    # natural [M, Din] @ [Din, Dout] matmul on the bf16 MXU path, f32 accum
    return jnp.dot(a.astype(MATMUL_DTYPE), b.astype(MATMUL_DTYPE),
                   preferred_element_type=jnp.float32)


# ---------------------------------------------------------------- kernel ----
def _fused_model_kernel(x_ref, gnw_ref, gnb_ref, lnw_ref, lnb_ref, exp_ref,
                        proj_ref, pbm_ref, outw_ref, o_ref, res_ref, rel_ref,
                        *, e_dim, v_dim, qk_pad):
    blk = pl.program_id(1)
    tb, n, d = x_ref.shape
    m = tb * n

    # shared pre-blocks LayerNorm + hoisted (col-row) map; residual stays in
    # VMEM across all blocks of this batch chunk
    @pl.when(blk == 0)
    def _():
        res_ref[...] = _layer_norm(x_ref[...].reshape(m, d),
                                   gnw_ref[0], gnb_ref[0])
        row = jax.lax.broadcasted_iota(jnp.int32, (n, n), 0)
        col = jax.lax.broadcasted_iota(jnp.int32, (n, n), 1)
        rel_ref[...] = (col - row).astype(jnp.float32)

    x = res_ref[...]                                      # (M, D) residual, f32
    xn = _layer_norm(x, lnw_ref[0, 0], lnb_ref[0, 0])

    # one fused lane-dense expand matmul; columns [lin | gelu | q_pad | k_pad],
    # every group starts on a 128-lane boundary; 1/sqrt(qk) folded into q cols
    expanded = _mm(xn, exp_ref[0])                        # (M, 2E + 2*QK_PAD)
    lin = expanded[:, :e_dim]
    pre_gelu = expanded[:, e_dim:2 * e_dim]
    q = expanded[:, 2 * e_dim:2 * e_dim + qk_pad]         # (M, 128)
    k = expanded[:, 2 * e_dim + qk_pad:]                  # (M, 128)

    geglu = lin * _gelu_exact(pre_gelu)                   # (M, E)
    geglu_local = geglu[:, :e_dim - v_dim]                # (M, E - V)
    geglu_attn_value = geglu[:, e_dim - v_dim:]           # (M, V)

    # per-sequence attention (batched over the TB sequences of this chunk);
    # causal/sigmoid position bias generated from the hoisted rel map
    qb = q.reshape(tb, n, qk_pad)
    kb = k.reshape(tb, n, qk_pad)
    vb = geglu_attn_value.reshape(tb, n, v_dim)
    scores = jnp.einsum('bqd,bkd->bqk', qb, kb,
                        preferred_element_type=jnp.float32)   # (TB, N, N)
    rel = rel_ref[...]                                    # (N, N)
    bias = 1.0 / (1.0 + jnp.exp(-(rel + pbm_ref[blk])))   # scalar from SMEM
    scores = scores + jnp.where(rel <= 0.0, bias, -jnp.inf)[None, :, :]

    s_max = jnp.max(scores, axis=-1, keepdims=True)       # diag unmasked -> finite
    p = jnp.exp(scores - s_max)
    attn = p / jnp.sum(p, axis=-1, keepdims=True)         # exact divide (parity)
    attention = jnp.einsum('bqk,bkd->bqd', attn, vb,
                           preferred_element_type=jnp.float32)
    attention = attention.reshape(m, v_dim)

    # projection split in two, operands sliced straight off the Ref
    out = (_mm(geglu_local, proj_ref[0, :e_dim - v_dim, :]) +
           _mm(attention, proj_ref[0, e_dim - v_dim:, :]))
    new_res = x + out
    res_ref[...] = new_res

    # shared final LayerNorm + lane-padded output head, last block only
    @pl.when(blk == pl.num_programs(1) - 1)
    def _():
        xo = _layer_norm(new_res, gnw_ref[0], gnb_ref[0])
        logits = _mm(xo, outw_ref[...])                   # (M, OUT_PAD)
        o_ref[...] = logits.reshape(tb, n, logits.shape[-1]).astype(o_ref.dtype)


# ------------------------------------------------------------- wrapper ------
def fused_model_pallas(x, norm_w, norm_b, ln_w, ln_b, expand_t, proj_t,
                       pos_bias_mult, out_w_t, *, batch_tile=None):
    B, N, D = x.shape
    NB, _, X = expand_t.shape
    E = proj_t.shape[1]
    QKP = (X - 2 * E) // 2
    O = out_w_t.shape[1]

    # Batch tile: amortize weight DMA over the batch while keeping >= 2
    # iterations on the parallel axis (both v7x TensorCores busy).
    if batch_tile is None:
        batch_tile = B if B <= 1 else pl.cdiv(B, 2)
    TB = int(batch_tile)
    chunks = pl.cdiv(B, TB)
    Bp = chunks * TB
    if Bp != B:
        x = jnp.pad(x, ((0, Bp - B), (0, 0), (0, 0)))

    kernel = functools.partial(_fused_model_kernel, e_dim=E, v_dim=D, qk_pad=QKP)
    out = pl.pallas_call(
        kernel,
        out_shape=jax.ShapeDtypeStruct((Bp, N, O), x.dtype),
        grid=(chunks, NB),
        in_specs=[
            pl.BlockSpec((TB, N, D), lambda b, l: (b, 0, 0)),   # x (per chunk)
            pl.BlockSpec((1, D), lambda b, l: (0, 0)),          # shared norm w
            pl.BlockSpec((1, D), lambda b, l: (0, 0)),          # shared norm b
            pl.BlockSpec((1, 1, D), lambda b, l: (l, 0, 0)),    # per-block ln w
            pl.BlockSpec((1, 1, D), lambda b, l: (l, 0, 0)),    # per-block ln b
            pl.BlockSpec((1, D, X), lambda b, l: (l, 0, 0)),    # fused expand^T (bf16)
            pl.BlockSpec((1, E, D), lambda b, l: (l, 0, 0)),    # project^T (bf16)
            pl.BlockSpec(memory_space=pltpu.MemorySpace.SMEM),  # position_bias_mult
            pl.BlockSpec((D, O), lambda b, l: (0, 0)),          # padded head (bf16)
        ],
        out_specs=pl.BlockSpec((TB, N, O), lambda b, l: (b, 0, 0)),
        scratch_shapes=[pltpu.VMEM((TB * N, D), jnp.float32),   # residual carry
                        pltpu.VMEM((N, N), jnp.float32)],       # hoisted (col-row)
        compiler_params=pltpu.CompilerParams(
            dimension_semantics=("parallel", "arbitrary"),
            vmem_limit_bytes=32 * 1024 * 1024),
    )(x, norm_w, norm_b, ln_w, ln_b, expand_t, proj_t, pos_bias_mult, out_w_t)
    return out[:B]


# ------------------------------------------------------------- params -------
def init_params(key):
    """PyTorch-layout parameters (same init scheme as the reference module)."""
    D, QK, E = RESIDUAL_DEPTH, QK_DIM, EXPAND_DIM
    keys = jax.random.split(key, 2 + 2 * NUM_BLOCKS)
    group_emb = jax.random.normal(keys[0], (1, 1, GROUP_SIZE, D), jnp.float32)
    out_bound = 1.0 / math.sqrt(D)
    out_w = jax.random.uniform(keys[1], (OUT_DIM, D), dtype=jnp.float32,
                               minval=-out_bound, maxval=out_bound)
    expand_scale = 0.5 / math.sqrt(D) / EXPAND_FACTOR
    project_scale = 1.0 / math.sqrt(D) / EXPAND_FACTOR / NUM_BLOCKS
    blocks = []
    for i in range(NUM_BLOCKS):
        ke, kp = keys[2 + 2 * i], keys[3 + 2 * i]
        blocks.append(dict(
            ln_w=jnp.ones((D,), jnp.float32),
            ln_b=jnp.zeros((D,), jnp.float32),
            # rows ordered [q | k | lin | gelu], torch F.linear layout (Dout, Din)
            expand=expand_scale * jax.random.normal(ke, (2 * QK + 2 * E, D), jnp.float32),
            project=project_scale * jax.random.normal(kp, (D, E), jnp.float32),
            pos_bias_mult=jnp.float32(4.0)))
    return dict(group_emb=group_emb, out_w=out_w,
                norm_w=jnp.ones((D,), jnp.float32),
                norm_b=jnp.zeros((D,), jnp.float32),
                blocks=blocks)


def pack_params(params):
    """Repack PyTorch-layout parameters into the fused-kernel layout."""
    D, QK, E, QKP = RESIDUAL_DEPTH, QK_DIM, EXPAND_DIM, QK_PAD
    q_scale = 1.0 / math.sqrt(QK)          # folded softmax scale (sqrt of true qk dim)
    exp_t, proj_t, ln_w, ln_b, pbm = [], [], [], [], []
    for blk in params["blocks"]:
        w = blk["expand"]                                 # (2QK+2E, D): [q|k|lin|gelu]
        q_rows = jnp.zeros((QKP, D), jnp.float32).at[:QK].set(w[:QK] * q_scale)
        k_rows = jnp.zeros((QKP, D), jnp.float32).at[:QK].set(w[QK:2 * QK])
        lin_rows = w[2 * QK:2 * QK + E]
        gelu_rows = w[2 * QK + E:]
        # reorder rows to [lin | gelu | q_pad | k_pad] and transpose to
        # (D, 2E + 2*QK_PAD): every output column group is 128-lane aligned.
        packed = jnp.concatenate([lin_rows, gelu_rows, q_rows, k_rows], axis=0)
        exp_t.append(packed.T.astype(WEIGHT_DTYPE))       # (D, X) bf16
        proj_t.append(blk["project"].T.astype(WEIGHT_DTYPE))  # (E, D): [local|attn]
        ln_w.append(blk["ln_w"])
        ln_b.append(blk["ln_b"])
        pbm.append(blk["pos_bias_mult"])
    out_w_t = jnp.zeros((D, OUT_PAD), jnp.float32).at[:, :OUT_DIM].set(
        params["out_w"].T).astype(WEIGHT_DTYPE)           # pad 100 -> 128 lanes
    return dict(
        group_emb=params["group_emb"],
        norm_w=params["norm_w"].reshape(1, D),
        norm_b=params["norm_b"].reshape(1, D),
        ln_w=jnp.stack(ln_w).reshape(NUM_BLOCKS, 1, D),
        ln_b=jnp.stack(ln_b).reshape(NUM_BLOCKS, 1, D),
        expand_t=jnp.stack(exp_t),                        # (NB, D, 2E+2*QK_PAD) bf16
        proj_t=jnp.stack(proj_t),                         # (NB, E, D) bf16
        pos_bias_mult=jnp.stack(pbm).reshape(NUM_BLOCKS).astype(jnp.float32),
        out_w_t=out_w_t)


# ------------------------------------------------------------- model --------
def model_forward(q, p):
    B, N = q.shape
    D = RESIDUAL_DEPTH
    # Enc: sinusoidal embedding of each scalar (tiny; plain-JAX glue)
    freqs = jnp.exp(jnp.arange(0, D, 2, dtype=jnp.float32) *
                    (-(math.log(10000.0) / D)))                      # (D//2,)
    qe = q[..., None] * freqs                                        # (B, N, D//2)
    emb = jnp.concatenate([jnp.sin(qe), jnp.cos(qe)], axis=-1)       # (B, N, D)
    # pad seq to a multiple of GROUP_SIZE, add group embedding, slice back.
    # (torch pads a full extra group when N % GROUP_SIZE == 0; those rows are
    #  sliced off, so skipping the extra group is numerically identical.)
    pad = (-N) % GROUP_SIZE
    padded = jnp.pad(emb, ((0, 0), (0, pad), (0, 0)))
    L = N + pad
    grouped = padded.reshape(B, L // GROUP_SIZE, GROUP_SIZE, D) + p["group_emb"]
    x = grouped.reshape(B, L, D)[:, :N]
    # one fused pallas_call: shared pre-LN, 8 attention blocks (residual held
    # in VMEM), shared final LN and lane-padded output head
    logits = fused_model_pallas(x, p["norm_w"], p["norm_b"], p["ln_w"], p["ln_b"],
                                p["expand_t"], p["proj_t"], p["pos_bias_mult"],
                                p["out_w_t"])
    return logits[:, :, :OUT_DIM]


if __name__ == "__main__":
    key = jax.random.PRNGKey(0)
    pkey, qkey = jax.random.split(key)
    params = pack_params(init_params(pkey))
    B, N = 2, 8
    q = jax.random.uniform(qkey, (B, N), dtype=jnp.float32, minval=0.0, maxval=10.0)
    out = jax.block_until_ready(model_forward(q, params))
    assert out.shape == (B, N, OUT_DIM), out.shape
    assert bool(jnp.all(jnp.isfinite(out)))
    print("KERNEL_OK")
</pallas_src>

<mosaic_0001>
module attributes {stable_mosaic.version = 11 : i64} {
  func.func @_fused_model_kernel(%arg0: i32, %arg1: i32, %arg2: memref<1x8x384xf32, #tpu.memory_space<vmem>>, %arg3: memref<1x384xf32, #tpu.memory_space<vmem>>, %arg4: memref<1x384xf32, #tpu.memory_space<vmem>>, %arg5: memref<1x1x384xf32, #tpu.memory_space<vmem>>, %arg6: memref<1x1x384xf32, #tpu.memory_space<vmem>>, %arg7: memref<1x384x1792xbf16, #tpu.memory_space<vmem>>, %arg8: memref<1x768x384xbf16, #tpu.memory_space<vmem>>, %arg9: memref<8xf32, #tpu.memory_space<smem>>, %arg10: memref<384x128xbf16, #tpu.memory_space<vmem>>, %arg11: memref<1x8x128xf32, #tpu.memory_space<vmem>>, %arg12: memref<8x384xf32, #tpu.memory_space<vmem>>, %arg13: memref<8x8xf32, #tpu.memory_space<vmem>>) attributes {dimension_semantics = [#tpu.dimension_semantics<parallel>, #tpu.dimension_semantics<arbitrary>], iteration_bounds = array<i64: 2, 8>, scalar_prefetch = 0 : i64, scratch_operands = 2 : i64, tpu.core_type = #tpu.core_type<tc>, window_params = [{transform_indices = @transform_0, window_bounds = array<i64: 1, 8, 384>}, {pipeline_mode = #tpu.pipeline_mode<synchronous>, transform_indices = @transform_1, window_bounds = array<i64: 1, 384>}, {pipeline_mode = #tpu.pipeline_mode<synchronous>, transform_indices = @transform_2, window_bounds = array<i64: 1, 384>}, {transform_indices = @transform_3, window_bounds = array<i64: 1, 1, 384>}, {transform_indices = @transform_4, window_bounds = array<i64: 1, 1, 384>}, {transform_indices = @transform_5, window_bounds = array<i64: 1, 384, 1792>}, {transform_indices = @transform_6, window_bounds = array<i64: 1, 768, 384>}, {transform_indices = @transform_7, window_bounds = array<i64: 8>}, {pipeline_mode = #tpu.pipeline_mode<synchronous>, transform_indices = @transform_8, window_bounds = array<i64: 384, 128>}, {transform_indices = @transform_9, window_bounds = array<i64: 1, 8, 128>}]} {
    %c0_i32 = arith.constant 0 : i32
    %0 = arith.cmpi eq, %arg1, %c0_i32 : i32
    %1 = arith.extui %0 : i1 to i32
    %c0_i32_0 = arith.constant 0 : i32
    %2 = arith.cmpi ne, %1, %c0_i32_0 : i32
    scf.if %2 {
      %c0_53 = arith.constant 0 : index
      %c0_54 = arith.constant 0 : index
      %c0_55 = arith.constant 0 : index
      %131 = vector.load %arg2[%c0_53, %c0_54, %c0_55] : memref<1x8x384xf32, #tpu.memory_space<vmem>>, vector<1x8x384xf32>
      %132 = vector.shape_cast %131 : vector<1x8x384xf32> to vector<8x384xf32>
      %c0_56 = arith.constant 0 : index
      %c0_57 = arith.constant 0 : index
      %133 = vector.load %arg3[%c0_56, %c0_57] : memref<1x384xf32, #tpu.memory_space<vmem>>, vector<1x384xf32>
      %134 = vector.shape_cast %133 : vector<1x384xf32> to vector<384xf32>
      %c0_58 = arith.constant 0 : index
      %c0_59 = arith.constant 0 : index
      %135 = vector.load %arg4[%c0_58, %c0_59] : memref<1x384xf32, #tpu.memory_space<vmem>>, vector<1x384xf32>
      %136 = vector.shape_cast %135 : vector<1x384xf32> to vector<384xf32>
      %cst_60 = arith.constant dense<0.000000e+00> : vector<8xf32>
      %137 = vector.multi_reduction <add>, %132, %cst_60 [1] : vector<8x384xf32> to vector<8xf32>
      %138 = vector.shape_cast %137 : vector<8xf32> to vector<8x1xf32>
      %cst_61 = arith.constant 3.840000e+02 : f32
      %139 = vector.broadcast %cst_61 : f32 to vector<8x1xf32>
      %140 = arith.divf %138, %139 : vector<8x1xf32>
      %141 = vector.broadcast %140 : vector<8x1xf32> to vector<8x384xf32>
      %142 = arith.subf %132, %141 : vector<8x384xf32>
      %143 = arith.mulf %142, %142 : vector<8x384xf32>
      %cst_62 = arith.constant dense<0.000000e+00> : vector<8xf32>
      %144 = vector.multi_reduction <add>, %143, %cst_62 [1] : vector<8x384xf32> to vector<8xf32>
      %145 = vector.shape_cast %144 : vector<8xf32> to vector<8x1xf32>
      %cst_63 = arith.constant 3.840000e+02 : f32
      %146 = vector.broadcast %cst_63 : f32 to vector<8x1xf32>
      %147 = arith.divf %145, %146 : vector<8x1xf32>
      %148 = vector.broadcast %140 : vector<8x1xf32> to vector<8x384xf32>
      %149 = arith.subf %132, %148 : vector<8x384xf32>
      %cst_64 = arith.constant 9.99999974E-6 : f32
      %150 = vector.broadcast %cst_64 : f32 to vector<8x1xf32>
      %151 = arith.addf %147, %150 : vector<8x1xf32>
      %152 = math.rsqrt %151 : vector<8x1xf32>
      %153 = vector.broadcast %152 : vector<8x1xf32> to vector<8x384xf32>
      %154 = arith.mulf %149, %153 : vector<8x384xf32>
      %155 = vector.shape_cast %134 : vector<384xf32> to vector<1x384xf32>
      %156 = vector.broadcast %155 : vector<1x384xf32> to vector<8x384xf32>
      %157 = arith.mulf %154, %156 : vector<8x384xf32>
      %158 = vector.shape_cast %136 : vector<384xf32> to vector<1x384xf32>
      %159 = vector.broadcast %158 : vector<1x384xf32> to vector<8x384xf32>
      %160 = arith.addf %157, %159 : vector<8x384xf32>
      %c0_65 = arith.constant 0 : index
      %c0_66 = arith.constant 0 : index
      %161 = vector.load %arg12[%c0_65, %c0_66] : memref<8x384xf32, #tpu.memory_space<vmem>>, vector<8x384xf32>
      tpu.vector_store %arg12[%c0_65, %c0_66], %160 {strides = array<i32>} : memref<8x384xf32, #tpu.memory_space<vmem>>, vector<8x384xf32>,
      %162 = tpu.iota {dimensions = array<i32: 0>} : vector<8x8xi32>
      %163 = tpu.iota {dimensions = array<i32: 1>} : vector<8x8xi32>
      %164 = arith.subi %163, %162 : vector<8x8xi32>
      %165 = arith.sitofp %164 : vector<8x8xi32> to vector<8x8xf32>
      %c0_67 = arith.constant 0 : index
      %c0_68 = arith.constant 0 : index
      %166 = vector.load %arg13[%c0_67, %c0_68] : memref<8x8xf32, #tpu.memory_space<vmem>>, vector<8x8xf32>
      tpu.vector_store %arg13[%c0_67, %c0_68], %165 {strides = array<i32>} : memref<8x8xf32, #tpu.memory_space<vmem>>, vector<8x8xf32>,
    } else {
    }
    %c0 = arith.constant 0 : index
    %c0_1 = arith.constant 0 : index
    %3 = vector.load %arg12[%c0, %c0_1] : memref<8x384xf32, #tpu.memory_space<vmem>>, vector<8x384xf32>
    %c0_2 = arith.constant 0 : index
    %c0_3 = arith.constant 0 : index
    %c0_4 = arith.constant 0 : index
    %4 = vector.load %arg5[%c0_2, %c0_3, %c0_4] : memref<1x1x384xf32, #tpu.memory_space<vmem>>, vector<1x1x384xf32>
    %5 = vector.shape_cast %4 : vector<1x1x384xf32> to vector<384xf32>
    %c0_5 = arith.constant 0 : index
    %c0_6 = arith.constant 0 : index
    %c0_7 = arith.constant 0 : index
    %6 = vector.load %arg6[%c0_5, %c0_6, %c0_7] : memref<1x1x384xf32, #tpu.memory_space<vmem>>, vector<1x1x384xf32>
    %7 = vector.shape_cast %6 : vector<1x1x384xf32> to vector<384xf32>
    %cst = arith.constant dense<0.000000e+00> : vector<8xf32>
    %8 = vector.multi_reduction <add>, %3, %cst [1] : vector<8x384xf32> to vector<8xf32>
    %9 = vector.shape_cast %8 : vector<8xf32> to vector<8x1xf32>
    %cst_8 = arith.constant 3.840000e+02 : f32
    %10 = vector.broadcast %cst_8 : f32 to vector<8x1xf32>
    %11 = arith.divf %9, %10 : vector<8x1xf32>
    %12 = vector.broadcast %11 : vector<8x1xf32> to vector<8x384xf32>
    %13 = arith.subf %3, %12 : vector<8x384xf32>
    %14 = arith.mulf %13, %13 : vector<8x384xf32>
    %cst_9 = arith.constant dense<0.000000e+00> : vector<8xf32>
    %15 = vector.multi_reduction <add>, %14, %cst_9 [1] : vector<8x384xf32> to vector<8xf32>
    %16 = vector.shape_cast %15 : vector<8xf32> to vector<8x1xf32>
    %cst_10 = arith.constant 3.840000e+02 : f32
    %17 = vector.broadcast %cst_10 : f32 to vector<8x1xf32>
    %18 = arith.divf %16, %17 : vector<8x1xf32>
    %19 = vector.broadcast %11 : vector<8x1xf32> to vector<8x384xf32>
    %20 = arith.subf %3, %19 : vector<8x384xf32>
    %cst_11 = arith.constant 9.99999974E-6 : f32
    %21 = vector.broadcast %cst_11 : f32 to vector<8x1xf32>
    %22 = arith.addf %18, %21 : vector<8x1xf32>
    %23 = math.rsqrt %22 : vector<8x1xf32>
    %24 = vector.broadcast %23 : vector<8x1xf32> to vector<8x384xf32>
    %25 = arith.mulf %20, %24 : vector<8x384xf32>
    %26 = vector.shape_cast %5 : vector<384xf32> to vector<1x384xf32>
    %27 = vector.broadcast %26 : vector<1x384xf32> to vector<8x384xf32>
    %28 = arith.mulf %25, %27 : vector<8x384xf32>
    %29 = vector.shape_cast %7 : vector<384xf32> to vector<1x384xf32>
    %30 = vector.broadcast %29 : vector<1x384xf32> to vector<8x384xf32>
    %31 = arith.addf %28, %30 : vector<8x384xf32>
    %c0_12 = arith.constant 0 : index
    %c0_13 = arith.constant 0 : index
    %c0_14 = arith.constant 0 : index
    %32 = vector.load %arg7[%c0_12, %c0_13, %c0_14] : memref<1x384x1792xbf16, #tpu.memory_space<vmem>>, vector<1x384x1792xbf16>
    %33 = vector.shape_cast %32 : vector<1x384x1792xbf16> to vector<384x1792xbf16>
    %34 = arith.truncf %31 : vector<8x384xf32> to vector<8x384xbf16>
    %cst_15 = arith.constant dense<0.000000e+00> : vector<8x1792xf32>
    %35 = tpu.matmul %34, %33, %cst_15 {dimension_numbers = #tpu.dot_dimension_numbers<[1], [0], [0], [1], [0, 0, 1, 1], [], []>} : vector<8x384xbf16>, vector<384x1792xbf16>, vector<8x1792xf32> -> vector<8x1792xf32>
    %36 = vector.extract_strided_slice %35 {offsets = [0, 0], sizes = [8, 768], strides = [1, 1]} : vector<8x1792xf32> to vector<8x768xf32>
    %37 = vector.extract_strided_slice %35 {offsets = [0, 768], sizes = [8, 768], strides = [1, 1]} : vector<8x1792xf32> to vector<8x768xf32>
    %38 = vector.extract_strided_slice %35 {offsets = [0, 1536], sizes = [8, 128], strides = [1, 1]} : vector<8x1792xf32> to vector<8x128xf32>
    %39 = vector.extract_strided_slice %35 {offsets = [0, 1664], sizes = [8, 128], strides = [1, 1]} : vector<8x1792xf32> to vector<8x128xf32>
    %cst_16 = arith.constant 5.000000e-01 : f32
    %40 = vector.broadcast %cst_16 : f32 to vector<8x768xf32>
    %41 = arith.mulf %40, %37 : vector<8x768xf32>
    %cst_17 = arith.constant 0.707106769 : f32
    %42 = vector.broadcast %cst_17 : f32 to vector<8x768xf32>
    %43 = arith.mulf %37, %42 : vector<8x768xf32>
    %cst_18 = arith.constant 0.000000e+00 : f32
    %44 = vector.broadcast %cst_18 : f32 to vector<8x768xf32>
    %45 = arith.cmpf oge, %43, %44 : vector<8x768xf32>
    %cst_19 = arith.constant 1.000000e+00 : f32
    %cst_20 = arith.constant -1.000000e+00 : f32
    %46 = vector.broadcast %cst_19 : f32 to vector<8x768xf32>
    %47 = vector.broadcast %cst_20 : f32 to vector<8x768xf32>
    %48 = arith.select %45, %46, %47 : vector<8x768xi1>, vector<8x768xf32>
    %49 = math.absf %43 : vector<8x768xf32>
    %cst_21 = arith.constant 0.327591091 : f32
    %50 = vector.broadcast %cst_21 : f32 to vector<8x768xf32>
    %51 = arith.mulf %50, %49 : vector<8x768xf32>
    %cst_22 = arith.constant 1.000000e+00 : f32
    %52 = vector.broadcast %cst_22 : f32 to vector<8x768xf32>
    %53 = arith.addf %52, %51 : vector<8x768xf32>
    %cst_23 = arith.constant 1.000000e+00 : f32
    %54 = vector.broadcast %cst_23 : f32 to vector<8x768xf32>
    %55 = arith.divf %54, %53 : vector<8x768xf32>
    %cst_24 = arith.constant 1.06140542 : f32
    %56 = vector.broadcast %cst_24 : f32 to vector<8x768xf32>
    %57 = arith.mulf %56, %55 : vector<8x768xf32>
    %cst_25 = arith.constant -1.45315206 : f32
    %58 = vector.broadcast %cst_25 : f32 to vector<8x768xf32>
    %59 = arith.addf %57, %58 : vector<8x768xf32>
    %60 = arith.mulf %59, %55 : vector<8x768xf32>
    %cst_26 = arith.constant 1.42141378 : f32
    %61 = vector.broadcast %cst_26 : f32 to vector<8x768xf32>
    %62 = arith.addf %60, %61 : vector<8x768xf32>
    %63 = arith.mulf %62, %55 : vector<8x768xf32>
    %cst_27 = arith.constant -0.284496725 : f32
    %64 = vector.broadcast %cst_27 : f32 to vector<8x768xf32>
    %65 = arith.addf %63, %64 : vector<8x768xf32>
    %66 = arith.mulf %65, %55 : vector<8x768xf32>
    %cst_28 = arith.constant 0.254829586 : f32
    %67 = vector.broadcast %cst_28 : f32 to vector<8x768xf32>
    %68 = arith.addf %66, %67 : vector<8x768xf32>
    %69 = arith.mulf %68, %55 : vector<8x768xf32>
    %cst_29 = arith.constant 0.000000e+00 : f32
    %70 = vector.broadcast %cst_29 : f32 to vector<8x768xf32>
    %71 = arith.subf %70, %49 : vector<8x768xf32>
    %72 = arith.mulf %71, %49 : vector<8x768xf32>
    %73 = math.exp %72 : vector<8x768xf32>
    %74 = arith.mulf %69, %73 : vector<8x768xf32>
    %cst_30 = arith.constant 1.000000e+00 : f32
    %75 = vector.broadcast %cst_30 : f32 to vector<8x768xf32>
    %76 = arith.subf %75, %74 : vector<8x768xf32>
    %77 = arith.mulf %48, %76 : vector<8x768xf32>
    %cst_31 = arith.constant 1.000000e+00 : f32
    %78 = vector.broadcast %cst_31 : f32 to vector<8x768xf32>
    %79 = arith.addf %78, %77 : vector<8x768xf32>
    %80 = arith.mulf %41, %79 : vector<8x768xf32>
    %81 = arith.mulf %36, %80 : vector<8x768xf32>
    %82 = vector.extract_strided_slice %81 {offsets = [0, 0], sizes = [8, 384], strides = [1, 1]} : vector<8x768xf32> to vector<8x384xf32>
    %83 = vector.extract_strided_slice %81 {offsets = [0, 384], sizes = [8, 384], strides = [1, 1]} : vector<8x768xf32> to vector<8x384xf32>
    %84 = vector.shape_cast %38 : vector<8x128xf32> to vector<1x8x128xf32>
    %85 = vector.shape_cast %39 : vector<8x128xf32> to vector<1x8x128xf32>
    %86 = vector.shape_cast %83 : vector<8x384xf32> to vector<1x8x384xf32>
    "tpu.trace_start"() <{level = 10 : i32, message = "bqd,bkd->bqk"}> : () -> ()
    %cst_32 = arith.constant dense<0.000000e+00> : vector<1x8x8xf32>
    %87 = tpu.matmul %84, %85, %cst_32 {dimension_numbers = #tpu.dot_dimension_numbers<[2], [2], [1], [1], [0, 0, 0, 1, 1, 1], [0], [0]>} : vector<1x8x128xf32>, vector<1x8x128xf32>, vector<1x8x8xf32> -> vector<1x8x8xf32>
    "tpu.trace_stop"() : () -> ()
    %c0_33 = arith.constant 0 : index
    %c0_34 = arith.constant 0 : index
    %88 = vector.load %arg13[%c0_33, %c0_34] : memref<8x8xf32, #tpu.memory_space<vmem>>, vector<8x8xf32>
    %89 = arith.index_cast %arg1 : i32 to index
    %90 = memref.load %arg9[%89] : memref<8xf32, #tpu.memory_space<smem>>
    %91 = vector.broadcast %90 : f32 to vector<8x8xf32>
    %92 = arith.addf %88, %91 : vector<8x8xf32>
    %cst_35 = arith.constant 0.000000e+00 : f32
    %93 = vector.broadcast %cst_35 : f32 to vector<8x8xf32>
    %94 = arith.subf %93, %92 : vector<8x8xf32>
    %95 = math.exp %94 : vector<8x8xf32>
    %cst_36 = arith.constant 1.000000e+00 : f32
    %96 = vector.broadcast %cst_36 : f32 to vector<8x8xf32>
    %97 = arith.addf %96, %95 : vector<8x8xf32>
    %cst_37 = arith.constant 1.000000e+00 : f32
    %98 = vector.broadcast %cst_37 : f32 to vector<8x8xf32>
    %99 = arith.divf %98, %97 : vector<8x8xf32>
    %cst_38 = arith.constant 0.000000e+00 : f32
    %100 = vector.broadcast %cst_38 : f32 to vector<8x8xf32>
    %101 = arith.cmpf ole, %88, %100 : vector<8x8xf32>
    %cst_39 = arith.constant 0xFF800000 : f32
    %102 = vector.broadcast %cst_39 : f32 to vector<8x8xf32>
    %103 = arith.select %101, %99, %102 : vector<8x8xi1>, vector<8x8xf32>
    %104 = vector.shape_cast %103 : vector<8x8xf32> to vector<1x8x8xf32>
    %105 = arith.addf %87, %104 : vector<1x8x8xf32>
    %cst_40 = arith.constant dense<0xFF800000> : vector<1x8xf32>
    %106 = vector.multi_reduction <maximumf>, %105, %cst_40 [2] : vector<1x8x8xf32> to vector<1x8xf32>
    %107 = vector.shape_cast %106 : vector<1x8xf32> to vector<1x8x1xf32>
    %108 = vector.broadcast %107 : vector<1x8x1xf32> to vector<1x8x8xf32>
    %109 = arith.subf %105, %108 : vector<1x8x8xf32>
    %110 = math.exp %109 : vector<1x8x8xf32>
    %cst_41 = arith.constant dense<0.000000e+00> : vector<1x8xf32>
    %111 = vector.multi_reduction <add>, %110, %cst_41 [2] : vector<1x8x8xf32> to vector<1x8xf32>
    %112 = vector.shape_cast %111 : vector<1x8xf32> to vector<1x8x1xf32>
    %113 = vector.broadcast %112 : vector<1x8x1xf32> to vector<1x8x8xf32>
    %114 = arith.divf %110, %113 : vector<1x8x8xf32>
    "tpu.trace_start"() <{level = 10 : i32, message = "bqk,bkd->bqd"}> : () -> ()
    %cst_42 = arith.constant dense<0.000000e+00> : vector<1x8x384xf32>
    %115 = tpu.matmul %114, %86, %cst_42 {dimension_numbers = #tpu.dot_dimension_numbers<[2], [1], [1], [2], [0, 0, 0, 1, 1, 2], [0], [0]>} : vector<1x8x8xf32>, vector<1x8x384xf32>, vector<1x8x384xf32> -> vector<1x8x384xf32>
    "tpu.trace_stop"() : () -> ()
    %116 = vector.shape_cast %115 : vector<1x8x384xf32> to vector<8x384xf32>
    %c0_43 = arith.constant 0 : index
    %c0_44 = arith.constant 0 : index
    %c0_45 = arith.constant 0 : index
    %117 = vector.load %arg8[%c0_43, %c0_44, %c0_45] : memref<1x768x384xbf16, #tpu.memory_space<vmem>>, vector<1x384x384xbf16>
    %118 = vector.shape_cast %117 : vector<1x384x384xbf16> to vector<384x384xbf16>
    %119 = arith.truncf %82 : vector<8x384xf32> to vector<8x384xbf16>
    %cst_46 = arith.constant dense<0.000000e+00> : vector<8x384xf32>
    %120 = tpu.matmul %119, %118, %cst_46 {dimension_numbers = #tpu.dot_dimension_numbers<[1], [0], [0], [1], [0, 0, 1, 1], [], []>} : vector<8x384xbf16>, vector<384x384xbf16>, vector<8x384xf32> -> vector<8x384xf32>
    %c0_47 = arith.constant 0 : index
    %c384 = arith.constant 384 : index
    %c0_48 = arith.constant 0 : index
    %121 = vector.load %arg8[%c0_47, %c384, %c0_48] : memref<1x768x384xbf16, #tpu.memory_space<vmem>>, vector<1x384x384xbf16>
    %122 = vector.shape_cast %121 : vector<1x384x384xbf16> to vector<384x384xbf16>
    %123 = arith.truncf %116 : vector<8x384xf32> to vector<8x384xbf16>
    %cst_49 = arith.constant dense<0.000000e+00> : vector<8x384xf32>
    %124 = tpu.matmul %123, %122, %cst_49 {dimension_numbers = #tpu.dot_dimension_numbers<[1], [0], [0], [1], [0, 0, 1, 1], [], []>} : vector<8x384xbf16>, vector<384x384xbf16>, vector<8x384xf32> -> vector<8x384xf32>
    %125 = arith.addf %120, %124 : vector<8x384xf32>
    %126 = arith.addf %3, %125 : vector<8x384xf32>
    %c0_50 = arith.constant 0 : index
    %c0_51 = arith.constant 0 : index
    %127 = vector.load %arg12[%c0_50, %c0_51] : memref<8x384xf32, #tpu.memory_space<vmem>>, vector<8x384xf32>
    tpu.vector_store %arg12[%c0_50, %c0_51], %126 {strides = array<i32>} : memref<8x384xf32, #tpu.memory_space<vmem>>, vector<8x384xf32>,
    %c7_i32 = arith.constant 7 : i32
    %128 = arith.cmpi eq, %arg1, %c7_i32 : i32
    %129 = arith.extui %128 : i1 to i32
    %c0_i32_52 = arith.constant 0 : i32
    %130 = arith.cmpi ne, %129, %c0_i32_52 : i32
    scf.if %130 {
      %c0_53 = arith.constant 0 : index
      %c0_54 = arith.constant 0 : index
      %131 = vector.load %arg3[%c0_53, %c0_54] : memref<1x384xf32, #tpu.memory_space<vmem>>, vector<1x384xf32>
      %132 = vector.shape_cast %131 : vector<1x384xf32> to vector<384xf32>
      %c0_55 = arith.constant 0 : index
      %c0_56 = arith.constant 0 : index
      %133 = vector.load %arg4[%c0_55, %c0_56] : memref<1x384xf32, #tpu.memory_space<vmem>>, vector<1x384xf32>
      %134 = vector.shape_cast %133 : vector<1x384xf32> to vector<384xf32>
      %cst_57 = arith.constant dense<0.000000e+00> : vector<8xf32>
      %135 = vector.multi_reduction <add>, %126, %cst_57 [1] : vector<8x384xf32> to vector<8xf32>
      %136 = vector.shape_cast %135 : vector<8xf32> to vector<8x1xf32>
      %cst_58 = arith.constant 3.840000e+02 : f32
      %137 = vector.broadcast %cst_58 : f32 to vector<8x1xf32>
      %138 = arith.divf %136, %137 : vector<8x1xf32>
      %139 = vector.broadcast %138 : vector<8x1xf32> to vector<8x384xf32>
      %140 = arith.subf %126, %139 : vector<8x384xf32>
      %141 = arith.mulf %140, %140 : vector<8x384xf32>
      %cst_59 = arith.constant dense<0.000000e+00> : vector<8xf32>
      %142 = vector.multi_reduction <add>, %141, %cst_59 [1] : vector<8x384xf32> to vector<8xf32>
      %143 = vector.shape_cast %142 : vector<8xf32> to vector<8x1xf32>
      %cst_60 = arith.constant 3.840000e+02 : f32
      %144 = vector.broadcast %cst_60 : f32 to vector<8x1xf32>
      %145 = arith.divf %143, %144 : vector<8x1xf32>
      %146 = vector.broadcast %138 : vector<8x1xf32> to vector<8x384xf32>
      %147 = arith.subf %126, %146 : vector<8x384xf32>
      %cst_61 = arith.constant 9.99999974E-6 : f32
      %148 = vector.broadcast %cst_61 : f32 to vector<8x1xf32>
      %149 = arith.addf %145, %148 : vector<8x1xf32>
      %150 = math.rsqrt %149 : vector<8x1xf32>
      %151 = vector.broadcast %150 : vector<8x1xf32> to vector<8x384xf32>
      %152 = arith.mulf %147, %151 : vector<8x384xf32>
      %153 = vector.shape_cast %132 : vector<384xf32> to vector<1x384xf32>
      %154 = vector.broadcast %153 : vector<1x384xf32> to vector<8x384xf32>
      %155 = arith.mulf %152, %154 : vector<8x384xf32>
      %156 = vector.shape_cast %134 : vector<384xf32> to vector<1x384xf32>
      %157 = vector.broadcast %156 : vector<1x384xf32> to vector<8x384xf32>
      %158 = arith.addf %155, %157 : vector<8x384xf32>
      %c0_62 = arith.constant 0 : index
      %c0_63 = arith.constant 0 : index
      %159 = vector.load %arg10[%c0_62, %c0_63] : memref<384x128xbf16, #tpu.memory_space<vmem>>, vector<384x128xbf16>
      %160 = arith.truncf %158 : vector<8x384xf32> to vector<8x384xbf16>
      %cst_64 = arith.constant dense<0.000000e+00> : vector<8x128xf32>
      %161 = tpu.matmul %160, %159, %cst_64 {dimension_numbers = #tpu.dot_dimension_numbers<[1], [0], [0], [1], [0, 0, 1, 1], [], []>} : vector<8x384xbf16>, vector<384x128xbf16>, vector<8x128xf32> -> vector<8x128xf32>
      %162 = vector.shape_cast %161 : vector<8x128xf32> to vector<1x8x128xf32>
      %c0_65 = arith.constant 0 : index
      %c0_66 = arith.constant 0 : index
      %c0_67 = arith.constant 0 : index
      %163 = vector.load %arg11[%c0_65, %c0_66, %c0_67] : memref<1x8x128xf32, #tpu.memory_space<vmem>>, vector<1x8x128xf32>
      tpu.vector_store %arg11[%c0_65, %c0_66, %c0_67], %162 {strides = array<i32>} : memref<1x8x128xf32, #tpu.memory_space<vmem>>, vector<1x8x128xf32>,
    } else {
    }
    return
  }
  func.func @transform_0(%arg0: i32, %arg1: i32) -> (i32, i32, i32) {
    %c0_i32 = arith.constant 0 : i32
    %c0_i32_0 = arith.constant 0 : i32
    %c0_i32_1 = arith.constant 0 : i32
    return %arg0, %c0_i32, %c0_i32_0 : i32, i32, i32
  }
  func.func @transform_1(%arg0: i32, %arg1: i32) -> (i32, i32) {
    %c0_i32 = arith.constant 0 : i32
    %c0_i32_0 = arith.constant 0 : i32
    %c0_i32_1 = arith.constant 0 : i32
    return %c0_i32, %c0_i32_0 : i32, i32
  }
  func.func @transform_2(%arg0: i32, %arg1: i32) -> (i32, i32) {
    %c0_i32 = arith.constant 0 : i32
    %c0_i32_0 = arith.constant 0 : i32
    %c0_i32_1 = arith.constant 0 : i32
    return %c0_i32, %c0_i32_0 : i32, i32
  }
  func.func @transform_3(%arg0: i32, %arg1: i32) -> (i32, i32, i32) {
    %c0_i32 = arith.constant 0 : i32
    %c0_i32_0 = arith.constant 0 : i32
    %c0_i32_1 = arith.constant 0 : i32
    return %arg1, %c0_i32, %c0_i32_0 : i32, i32, i32
  }
  func.func @transform_4(%arg0: i32, %arg1: i32) -> (i32, i32, i32) {
    %c0_i32 = arith.constant 0 : i32
    %c0_i32_0 = arith.constant 0 : i32
    %c0_i32_1 = arith.constant 0 : i32
    return %arg1, %c0_i32, %c0_i32_0 : i32, i32, i32
  }
  func.func @transform_5(%arg0: i32, %arg1: i32) -> (i32, i32, i32) {
    %c0_i32 = arith.constant 0 : i32
    %c0_i32_0 = arith.constant 0 : i32
    %c0_i32_1 = arith.constant 0 : i32
    return %arg1, %c0_i32, %c0_i32_0 : i32, i32, i32
  }
  func.func @transform_6(%arg0: i32, %arg1: i32) -> (i32, i32, i32) {
    %c0_i32 = arith.constant 0 : i32
    %c0_i32_0 = arith.constant 0 : i32
    %c0_i32_1 = arith.constant 0 : i32
    return %arg1, %c0_i32, %c0_i32_0 : i32, i32, i32
  }
  func.func @transform_7(%arg0: i32, %arg1: i32) -> i32 {
    %c0_i32 = arith.constant 0 : i32
    %c0_i32_0 = arith.constant 0 : i32
    return %c0_i32 : i32
  }
  func.func @transform_8(%arg0: i32, %arg1: i32) -> (i32, i32) {
    %c0_i32 = arith.constant 0 : i32
    %c0_i32_0 = arith.constant 0 : i32
    %c0_i32_1 = arith.constant 0 : i32
    return %c0_i32, %c0_i32_0 : i32, i32
  }
  func.func @transform_9(%arg0: i32, %arg1: i32) -> (i32, i32, i32) {
    %c0_i32 = arith.constant 0 : i32
    %c0_i32_0 = arith.constant 0 : i32
    %c0_i32_1 = arith.constant 0 : i32
    return %arg0, %c0_i32, %c0_i32_0 : i32, i32, i32
  }
}

</mosaic_0001>

<llo_original>
// kernel: tpu_custom_call.1
$region0: #{tpu_custom_call.1}
  #allocation0 [shape = 'u32[]', space=smem, size = 0x4, offset = 0x4, fixed_abs, tag = 'smem constant byte address 0x4 - core index']
  #allocation1 [shape = 'u32[144,128]{1,0:T(1,128)}', space=vmem, size = 0x12000, scoped, tag = 'internal scratch']
  #allocation2 [shape = 'f32[8,384]{1,0:T(8,128)}', space=vmem, size = 0x3000, scoped, tag = 'scratch operand']
  #allocation3 [shape = 'f32[8,8]{1,0:T(8,128)}', space=vmem, size = 0x1000, scoped, tag = 'scratch operand']
  %s0 = inlined_call_operand.hbm [shape: f32[2,8,384], index: 0, kind: input, shape index: {}]
  %s1 = inlined_call_operand.hbm [shape: f32[1,384], index: 1, kind: input, shape index: {}]
  %s2 = inlined_call_operand.hbm [shape: f32[1,384], index: 2, kind: input, shape index: {}]
  %s3 = inlined_call_operand.hbm [shape: f32[8,1,384], index: 3, kind: input, shape index: {}]
  %s4 = inlined_call_operand.hbm [shape: f32[8,1,384], index: 4, kind: input, shape index: {}]
  %s5 = inlined_call_operand.hbm [shape: bf16[8,384,1792], index: 5, kind: input, shape index: {}]
  %s6 = inlined_call_operand.hbm [shape: bf16[8,768,384], index: 6, kind: input, shape index: {}]
  %s7 = inlined_call_operand.hbm [shape: f32[8], index: 7, kind: input, shape index: {}]
  %s8 = inlined_call_operand.hbm [shape: bf16[384,128], index: 8, kind: input, shape index: {}]
  %s9 = inlined_call_operand.hbm [shape: f32[2,8,128], index: 9, kind: output, shape index: {}]
  %s10 = sld [smem:[#allocation0]]
  $region113: #{tpu_custom_call.1} parent=0
    _
  %s12 = ssub.s32 1, %s10
  %s13 = scalar_select 0, %s12, %s10
  $region1: #{tpu_custom_call.1} parent=0
    #allocation4 [shape = 'u8[24576]{0}', space=vmem, size = 0x6000, scoped, tag = 'input window, operand 0']
    #allocation5 [shape = 's32[2]{0}', space=sflag, size = 0x8, scoped, tag = 'scoped memory for tpu_custom_call.1']
    #allocation6 [shape = 's32[2]{0}', space=sflag, size = 0x8, scoped, tag = 'scoped memory for tpu_custom_call.1']
    #allocation7 [shape = 's32[2]{0}', space=sflag, size = 0x8, scoped, tag = 'scoped memory for tpu_custom_call.1']
    #allocation8 [shape = 'u8[1536]{0}', space=vmem, size = 0x800, scoped, tag = 'input window, operand 1, single buffered']
    #allocation9 [shape = 's32[1]{0}', space=sflag, size = 0x4, scoped, tag = 'scoped memory for tpu_custom_call.1']
    #allocation10 [shape = 'u8[1536]{0}', space=vmem, size = 0x800, scoped, tag = 'input window, operand 2, single buffered']
    #allocation11 [shape = 'u8[3072]{0}', space=vmem, size = 0xc00, scoped, tag = 'input window, operand 3']
    #allocation12 [shape = 's32[2]{0}', space=sflag, size = 0x8, scoped, tag = 'scoped memory for tpu_custom_call.1']
    #allocation13 [shape = 'u8[3072]{0}', space=vmem, size = 0xc00, scoped, tag = 'input window, operand 4']
    #allocation14 [shape = 'u8[2752512]{0}', space=vmem, size = 0x2a0000, scoped, tag = 'input window, operand 5']
    #allocation15 [shape = 's32[2]{0}', space=sflag, size = 0x8, scoped, tag = 'scoped memory for tpu_custom_call.1']
    #allocation16 [shape = 'u8[1179648]{0}', space=vmem, size = 0x120000, scoped, tag = 'input window, operand 6']
    #allocation17 [shape = 'u8[512]{0}', space=smem, size = 0x200, scoped, tag = 'input window, operand 7, single buffered']
    #allocation18 [shape = 'u8[98304]{0}', space=vmem, size = 0x18000, scoped, tag = 'input window, operand 8, single buffered']
    #allocation19 [shape = 's32[1]{0}', space=sflag, size = 0x4, scoped, tag = 'scoped memory for tpu_custom_call.1']
    #allocation20 [shape = 'u8[8192]{0}', space=vmem, size = 0x2000, scoped, tag = 'output window, operand 0']
    %14 = vsyncpa [#allocation5], 0
    %s15 = scalar_lea.sflag [#allocation5], 1
    %16 = vsyncpa %s15, 0
    %17 = vsyncpa [#allocation9], 0
    %18 = vsyncpa [#allocation12], 0
    %s19 = scalar_lea.sflag [#allocation12], 1
    %20 = vsyncpa %s19, 0
    %21 = vsyncpa [#allocation15], 0
    %s22 = scalar_lea.sflag [#allocation15], 1
    %23 = vsyncpa %s22, 0
    %24 = vsyncpa [#allocation7], 0
    %25 = vsyncpa [#allocation19], 0
    %26 = vsyncpa [#allocation6], 0
    %s27 = scalar_lea.sflag [#allocation6], 1
    %28 = vsyncpa %s27, 0
    loop: start=0, step=1, limit=18
    $region2: #{tpu_custom_call.1} parent=1 // loop_pre_header
      _
    $region3: #{tpu_custom_call.1} parent=1 // loop_header
      %s30 = sphi 0, %s34
      %p31 = scmp.ge.s32.totalorder %s30, 18
      %s37 = sphi 0, %s49
      %s38 = sphi 0, %s45
      %s39 = sphi 0, %s37
      %s40 = sphi 0, %s38
      %s41 = sphi 0, %s39
      %s42 = sphi 0, %s40
      %s52 = sphi 0, %s54
      %s55 = sphi 0, %s52
      %s56 = sphi 0, %s55
      %s72 = sphi 0, %s56
      %s76 = sphi 0, %s76
      %s78 = sphi 0, %s76
      %s79 = sphi 0, %s78
      %s93 = sphi 0, %s79
      %s97 = sphi 0, %s97
      %s99 = sphi 0, %s97
      %s100 = sphi 0, %s99
      %s114 = sphi 0, %s100
      %s120 = sphi 0, %s122
      %s123 = sphi 0, %s120
      %s124 = sphi 0, %s123
      %s140 = sphi 0, %s124
      %s146 = sphi 0, %s148
      %s149 = sphi 0, %s146
      %s150 = sphi 0, %s149
      %s166 = sphi 0, %s150
      %s172 = sphi 0, %s174
      %s175 = sphi 0, %s172
      %s176 = sphi 0, %s175
      %s192 = sphi 0, %s176
      %s198 = sphi 0, %s200
      %s201 = sphi 0, %s198
      %s202 = sphi 0, %s201
      %s218 = sphi 0, %s202
      %s222 = sphi 0, %s222
      %s224 = sphi 0, %s222
      %s225 = sphi 0, %s224
      %s239 = sphi 0, %s225
      %s243 = sphi 0, %s243
      %s245 = sphi 0, %s243
      %s246 = sphi 0, %s245
      %s260 = sphi 0, %s246
      %s266 = sphi 0, %s268
      %s269 = sphi 0, %s266
      %s270 = sphi 0, %s269
      %s286 = sphi 0, %s270
    $region4: #{tpu_custom_call.1} parent=1 // loop_header_branch
      %33 = sbr.rel (%p31) target = $region8
    $region5: #{tpu_custom_call.1} parent=1 // loop_body
      %s35 = ssub.s32 %s30, 1
      %s36 = ssub.s32 %s30, 2
      %s43 = sadd.s32 1, %s38
      %p44 = scmp.ge.s32.totalorder %s43, 8
      %s45 = scalar_select %p44, 0, %s43
      %s46 = sadd.s32 1, %s37
      %s47 = scalar_select %p44, %s46, %s37
      %p48 = scmp.ge.s32.totalorder %s47, 2
      %s49 = scalar_select %p48, 0, %s47
      %s50 = ssub.s32 %s37, %s49
      %p51 = scmp.eq.s32.totalorder %s50, 0
      %s53 = sadd.s32 %s52, 1
      %s54 = scalar_select %p51, %s52, %s53
      %p57 = pneg %p51
      %p58 = scmp.eq.s32.totalorder %s30, 15
      %p59 = por %p57, %p58
      %p60 = scmp.ne.s32.totalorder %s52, %s55
      %p61 = scmp.eq.s32.totalorder %s30, 0
      %p62 = por %p60, %p61
      %p63 = scmp.ne.s32.totalorder %s52, %s55
      %p64 = scmp.eq.s32.totalorder %s35, 15
      %p65 = por %p63, %p64
      %p66 = scmp.ne.s32.totalorder %s55, %s56
      %p67 = scmp.eq.s32.totalorder %s35, 0
      %p68 = por %p66, %p67
      %p69 = scmp.ne.s32.totalorder %s55, %s56
      %p70 = scmp.eq.s32.totalorder %s36, 15
      %p71 = por %p69, %p70
      %p73 = scmp.ne.s32.totalorder %s56, %s72
      %p74 = scmp.eq.s32.totalorder %s36, 0
      %p75 = por %p73, %p74
      %s77 = sadd.s32 %s76, 1
      %p80 = scmp.eq.s32.totalorder %s30, 15
      %p81 = scmp.ne.s32.totalorder %s76, %s78
      %p82 = scmp.eq.s32.totalorder %s30, 0
      %p83 = por %p81, %p82
      %p84 = scmp.ne.s32.totalorder %s76, %s78
      %p85 = scmp.eq.s32.totalorder %s35, 15
      %p86 = por %p84, %p85
      %p87 = scmp.ne.s32.totalorder %s78, %s79
      %p88 = scmp.eq.s32.totalorder %s35, 0
      %p89 = por %p87, %p88
      %p90 = scmp.ne.s32.totalorder %s78, %s79
      %p91 = scmp.eq.s32.totalorder %s36, 15
      %p92 = por %p90, %p91
      %p94 = scmp.ne.s32.totalorder %s79, %s93
      %p95 = scmp.eq.s32.totalorder %s36, 0
      %p96 = por %p94, %p95
      %s98 = sadd.s32 %s97, 1
      %p101 = scmp.eq.s32.totalorder %s30, 15
      %p102 = scmp.ne.s32.totalorder %s97, %s99
      %p103 = scmp.eq.s32.totalorder %s30, 0
      %p104 = por %p102, %p103
      %p105 = scmp.ne.s32.totalorder %s97, %s99
      %p106 = scmp.eq.s32.totalorder %s35, 15
      %p107 = por %p105, %p106
      %p108 = scmp.ne.s32.totalorder %s99, %s100
      %p109 = scmp.eq.s32.totalorder %s35, 0
      %p110 = por %p108, %p109
      %p111 = scmp.ne.s32.totalorder %s99, %s100
      %p112 = scmp.eq.s32.totalorder %s36, 15
      %p113 = por %p111, %p112
      %p115 = scmp.ne.s32.totalorder %s100, %s114
      %p116 = scmp.eq.s32.totalorder %s36, 0
      %p117 = por %p115, %p116
      %s118 = ssub.s32 %s38, %s45
      %p119 = scmp.eq.s32.totalorder %s118, 0
      %s121 = sadd.s32 %s120, 1
      %s122 = scalar_select %p119, %s120, %s121
      %p125 = pneg %p119
      %p126 = scmp.eq.s32.totalorder %s30, 15
      %p127 = por %p125, %p126
      %p128 = scmp.ne.s32.totalorder %s120, %s123
      %p129 = scmp.eq.s32.totalorder %s30, 0
      %p130 = por %p128, %p129
      %p131 = scmp.ne.s32.totalorder %s120, %s123
      %p132 = scmp.eq.s32.totalorder %s35, 15
      %p133 = por %p131, %p132
      %p134 = scmp.ne.s32.totalorder %s123, %s124
      %p135 = scmp.eq.s32.totalorder %s35, 0
      %p136 = por %p134, %p135
      %p137 = scmp.ne.s32.totalorder %s123, %s124
      %p138 = scmp.eq.s32.totalorder %s36, 15
      %p139 = por %p137, %p138
      %p141 = scmp.ne.s32.totalorder %s124, %s140
      %p142 = scmp.eq.s32.totalorder %s36, 0
      %p143 = por %p141, %p142
      %s144 = ssub.s32 %s38, %s45
      %p145 = scmp.eq.s32.totalorder %s144, 0
      %s147 = sadd.s32 %s146, 1
      %s148 = scalar_select %p145, %s146, %s147
      %p151 = pneg %p145
      %p152 = scmp.eq.s32.totalorder %s30, 15
      %p153 = por %p151, %p152
      %p154 = scmp.ne.s32.totalorder %s146, %s149
      %p155 = scmp.eq.s32.totalorder %s30, 0
      %p156 = por %p154, %p155
      %p157 = scmp.ne.s32.totalorder %s146, %s149
      %p158 = scmp.eq.s32.totalorder %s35, 15
      %p159 = por %p157, %p158
      %p160 = scmp.ne.s32.totalorder %s149, %s150
      %p161 = scmp.eq.s32.totalorder %s35, 0
      %p162 = por %p160, %p161
      %p163 = scmp.ne.s32.totalorder %s149, %s150
      %p164 = scmp.eq.s32.totalorder %s36, 15
      %p165 = por %p163, %p164
      %p167 = scmp.ne.s32.totalorder %s150, %s166
      %p168 = scmp.eq.s32.totalorder %s36, 0
      %p169 = por %p167, %p168
      %s170 = ssub.s32 %s38, %s45
      %p171 = scmp.eq.s32.totalorder %s170, 0
      %s173 = sadd.s32 %s172, 1
      %s174 = scalar_select %p171, %s172, %s173
      %p177 = pneg %p171
      %p178 = scmp.eq.s32.totalorder %s30, 15
      %p179 = por %p177, %p178
      %p180 = scmp.ne.s32.totalorder %s172, %s175
      %p181 = scmp.eq.s32.totalorder %s30, 0
      %p182 = por %p180, %p181
      %p183 = scmp.ne.s32.totalorder %s172, %s175
      %p184 = scmp.eq.s32.totalorder %s35, 15
      %p185 = por %p183, %p184
      %p186 = scmp.ne.s32.totalorder %s175, %s176
      %p187 = scmp.eq.s32.totalorder %s35, 0
      %p188 = por %p186, %p187
      %p189 = scmp.ne.s32.totalorder %s175, %s176
      %p190 = scmp.eq.s32.totalorder %s36, 15
      %p191 = por %p189, %p190
      %p193 = scmp.ne.s32.totalorder %s176, %s192
      %p194 = scmp.eq.s32.totalorder %s36, 0
      %p195 = por %p193, %p194
      %s196 = ssub.s32 %s38, %s45
      %p197 = scmp.eq.s32.totalorder %s196, 0
      %s199 = sadd.s32 %s198, 1
      %s200 = scalar_select %p197, %s198, %s199
      %p203 = pneg %p197
      %p204 = scmp.eq.s32.totalorder %s30, 15
      %p205 = por %p203, %p204
      %p206 = scmp.ne.s32.totalorder %s198, %s201
      %p207 = scmp.eq.s32.totalorder %s30, 0
      %p208 = por %p206, %p207
      %p209 = scmp.ne.s32.totalorder %s198, %s201
      %p210 = scmp.eq.s32.totalorder %s35, 15
      %p211 = por %p209, %p210
      %p212 = scmp.ne.s32.totalorder %s201, %s202
      %p213 = scmp.eq.s32.totalorder %s35, 0
      %p214 = por %p212, %p213
      %p215 = scmp.ne.s32.totalorder %s201, %s202
      %p216 = scmp.eq.s32.totalorder %s36, 15
      %p217 = por %p215, %p216
      %p219 = scmp.ne.s32.totalorder %s202, %s218
      %p220 = scmp.eq.s32.totalorder %s36, 0
      %p221 = por %p219, %p220
      %s223 = sadd.s32 %s222, 1
      %p226 = scmp.eq.s32.totalorder %s30, 15
      %p227 = scmp.ne.s32.totalorder %s222, %s224
      %p228 = scmp.eq.s32.totalorder %s30, 0
      %p229 = por %p227, %p228
      %p230 = scmp.ne.s32.totalorder %s222, %s224
      %p231 = scmp.eq.s32.totalorder %s35, 15
      %p232 = por %p230, %p231
      %p233 = scmp.ne.s32.totalorder %s224, %s225
      %p234 = scmp.eq.s32.totalorder %s35, 0
      %p235 = por %p233, %p234
      %p236 = scmp.ne.s32.totalorder %s224, %s225
      %p237 = scmp.eq.s32.totalorder %s36, 15
      %p238 = por %p236, %p237
      %p240 = scmp.ne.s32.totalorder %s225, %s239
      %p241 = scmp.eq.s32.totalorder %s36, 0
      %p242 = por %p240, %p241
      %s244 = sadd.s32 %s243, 1
      %p247 = scmp.eq.s32.totalorder %s30, 15
      %p248 = scmp.ne.s32.totalorder %s243, %s245
      %p249 = scmp.eq.s32.totalorder %s30, 0
      %p250 = por %p248, %p249
      %p251 = scmp.ne.s32.totalorder %s243, %s245
      %p252 = scmp.eq.s32.totalorder %s35, 15
      %p253 = por %p251, %p252
      %p254 = scmp.ne.s32.totalorder %s245, %s246
      %p255 = scmp.eq.s32.totalorder %s35, 0
      %p256 = por %p254, %p255
      %p257 = scmp.ne.s32.totalorder %s245, %s246
      %p258 = scmp.eq.s32.totalorder %s36, 15
      %p259 = por %p257, %p258
      %p261 = scmp.ne.s32.totalorder %s246, %s260
      %p262 = scmp.eq.s32.totalorder %s36, 0
      %p263 = por %p261, %p262
      %s264 = ssub.s32 %s37, %s49
      %p265 = scmp.eq.s32.totalorder %s264, 0
      %s267 = sadd.s32 %s266, 1
      %s268 = scalar_select %p265, %s266, %s267
      %p271 = pneg %p265
      %p272 = scmp.eq.s32.totalorder %s30, 15
      %p273 = por %p271, %p272
      %p274 = scmp.ne.s32.totalorder %s266, %s269
      %p275 = scmp.eq.s32.totalorder %s30, 0
      %p276 = por %p274, %p275
      %p277 = scmp.ne.s32.totalorder %s266, %s269
      %p278 = scmp.eq.s32.totalorder %s35, 15
      %p279 = por %p277, %p278
      %p280 = scmp.ne.s32.totalorder %s269, %s270
      %p281 = scmp.eq.s32.totalorder %s35, 0
      %p282 = por %p280, %p281
      %p283 = scmp.ne.s32.totalorder %s269, %s270
      %p284 = scmp.eq.s32.totalorder %s36, 15
      %p285 = por %p283, %p284
      %p287 = scmp.ne.s32.totalorder %s270, %s286
      %p288 = scmp.eq.s32.totalorder %s36, 0
      %p289 = por %p287, %p288
      %p290 = scmp.le.s32.totalorder 1, %s30
      %p291 = scmp.lt.s32.totalorder %s30, 17
      %p292 = pnand %p290, %p291
      %p293 = pneg %p292
      // Predicated region
      $region9: #{tpu_custom_call.1} parent=5 // pred_check
        _
      $region10: #{tpu_custom_call.1} parent=5 // pred_check_branch
        %295 = sbr.rel (%p292) target = $region12
      $region11: #{tpu_custom_call.1} parent=5 // pred_region
        %s296 = ssub.s32 %s30, 1
        // Predicated region
        $region13: #{tpu_custom_call.1} parent=11 // pred_check
          %p297 = pneg %p89
        $region14: #{tpu_custom_call.1} parent=11 // pred_check_branch
          %299 = sbr.rel (%p297) target = $region16
        $region15: #{tpu_custom_call.1} parent=11 // pred_region
          %s301 = ssub.s32 48, 48
          %302 = vsyncadd [#allocation9], %s301
          %s304 = sshll.u32 [#allocation8], 4
          %s305 = int_to_ptr.vmem [resolvable:$true] %s304
          %307 = dma.hbm_to_vmem [thread:$0]  %s1, 48, %s305, [#allocation9]
        $region16: #{tpu_custom_call.1} parent=11 // pred_fallthru
          _
        // Predicated region
        $region17: #{tpu_custom_call.1} parent=11 // pred_check
          %p308 = pneg %p110
        $region18: #{tpu_custom_call.1} parent=11 // pred_check_branch
          %310 = sbr.rel (%p308) target = $region20
        $region19: #{tpu_custom_call.1} parent=11 // pred_region
          %s312 = ssub.s32 48, 48
          %313 = vsyncadd [#allocation9], %s312
          %s315 = sshll.u32 [#allocation10], 4
          %s316 = int_to_ptr.vmem [resolvable:$true] %s315
          %318 = dma.hbm_to_vmem [thread:$0]  %s2, 48, %s316, [#allocation9]
        $region20: #{tpu_custom_call.1} parent=11 // pred_fallthru
          _
        // Predicated region
        $region21: #{tpu_custom_call.1} parent=11 // pred_check
          %p319 = pneg %p235
        $region22: #{tpu_custom_call.1} parent=11 // pred_check_branch
          %321 = sbr.rel (%p319) target = $region24
        $region23: #{tpu_custom_call.1} parent=11 // pred_region
          %s323 = ssub.s32 16, 16
          %324 = vsyncadd [#allocation7], %s323
          %327 = dma.hbm_to_smem %s7, 16, [#allocation17], [#allocation7]
        $region24: #{tpu_custom_call.1} parent=11 // pred_fallthru
          _
        // Predicated region
        $region25: #{tpu_custom_call.1} parent=11 // pred_check
          %p328 = pneg %p256
        $region26: #{tpu_custom_call.1} parent=11 // pred_check_branch
          %330 = sbr.rel (%p328) target = $region28
        $region27: #{tpu_custom_call.1} parent=11 // pred_region
          %s332 = ssub.s32 3072, 3072
          %333 = vsyncadd [#allocation19], %s332
          %s334 = sshll.u32 [#allocation18], 4
          %s335 = int_to_ptr.vmem [resolvable:$true] %s334
          %340 = dma.hbm_to_vmem [thread:$0]  %s8, 3072, %s335, [#allocation19], 64, 64, 4
        $region28: #{tpu_custom_call.1} parent=11 // pred_fallthru
          _
      $region12: #{tpu_custom_call.1} parent=5 // pred_fallthru
        _
      %p341 = scmp.lt.s32.totalorder %s30, 16
      // Predicated region
      $region29: #{tpu_custom_call.1} parent=5 // pred_check
        %p342 = pneg %p341
      $region30: #{tpu_custom_call.1} parent=5 // pred_check_branch
        %344 = sbr.rel (%p342) target = $region32
      $region31: #{tpu_custom_call.1} parent=5 // pred_region
        // Predicated region
        $region33: #{tpu_custom_call.1} parent=31 // pred_check
          %p345 = pneg %p62
        $region34: #{tpu_custom_call.1} parent=31 // pred_check_branch
          %347 = sbr.rel (%p345) target = $region36
        $region35: #{tpu_custom_call.1} parent=31 // pred_region
          %s348 = sand.u32 %s52, 1
          %s349 = scalar_lea.sflag [#allocation5], %s348
          %s350 = sand.u32 %s52, 1
          %s351 = smul.addr %s350, 24
          %s352 = scalar_lea.vmem [#allocation4], %s351
          %s354 = ssub.s32 384, 384
          %355 = vsyncadd %s349, %s354
          %s356 = smul.addr %s37, 3
          %s357 = smul.addr %s356, 128
          %s358 = scalar_lea.hbm %s0, %s357
          %s360 = sshll.u32 %s352, 4
          %s361 = int_to_ptr.vmem [resolvable:$true] %s360
          %363 = dma.hbm_to_vmem [thread:$0]  %s358, 384, %s361, %s349
        $region36: #{tpu_custom_call.1} parent=31 // pred_fallthru
          _
        // Predicated region
        $region37: #{tpu_custom_call.1} parent=31 // pred_check
          %p364 = pneg %p130
        $region38: #{tpu_custom_call.1} parent=31 // pred_check_branch
          %366 = sbr.rel (%p364) target = $region40
        $region39: #{tpu_custom_call.1} parent=31 // pred_region
          %s367 = sand.u32 %s30, 1
          %s368 = scalar_lea.sflag [#allocation12], %s367
          %s369 = sand.u32 %s120, 1
          %s370 = smul.addr %s369, 3
          %s371 = scalar_lea.vmem [#allocation11], %s370
          %s373 = ssub.s32 48, 48
          %374 = vsyncadd %s368, %s373
          %s375 = smul.addr %s38, 3
          %s376 = smul.addr %s375, 16
          %s377 = scalar_lea.hbm %s3, %s376
          %s379 = sshll.u32 %s371, 4
          %s380 = int_to_ptr.vmem [resolvable:$true] %s379
          %382 = dma.hbm_to_vmem [thread:$0]  %s377, 48, %s380, %s368
        $region40: #{tpu_custom_call.1} parent=31 // pred_fallthru
          _
        // Predicated region
        $region41: #{tpu_custom_call.1} parent=31 // pred_check
          %p383 = pneg %p156
        $region42: #{tpu_custom_call.1} parent=31 // pred_check_branch
          %385 = sbr.rel (%p383) target = $region44
        $region43: #{tpu_custom_call.1} parent=31 // pred_region
          %s386 = sand.u32 %s30, 1
          %s387 = scalar_lea.sflag [#allocation12], %s386
          %s388 = sand.u32 %s146, 1
          %s389 = smul.addr %s388, 3
          %s390 = scalar_lea.vmem [#allocation13], %s389
          %s392 = ssub.s32 48, 48
          %393 = vsyncadd %s387, %s392
          %s394 = smul.addr %s38, 3
          %s395 = smul.addr %s394, 16
          %s396 = scalar_lea.hbm %s4, %s395
          %s398 = sshll.u32 %s390, 4
          %s399 = int_to_ptr.vmem [resolvable:$true] %s398
          %401 = dma.hbm_to_vmem [thread:$0]  %s396, 48, %s399, %s387
        $region44: #{tpu_custom_call.1} parent=31 // pred_fallthru
          _
        // Predicated region
        $region45: #{tpu_custom_call.1} parent=31 // pred_check
          %p402 = pneg %p182
        $region46: #{tpu_custom_call.1} parent=31 // pred_check_branch
          %404 = sbr.rel (%p402) target = $region48
        $region47: #{tpu_custom_call.1} parent=31 // pred_region
          %s405 = sand.u32 %s30, 1
          %s406 = scalar_lea.sflag [#allocation15], %s405
          %s407 = sand.u32 %s172, 1
          %s408 = smul.addr %s407, 2688
          %s409 = scalar_lea.vmem [#allocation14], %s408
          %s411 = ssub.s32 43008, 43008
          %412 = vsyncadd %s406, %s411
          %s413 = smul.addr %s38, 672
          %s414 = smul.addr %s413, 64
          %s415 = scalar_lea.hbm %s5, %s414
          %s416 = sshll.u32 %s409, 4
          %s417 = int_to_ptr.vmem [resolvable:$true] %s416
          %422 = dma.hbm_to_vmem [thread:$0]  %s415, 43008, %s417, %s406, 896, 896, 56
        $region48: #{tpu_custom_call.1} parent=31 // pred_fallthru
          _
        // Predicated region
        $region49: #{tpu_custom_call.1} parent=31 // pred_check
          %p423 = pneg %p208
        $region50: #{tpu_custom_call.1} parent=31 // pred_check_branch
          %425 = sbr.rel (%p423) target = $region52
        $region51: #{tpu_custom_call.1} parent=31 // pred_region
          %s426 = sand.u32 %s30, 1
          %s427 = scalar_lea.sflag [#allocation15], %s426
          %s428 = sand.u32 %s198, 1
          %s429 = smul.addr %s428, 1152
          %s430 = scalar_lea.vmem [#allocation16], %s429
          %s432 = ssub.s32 18432, 18432
          %433 = vsyncadd %s427, %s432
          %s434 = smul.addr %s38, 288
          %s435 = smul.addr %s434, 64
          %s436 = scalar_lea.hbm %s6, %s435
          %s437 = sshll.u32 %s430, 4
          %s438 = int_to_ptr.vmem [resolvable:$true] %s437
          %443 = dma.hbm_to_vmem [thread:$0]  %s436, 18432, %s438, %s427, 192, 192, 12
        $region52: #{tpu_custom_call.1} parent=31 // pred_fallthru
          _
      $region32: #{tpu_custom_call.1} parent=5 // pred_fallthru
        _
      %p444 = scmp.le.s32.totalorder 1, %s30
      %p445 = scmp.lt.s32.totalorder %s30, 17
      %p446 = pnand %p444, %p445
      %p447 = pneg %p446
      // Predicated region
      $region53: #{tpu_custom_call.1} parent=5 // pred_check
        _
      $region54: #{tpu_custom_call.1} parent=5 // pred_check_branch
        %449 = sbr.rel (%p446) target = $region56
      $region55: #{tpu_custom_call.1} parent=5 // pred_region
        %s450 = ssub.s32 %s30, 1
        %s451 = sand.u32 %s55, 1
        %s452 = scalar_lea.sflag [#allocation5], %s451
        %s453 = sand.u32 %s55, 1
        %s454 = smul.addr %s453, 24
        %s455 = scalar_lea.vmem [#allocation4], %s454
        // Predicated region
        $region57: #{tpu_custom_call.1} parent=55 // pred_check
          %p456 = pneg %p68
        $region58: #{tpu_custom_call.1} parent=55 // pred_check_branch
          %458 = sbr.rel (%p456) target = $region60
        $region59: #{tpu_custom_call.1} parent=55 // pred_region
          %459 = dma.done %s452, 384
        $region60: #{tpu_custom_call.1} parent=55 // pred_fallthru
          _
        // Predicated region
        $region61: #{tpu_custom_call.1} parent=55 // pred_check
          %p460 = pneg %p89
        $region62: #{tpu_custom_call.1} parent=55 // pred_check_branch
          %462 = sbr.rel (%p460) target = $region64
        $region63: #{tpu_custom_call.1} parent=55 // pred_region
          %463 = dma.done [#allocation9], 48
        $region64: #{tpu_custom_call.1} parent=55 // pred_fallthru
          _
        // Predicated region
        $region65: #{tpu_custom_call.1} parent=55 // pred_check
          %p464 = pneg %p110
        $region66: #{tpu_custom_call.1} parent=55 // pred_check_branch
          %466 = sbr.rel (%p464) target = $region68
        $region67: #{tpu_custom_call.1} parent=55 // pred_region
          %467 = dma.done [#allocation9], 48
        $region68: #{tpu_custom_call.1} parent=55 // pred_fallthru
          _
        %s468 = sand.u32 %s35, 1
        %s469 = scalar_lea.sflag [#allocation12], %s468
        %s470 = sand.u32 %s123, 1
        %s471 = smul.addr %s470, 3
        %s472 = scalar_lea.vmem [#allocation11], %s471
        // Predicated region
        $region69: #{tpu_custom_call.1} parent=55 // pred_check
          %p473 = pneg %p136
        $region70: #{tpu_custom_call.1} parent=55 // pred_check_branch
          %475 = sbr.rel (%p473) target = $region72
        $region71: #{tpu_custom_call.1} parent=55 // pred_region
          %476 = dma.done %s469, 48
        $region72: #{tpu_custom_call.1} parent=55 // pred_fallthru
          _
        %s477 = sand.u32 %s35, 1
        %s478 = scalar_lea.sflag [#allocation12], %s477
        %s479 = sand.u32 %s149, 1
        %s480 = smul.addr %s479, 3
        %s481 = scalar_lea.vmem [#allocation13], %s480
        // Predicated region
        $region73: #{tpu_custom_call.1} parent=55 // pred_check
          %p482 = pneg %p162
        $region74: #{tpu_custom_call.1} parent=55 // pred_check_branch
          %484 = sbr.rel (%p482) target = $region76
        $region75: #{tpu_custom_call.1} parent=55 // pred_region
          %485 = dma.done %s478, 48
        $region76: #{tpu_custom_call.1} parent=55 // pred_fallthru
          _
        %s486 = sand.u32 %s35, 1
        %s487 = scalar_lea.sflag [#allocation15], %s486
        %s488 = sand.u32 %s175, 1
        %s489 = smul.addr %s488, 2688
        %s490 = scalar_lea.vmem [#allocation14], %s489
        // Predicated region
        $region77: #{tpu_custom_call.1} parent=55 // pred_check
          %p491 = pneg %p188
        $region78: #{tpu_custom_call.1} parent=55 // pred_check_branch
          %493 = sbr.rel (%p491) target = $region80
        $region79: #{tpu_custom_call.1} parent=55 // pred_region
          %494 = dma.done %s487, 43008
        $region80: #{tpu_custom_call.1} parent=55 // pred_fallthru
          _
        %s495 = sand.u32 %s35, 1
        %s496 = scalar_lea.sflag [#allocation15], %s495
        %s497 = sand.u32 %s201, 1
        %s498 = smul.addr %s497, 1152
        %s499 = scalar_lea.vmem [#allocation16], %s498
        // Predicated region
        $region81: #{tpu_custom_call.1} parent=55 // pred_check
          %p500 = pneg %p214
        $region82: #{tpu_custom_call.1} parent=55 // pred_check_branch
          %502 = sbr.rel (%p500) target = $region84
        $region83: #{tpu_custom_call.1} parent=55 // pred_region
          %503 = dma.done %s496, 18432
        $region84: #{tpu_custom_call.1} parent=55 // pred_fallthru
          _
        // Predicated region
        $region85: #{tpu_custom_call.1} parent=55 // pred_check
          %p504 = pneg %p235
        $region86: #{tpu_custom_call.1} parent=55 // pred_check_branch
          %506 = sbr.rel (%p504) target = $region88
        $region87: #{tpu_custom_call.1} parent=55 // pred_region
          %507 = dma.done [#allocation7], 16
        $region88: #{tpu_custom_call.1} parent=55 // pred_fallthru
          _
        // Predicated region
        $region89: #{tpu_custom_call.1} parent=55 // pred_check
          %p508 = pneg %p256
        $region90: #{tpu_custom_call.1} parent=55 // pred_check_branch
          %510 = sbr.rel (%p508) target = $region92
        $region91: #{tpu_custom_call.1} parent=55 // pred_region
          %511 = dma.done [#allocation19], 3072
        $region92: #{tpu_custom_call.1} parent=55 // pred_fallthru
          _
        %512 = sfence
        %s513 = sand.u32 %s55, 1
        %s514 = scalar_lea.sflag [#allocation5], %s513
        %s515 = sand.u32 %s55, 1
        %s516 = smul.addr %s515, 24
        %s517 = scalar_lea.vmem [#allocation4], %s516
        %p518 = pneg %p68
        %p519 = pneg %p65
        %p520 = pneg %p89
        %p521 = pneg %p86
        %p522 = pneg %p110
        %p523 = pneg %p107
        %s524 = sand.u32 %s35, 1
        %s525 = scalar_lea.sflag [#allocation12], %s524
        %s526 = sand.u32 %s123, 1
        %s527 = smul.addr %s526, 3
        %s528 = scalar_lea.vmem [#allocation11], %s527
        %p529 = pneg %p136
        %p530 = pneg %p133
        %s531 = sand.u32 %s35, 1
        %s532 = scalar_lea.sflag [#allocation12], %s531
        %s533 = sand.u32 %s149, 1
        %s534 = smul.addr %s533, 3
        %s535 = scalar_lea.vmem [#allocation13], %s534
        %p536 = pneg %p162
        %p537 = pneg %p159
        %s538 = sand.u32 %s35, 1
        %s539 = scalar_lea.sflag [#allocation15], %s538
        %s540 = sand.u32 %s175, 1
        %s541 = smul.addr %s540, 2688
        %s542 = scalar_lea.vmem [#allocation14], %s541
        %p543 = pneg %p188
        %p544 = pneg %p185
        %s545 = sand.u32 %s35, 1
        %s546 = scalar_lea.sflag [#allocation15], %s545
        %s547 = sand.u32 %s201, 1
        %s548 = smul.addr %s547, 1152
        %s549 = scalar_lea.vmem [#allocation16], %s548
        %p550 = pneg %p214
        %p551 = pneg %p211
        %p552 = pneg %p235
        %p553 = pneg %p232
        %p554 = pneg %p256
        %p555 = pneg %p253
        %p556 = pneg %p282
        %p557 = pneg %p279
        %s558 = sand.u32 %s269, 1
        %s559 = scalar_lea.sflag [#allocation6], %s558
        %s560 = sand.u32 %s269, 1
        %s561 = smul.addr %s560, 8
        %s562 = scalar_lea.vmem [#allocation20], %s561
        %p564 = scmp.eq.s32.totalorder %s40, 0
        // Predicated region
        $region93: #{tpu_custom_call.1} parent=55 // pred_check
          %p565 = pneg %p564
        $region94: #{tpu_custom_call.1} parent=55 // pred_check_branch
          %567 = sbr.rel (%p565) target = $region96
        $region95: #{tpu_custom_call.1} parent=55 // pred_region
          %v568 = vld [vmem:[%s455] sm:$0xff]
          %v569 = vld [vmem:[%s455 + $0x8] sm:$0xff]
          %v570 = vld [vmem:[%s455 + $0x10] sm:$0xff]
          %v571 = vld [vmem:[#allocation8] sm:$0x7]
          %v572 = vld [vmem:[#allocation10] sm:$0x7]
          %v573 = vadd.f32 %v568, %v569
          %v574 = vadd.f32 %v573, %v570
          %575 = vadd.xlane.f32.xlu0 %v574
          %v576 = vpop.xlane.xlu0 %575
          %v577 = vrcp.pop 384.0
          %v578 = vmul.f32 %v576, %v577
          %v579 = vsub.f32 %v568, %v578
          %v580 = vsub.f32 %v569, %v578
          %v581 = vsub.f32 %v570, %v578
          %v582 = vmul.f32 %v579, %v579
          %v583 = vmul.f32 %v580, %v580
          %v584 = vmul.f32 %v581, %v581
          %v585 = vadd.f32 %v582, %v583
          %v586 = vadd.f32 %v585, %v584
          %587 = vadd.xlane.f32.xlu0 %v586
          %v588 = vpop.xlane.xlu0 %587
          %v589 = vmul.f32 %v588, %v577
          %v590 = vadd.f32 %v589, 1e-05
          %v591 = vrsqrt.pop %v590
          %v592 = vmul.f32 %v579, %v591
          %v593 = vmul.f32 %v580, %v591
          %v594 = vmul.f32 %v581, %v591
          %v596 = vlaneseq
          %v597 = vshrl.u32 %v596, 7
          %v598 = vsub.s32 0, %v597
          %v599 = vrot.slane %v571, %v598
          %v600 = vlaneseq
          %v601 = vshrl.u32 %v600, 7
          %v602 = vsub.s32 1, %v601
          %v603 = vrot.slane %v571, %v602
          %v604 = vlaneseq
          %v605 = vshrl.u32 %v604, 7
          %v606 = vsub.s32 2, %v605
          %v607 = vrot.slane %v571, %v606
          %v611 = vmul.f32 %v592, %v599
          %v612 = vmul.f32 %v593, %v603
          %v613 = vmul.f32 %v594, %v607
          %v615 = vlaneseq
          %v616 = vshrl.u32 %v615, 7
          %v617 = vsub.s32 0, %v616
          %v618 = vrot.slane %v572, %v617
          %v619 = vlaneseq
          %v620 = vshrl.u32 %v619, 7
          %v621 = vsub.s32 1, %v620
          %v622 = vrot.slane %v572, %v621
          %v623 = vlaneseq
          %v624 = vshrl.u32 %v623, 7
          %v625 = vsub.s32 2, %v624
          %v626 = vrot.slane %v572, %v625
          %v630 = vadd.f32 %v611, %v618
          %v631 = vadd.f32 %v612, %v622
          %v632 = vadd.f32 %v613, %v626
          %633 = vst [vmem:[#allocation2] sm:$0xff] %v630
          %634 = vst [vmem:[#allocation2 + $0x8] sm:$0xff] %v631
          %635 = vst [vmem:[#allocation2 + $0x10] sm:$0xff] %v632
          %v636 = vlaneseq
          %v637 = vshrl.u32 %v636, 7
          %v638 = vlaneseq
          %v639 = vand.u32 %v638, 127
          %v640 = vsub.s32 %v639, %v637
          %v641 = vcvt.s32.f32 %v640
          %vm642 = vcmask 64512
          %643 = vst.msk [vmem:[#allocation3] sm:$0xff] %vm642, %v641
        $region96: #{tpu_custom_call.1} parent=55 // pred_fallthru
          _
        %v644 = vld [vmem:[#allocation2] sm:$0xff]
        %v645 = vld [vmem:[#allocation2 + $0x8] sm:$0xff]
        %v646 = vld [vmem:[#allocation2 + $0x10] sm:$0xff]
        %v647 = vld [vmem:[%s472] sm:$0x7]
        %v648 = vld [vmem:[%s481] sm:$0x7]
        %v649 = vadd.f32 %v644, %v645
        %v650 = vadd.f32 %v649, %v646
        %651 = vadd.xlane.f32.xlu0 %v650
        %v652 = vpop.xlane.xlu0 %651
        %v653 = vrcp.pop 384.0
        %v654 = vmul.f32 %v652, %v653
        %v655 = vsub.f32 %v644, %v654
        %v656 = vsub.f32 %v645, %v654
        %v657 = vsub.f32 %v646, %v654
        %v658 = vmul.f32 %v655, %v655
        %v659 = vmul.f32 %v656, %v656
        %v660 = vmul.f32 %v657, %v657
        %v661 = vadd.f32 %v658, %v659
        %v662 = vadd.f32 %v661, %v660
        %663 = vadd.xlane.f32.xlu0 %v662
        %v664 = vpop.xlane.xlu0 %663
        %v665 = vmul.f32 %v664, %v653
        %v666 = vadd.f32 %v665, 1e-05
        %v667 = vrsqrt.pop %v666
        %v668 = vmul.f32 %v655, %v667
        %v669 = vmul.f32 %v656, %v667
        %v670 = vmul.f32 %v657, %v667
        %v672 = vlaneseq
        %v673 = vshrl.u32 %v672, 7
        %v674 = vsub.s32 0, %v673
        %v675 = vrot.slane %v647, %v674
        %v676 = vlaneseq
        %v677 = vshrl.u32 %v676, 7
        %v678 = vsub.s32 1, %v677
        %v679 = vrot.slane %v647, %v678
        %v680 = vlaneseq
        %v681 = vshrl.u32 %v680, 7
        %v682 = vsub.s32 2, %v681
        %v683 = vrot.slane %v647, %v682
        %v687 = vmul.f32 %v668, %v675
        %v688 = vmul.f32 %v669, %v679
        %v689 = vmul.f32 %v670, %v683
        %v691 = vlaneseq
        %v692 = vshrl.u32 %v691, 7
        %v693 = vsub.s32 0, %v692
        %v694 = vrot.slane %v648, %v693
        %v695 = vlaneseq
        %v696 = vshrl.u32 %v695, 7
        %v697 = vsub.s32 1, %v696
        %v698 = vrot.slane %v648, %v697
        %v699 = vlaneseq
        %v700 = vshrl.u32 %v699, 7
        %v701 = vsub.s32 2, %v700
        %v702 = vrot.slane %v648, %v701
        %v706 = vadd.f32 %v687, %v694
        %v707 = vadd.f32 %v688, %v698
        %v708 = vadd.f32 %v689, %v702
        %v709 = vld [vmem:[%s490] sm:$0xff]
        %v710 = vld [vmem:[%s490 + $0x8] sm:$0xff]
        %v711 = vld [vmem:[%s490 + $0x10] sm:$0xff]
        %v712 = vld [vmem:[%s490 + $0x18] sm:$0xff]
        %v713 = vld [vmem:[%s490 + $0x20] sm:$0xff]
        %v714 = vld [vmem:[%s490 + $0x28] sm:$0xff]
        %v715 = vld [vmem:[%s490 + $0x30] sm:$0xff]
        %v716 = vld [vmem:[%s490 + $0x38] sm:$0xff]
        %v717 = vld [vmem:[%s490 + $0x40] sm:$0xff]
        %v718 = vld [vmem:[%s490 + $0x48] sm:$0xff]
        %v719 = vld [vmem:[%s490 + $0x50] sm:$0xff]
        %v720 = vld [vmem:[%s490 + $0x58] sm:$0xff]
        %v721 = vld [vmem:[%s490 + $0x60] sm:$0xff]
        %v722 = vld [vmem:[%s490 + $0x68] sm:$0xff]
        %v723 = vld [vmem:[%s490 + $0x70] sm:$0xff]
        %v724 = vld [vmem:[%s490 + $0x78] sm:$0xff]
        %v725 = vld [vmem:[%s490 + $0x80] sm:$0xff]
        %v726 = vld [vmem:[%s490 + $0x88] sm:$0xff]
        %v727 = vld [vmem:[%s490 + $0x90] sm:$0xff]
        %v728 = vld [vmem:[%s490 + $0x98] sm:$0xff]
        %v729 = vld [vmem:[%s490 + $0xa0] sm:$0xff]
        %v730 = vld [vmem:[%s490 + $0xa8] sm:$0xff]
        %v731 = vld [vmem:[%s490 + $0xb0] sm:$0xff]
        %v732 = vld [vmem:[%s490 + $0xb8] sm:$0xff]
        %v733 = vld [vmem:[%s490 + $0xc0] sm:$0xff]
        %v734 = vld [vmem:[%s490 + $0xc8] sm:$0xff]
        %v735 = vld [vmem:[%s490 + $0xd0] sm:$0xff]
        %v736 = vld [vmem:[%s490 + $0xd8] sm:$0xff]
        %v737 = vld [vmem:[%s490 + $0xe0] sm:$0xff]
        %v738 = vld [vmem:[%s490 + $0xe8] sm:$0xff]
        %v739 = vld [vmem:[%s490 + $0xf0] sm:$0xff]
        %v740 = vld [vmem:[%s490 + $0xf8] sm:$0xff]
        %v741 = vld [vmem:[%s490 + $0x100] sm:$0xff]
        %v742 = vld [vmem:[%s490 + $0x108] sm:$0xff]
        %v743 = vld [vmem:[%s490 + $0x110] sm:$0xff]
        %v744 = vld [vmem:[%s490 + $0x118] sm:$0xff]
        %v745 = vld [vmem:[%s490 + $0x120] sm:$0xff]
        %v746 = vld [vmem:[%s490 + $0x128] sm:$0xff]
        %v747 = vld [vmem:[%s490 + $0x130] sm:$0xff]
        %v748 = vld [vmem:[%s490 + $0x138] sm:$0xff]
        %v749 = vld [vmem:[%s490 + $0x140] sm:$0xff]
        %v750 = vld [vmem:[%s490 + $0x148] sm:$0xff]
        %v751 = vld [vmem:[%s490 + $0x150] sm:$0xff]
        %v752 = vld [vmem:[%s490 + $0x158] sm:$0xff]
        %v753 = vld [vmem:[%s490 + $0x160] sm:$0xff]
        %v754 = vld [vmem:[%s490 + $0x168] sm:$0xff]
        %v755 = vld [vmem:[%s490 + $0x170] sm:$0xff]
        %v756 = vld [vmem:[%s490 + $0x178] sm:$0xff]
        %v757 = vld [vmem:[%s490 + $0x180] sm:$0xff]
        %v758 = vld [vmem:[%s490 + $0x188] sm:$0xff]
        %v759 = vld [vmem:[%s490 + $0x190] sm:$0xff]
        %v760 = vld [vmem:[%s490 + $0x198] sm:$0xff]
        %v761 = vld [vmem:[%s490 + $0x1a0] sm:$0xff]
        %v762 = vld [vmem:[%s490 + $0x1a8] sm:$0xff]
        %v763 = vld [vmem:[%s490 + $0x1b0] sm:$0xff]
        %v764 = vld [vmem:[%s490 + $0x1b8] sm:$0xff]
        %v765 = vld [vmem:[%s490 + $0x1c0] sm:$0xff]
        %v766 = vld [vmem:[%s490 + $0x1c8] sm:$0xff]
        %v767 = vld [vmem:[%s490 + $0x1d0] sm:$0xff]
        %v768 = vld [vmem:[%s490 + $0x1d8] sm:$0xff]
        %v769 = vld [vmem:[%s490 + $0x1e0] sm:$0xff]
        %v770 = vld [vmem:[%s490 + $0x1e8] sm:$0xff]
        %v771 = vld [vmem:[%s490 + $0x1f0] sm:$0xff]
        %v772 = vld [vmem:[%s490 + $0x1f8] sm:$0xff]
        %v773 = vld [vmem:[%s490 + $0x200] sm:$0xff]
        %v774 = vld [vmem:[%s490 + $0x208] sm:$0xff]
        %v775 = vld [vmem:[%s490 + $0x210] sm:$0xff]
        %v776 = vld [vmem:[%s490 + $0x218] sm:$0xff]
        %v777 = vld [vmem:[%s490 + $0x220] sm:$0xff]
        %v778 = vld [vmem:[%s490 + $0x228] sm:$0xff]
        %v779 = vld [vmem:[%s490 + $0x230] sm:$0xff]
        %v780 = vld [vmem:[%s490 + $0x238] sm:$0xff]
        %v781 = vld [vmem:[%s490 + $0x240] sm:$0xff]
        %v782 = vld [vmem:[%s490 + $0x248] sm:$0xff]
        %v783 = vld [vmem:[%s490 + $0x250] sm:$0xff]
        %v784 = vld [vmem:[%s490 + $0x258] sm:$0xff]
        %v785 = vld [vmem:[%s490 + $0x260] sm:$0xff]
        %v786 = vld [vmem:[%s490 + $0x268] sm:$0xff]
        %v787 = vld [vmem:[%s490 + $0x270] sm:$0xff]
        %v788 = vld [vmem:[%s490 + $0x278] sm:$0xff]
        %v789 = vld [vmem:[%s490 + $0x280] sm:$0xff]
        %v790 = vld [vmem:[%s490 + $0x288] sm:$0xff]
        %v791 = vld [vmem:[%s490 + $0x290] sm:$0xff]
        %v792 = vld [vmem:[%s490 + $0x298] sm:$0xff]
        %v793 = vld [vmem:[%s490 + $0x2a0] sm:$0xff]
        %v794 = vld [vmem:[%s490 + $0x2a8] sm:$0xff]
        %v795 = vld [vmem:[%s490 + $0x2b0] sm:$0xff]
        %v796 = vld [vmem:[%s490 + $0x2b8] sm:$0xff]
        %v797 = vld [vmem:[%s490 + $0x2c0] sm:$0xff]
        %v798 = vld [vmem:[%s490 + $0x2c8] sm:$0xff]
        %v799 = vld [vmem:[%s490 + $0x2d0] sm:$0xff]
        %v800 = vld [vmem:[%s490 + $0x2d8] sm:$0xff]
        %v801 = vld [vmem:[%s490 + $0x2e0] sm:$0xff]
        %v802 = vld [vmem:[%s490 + $0x2e8] sm:$0xff]
        %v803 = vld [vmem:[%s490 + $0x2f0] sm:$0xff]
        %v804 = vld [vmem:[%s490 + $0x2f8] sm:$0xff]
        %v805 = vld [vmem:[%s490 + $0x300] sm:$0xff]
        %v806 = vld [vmem:[%s490 + $0x308] sm:$0xff]
        %v807 = vld [vmem:[%s490 + $0x310] sm:$0xff]
        %v808 = vld [vmem:[%s490 + $0x318] sm:$0xff]
        %v809 = vld [vmem:[%s490 + $0x320] sm:$0xff]
        %v810 = vld [vmem:[%s490 + $0x328] sm:$0xff]
        %v811 = vld [vmem:[%s490 + $0x330] sm:$0xff]
        %v812 = vld [vmem:[%s490 + $0x338] sm:$0xff]
        %v813 = vld [vmem:[%s490 + $0x340] sm:$0xff]
        %v814 = vld [vmem:[%s490 + $0x348] sm:$0xff]
        %v815 = vld [vmem:[%s490 + $0x350] sm:$0xff]
        %v816 = vld [vmem:[%s490 + $0x358] sm:$0xff]
        %v817 = vld [vmem:[%s490 + $0x360] sm:$0xff]
        %v818 = vld [vmem:[%s490 + $0x368] sm:$0xff]
        %v819 = vld [vmem:[%s490 + $0x370] sm:$0xff]
        %v820 = vld [vmem:[%s490 + $0x378] sm:$0xff]
        %v821 = vld [vmem:[%s490 + $0x380] sm:$0xff]
        %v822 = vld [vmem:[%s490 + $0x388] sm:$0xff]
        %v823 = vld [vmem:[%s490 + $0x390] sm:$0xff]
        %v824 = vld [vmem:[%s490 + $0x398] sm:$0xff]
        %v825 = vld [vmem:[%s490 + $0x3a0] sm:$0xff]
        %v826 = vld [vmem:[%s490 + $0x3a8] sm:$0xff]
        %v827 = vld [vmem:[%s490 + $0x3b0] sm:$0xff]
        %v828 = vld [vmem:[%s490 + $0x3b8] sm:$0xff]
        %v829 = vld [vmem:[%s490 + $0x3c0] sm:$0xff]
        %v830 = vld [vmem:[%s490 + $0x3c8] sm:$0xff]
        %v831 = vld [vmem:[%s490 + $0x3d0] sm:$0xff]
        %v832 = vld [vmem:[%s490 + $0x3d8] sm:$0xff]
        %v833 = vld [vmem:[%s490 + $0x3e0] sm:$0xff]
        %v834 = vld [vmem:[%s490 + $0x3e8] sm:$0xff]
        %v835 = vld [vmem:[%s490 + $0x3f0] sm:$0xff]
        %v836 = vld [vmem:[%s490 + $0x3f8] sm:$0xff]
        %v837 = vld [vmem:[%s490 + $0x400] sm:$0xff]
        %v838 = vld [vmem:[%s490 + $0x408] sm:$0xff]
        %v839 = vld [vmem:[%s490 + $0x410] sm:$0xff]
        %v840 = vld [vmem:[%s490 + $0x418] sm:$0xff]
        %v841 = vld [vmem:[%s490 + $0x420] sm:$0xff]
        %v842 = vld [vmem:[%s490 + $0x428] sm:$0xff]
        %v843 = vld [vmem:[%s490 + $0x430] sm:$0xff]
        %v844 = vld [vmem:[%s490 + $0x438] sm:$0xff]
        %v845 = vld [vmem:[%s490 + $0x440] sm:$0xff]
        %v846 = vld [vmem:[%s490 + $0x448] sm:$0xff]
        %v847 = vld [vmem:[%s490 + $0x450] sm:$0xff]
        %v848 = vld [vmem:[%s490 + $0x458] sm:$0xff]
        %v849 = vld [vmem:[%s490 + $0x460] sm:$0xff]
        %v850 = vld [vmem:[%s490 + $0x468] sm:$0xff]
        %v851 = vld [vmem:[%s490 + $0x470] sm:$0xff]
        %v852 = vld [vmem:[%s490 + $0x478] sm:$0xff]
        %v853 = vld [vmem:[%s490 + $0x480] sm:$0xff]
        %v854 = vld [vmem:[%s490 + $0x488] sm:$0xff]
        %v855 = vld [vmem:[%s490 + $0x490] sm:$0xff]
        %v856 = vld [vmem:[%s490 + $0x498] sm:$0xff]
        %v857 = vld [vmem:[%s490 + $0x4a0] sm:$0xff]
        %v858 = vld [vmem:[%s490 + $0x4a8] sm:$0xff]
        %v859 = vld [vmem:[%s490 + $0x4b0] sm:$0xff]
        %v860 = vld [vmem:[%s490 + $0x4b8] sm:$0xff]
        %v861 = vld [vmem:[%s490 + $0x4c0] sm:$0xff]
        %v862 = vld [vmem:[%s490 + $0x4c8] sm:$0xff]
        %v863 = vld [vmem:[%s490 + $0x4d0] sm:$0xff]
        %v864 = vld [vmem:[%s490 + $0x4d8] sm:$0xff]
        %v865 = vld [vmem:[%s490 + $0x4e0] sm:$0xff]
        %v866 = vld [vmem:[%s490 + $0x4e8] sm:$0xff]
        %v867 = vld [vmem:[%s490 + $0x4f0] sm:$0xff]
        %v868 = vld [vmem:[%s490 + $0x4f8] sm:$0xff]
        %v869 = vld [vmem:[%s490 + $0x500] sm:$0xff]
        %v870 = vld [vmem:[%s490 + $0x508] sm:$0xff]
        %v871 = vld [vmem:[%s490 + $0x510] sm:$0xff]
        %v872 = vld [vmem:[%s490 + $0x518] sm:$0xff]
        %v873 = vld [vmem:[%s490 + $0x520] sm:$0xff]
        %v874 = vld [vmem:[%s490 + $0x528] sm:$0xff]
        %v875 = vld [vmem:[%s490 + $0x530] sm:$0xff]
        %v876 = vld [vmem:[%s490 + $0x538] sm:$0xff]
        %v877 = vld [vmem:[%s490 + $0x540] sm:$0xff]
        %v878 = vld [vmem:[%s490 + $0x548] sm:$0xff]
        %v879 = vld [vmem:[%s490 + $0x550] sm:$0xff]
        %v880 = vld [vmem:[%s490 + $0x558] sm:$0xff]
        %v881 = vld [vmem:[%s490 + $0x560] sm:$0xff]
        %v882 = vld [vmem:[%s490 + $0x568] sm:$0xff]
        %v883 = vld [vmem:[%s490 + $0x570] sm:$0xff]
        %v884 = vld [vmem:[%s490 + $0x578] sm:$0xff]
        %v885 = vld [vmem:[%s490 + $0x580] sm:$0xff]
        %v886 = vld [vmem:[%s490 + $0x588] sm:$0xff]
        %v887 = vld [vmem:[%s490 + $0x590] sm:$0xff]
        %v888 = vld [vmem:[%s490 + $0x598] sm:$0xff]
        %v889 = vld [vmem:[%s490 + $0x5a0] sm:$0xff]
        %v890 = vld [vmem:[%s490 + $0x5a8] sm:$0xff]
        %v891 = vld [vmem:[%s490 + $0x5b0] sm:$0xff]
        %v892 = vld [vmem:[%s490 + $0x5b8] sm:$0xff]
        %v893 = vld [vmem:[%s490 + $0x5c0] sm:$0xff]
        %v894 = vld [vmem:[%s490 + $0x5c8] sm:$0xff]
        %v895 = vld [vmem:[%s490 + $0x5d0] sm:$0xff]
        %v896 = vld [vmem:[%s490 + $0x5d8] sm:$0xff]
        %v897 = vld [vmem:[%s490 + $0x5e0] sm:$0xff]
        %v898 = vld [vmem:[%s490 + $0x5e8] sm:$0xff]
        %v899 = vld [vmem:[%s490 + $0x5f0] sm:$0xff]
        %v900 = vld [vmem:[%s490 + $0x5f8] sm:$0xff]
        %v901 = vld [vmem:[%s490 + $0x600] sm:$0xff]
        %v902 = vld [vmem:[%s490 + $0x608] sm:$0xff]
        %v903 = vld [vmem:[%s490 + $0x610] sm:$0xff]
        %v904 = vld [vmem:[%s490 + $0x618] sm:$0xff]
        %v905 = vld [vmem:[%s490 + $0x620] sm:$0xff]
        %v906 = vld [vmem:[%s490 + $0x628] sm:$0xff]
        %v907 = vld [vmem:[%s490 + $0x630] sm:$0xff]
        %v908 = vld [vmem:[%s490 + $0x638] sm:$0xff]
        %v909 = vld [vmem:[%s490 + $0x640] sm:$0xff]
        %v910 = vld [vmem:[%s490 + $0x648] sm:$0xff]
        %v911 = vld [vmem:[%s490 + $0x650] sm:$0xff]
        %v912 = vld [vmem:[%s490 + $0x658] sm:$0xff]
        %v913 = vld [vmem:[%s490 + $0x660] sm:$0xff]
        %v914 = vld [vmem:[%s490 + $0x668] sm:$0xff]
        %v915 = vld [vmem:[%s490 + $0x670] sm:$0xff]
        %v916 = vld [vmem:[%s490 + $0x678] sm:$0xff]
        %v917 = vld [vmem:[%s490 + $0x680] sm:$0xff]
        %v918 = vld [vmem:[%s490 + $0x688] sm:$0xff]
        %v919 = vld [vmem:[%s490 + $0x690] sm:$0xff]
        %v920 = vld [vmem:[%s490 + $0x698] sm:$0xff]
        %v921 = vld [vmem:[%s490 + $0x6a0] sm:$0xff]
        %v922 = vld [vmem:[%s490 + $0x6a8] sm:$0xff]
        %v923 = vld [vmem:[%s490 + $0x6b0] sm:$0xff]
        %v924 = vld [vmem:[%s490 + $0x6b8] sm:$0xff]
        %v925 = vld [vmem:[%s490 + $0x6c0] sm:$0xff]
        %v926 = vld [vmem:[%s490 + $0x6c8] sm:$0xff]
        %v927 = vld [vmem:[%s490 + $0x6d0] sm:$0xff]
        %v928 = vld [vmem:[%s490 + $0x6d8] sm:$0xff]
        %v929 = vld [vmem:[%s490 + $0x6e0] sm:$0xff]
        %v930 = vld [vmem:[%s490 + $0x6e8] sm:$0xff]
        %v931 = vld [vmem:[%s490 + $0x6f0] sm:$0xff]
        %v932 = vld [vmem:[%s490 + $0x6f8] sm:$0xff]
        %v933 = vld [vmem:[%s490 + $0x700] sm:$0xff]
        %v934 = vld [vmem:[%s490 + $0x708] sm:$0xff]
        %v935 = vld [vmem:[%s490 + $0x710] sm:$0xff]
        %v936 = vld [vmem:[%s490 + $0x718] sm:$0xff]
        %v937 = vld [vmem:[%s490 + $0x720] sm:$0xff]
        %v938 = vld [vmem:[%s490 + $0x728] sm:$0xff]
        %v939 = vld [vmem:[%s490 + $0x730] sm:$0xff]
        %v940 = vld [vmem:[%s490 + $0x738] sm:$0xff]
        %v941 = vld [vmem:[%s490 + $0x740] sm:$0xff]
        %v942 = vld [vmem:[%s490 + $0x748] sm:$0xff]
        %v943 = vld [vmem:[%s490 + $0x750] sm:$0xff]
        %v944 = vld [vmem:[%s490 + $0x758] sm:$0xff]
        %v945 = vld [vmem:[%s490 + $0x760] sm:$0xff]
        %v946 = vld [vmem:[%s490 + $0x768] sm:$0xff]
        %v947 = vld [vmem:[%s490 + $0x770] sm:$0xff]
        %v948 = vld [vmem:[%s490 + $0x778] sm:$0xff]
        %v949 = vld [vmem:[%s490 + $0x780] sm:$0xff]
        %v950 = vld [vmem:[%s490 + $0x788] sm:$0xff]
        %v951 = vld [vmem:[%s490 + $0x790] sm:$0xff]
        %v952 = vld [vmem:[%s490 + $0x798] sm:$0xff]
        %v953 = vld [vmem:[%s490 + $0x7a0] sm:$0xff]
        %v954 = vld [vmem:[%s490 + $0x7a8] sm:$0xff]
        %v955 = vld [vmem:[%s490 + $0x7b0] sm:$0xff]
        %v956 = vld [vmem:[%s490 + $0x7b8] sm:$0xff]
        %v957 = vld [vmem:[%s490 + $0x7c0] sm:$0xff]
        %v958 = vld [vmem:[%s490 + $0x7c8] sm:$0xff]
        %v959 = vld [vmem:[%s490 + $0x7d0] sm:$0xff]
        %v960 = vld [vmem:[%s490 + $0x7d8] sm:$0xff]
        %v961 = vld [vmem:[%s490 + $0x7e0] sm:$0xff]
        %v962 = vld [vmem:[%s490 + $0x7e8] sm:$0xff]
        %v963 = vld [vmem:[%s490 + $0x7f0] sm:$0xff]
        %v964 = vld [vmem:[%s490 + $0x7f8] sm:$0xff]
        %v965 = vld [vmem:[%s490 + $0x800] sm:$0xff]
        %v966 = vld [vmem:[%s490 + $0x808] sm:$0xff]
        %v967 = vld [vmem:[%s490 + $0x810] sm:$0xff]
        %v968 = vld [vmem:[%s490 + $0x818] sm:$0xff]
        %v969 = vld [vmem:[%s490 + $0x820] sm:$0xff]
        %v970 = vld [vmem:[%s490 + $0x828] sm:$0xff]
        %v971 = vld [vmem:[%s490 + $0x830] sm:$0xff]
        %v972 = vld [vmem:[%s490 + $0x838] sm:$0xff]
        %v973 = vld [vmem:[%s490 + $0x840] sm:$0xff]
        %v974 = vld [vmem:[%s490 + $0x848] sm:$0xff]
        %v975 = vld [vmem:[%s490 + $0x850] sm:$0xff]
        %v976 = vld [vmem:[%s490 + $0x858] sm:$0xff]
        %v977 = vld [vmem:[%s490 + $0x860] sm:$0xff]
        %v978 = vld [vmem:[%s490 + $0x868] sm:$0xff]
        %v979 = vld [vmem:[%s490 + $0x870] sm:$0xff]
        %v980 = vld [vmem:[%s490 + $0x878] sm:$0xff]
        %v981 = vld [vmem:[%s490 + $0x880] sm:$0xff]
        %v982 = vld [vmem:[%s490 + $0x888] sm:$0xff]
        %v983 = vld [vmem:[%s490 + $0x890] sm:$0xff]
        %v984 = vld [vmem:[%s490 + $0x898] sm:$0xff]
        %v985 = vld [vmem:[%s490 + $0x8a0] sm:$0xff]
        %v986 = vld [vmem:[%s490 + $0x8a8] sm:$0xff]
        %v987 = vld [vmem:[%s490 + $0x8b0] sm:$0xff]
        %v988 = vld [vmem:[%s490 + $0x8b8] sm:$0xff]
        %v989 = vld [vmem:[%s490 + $0x8c0] sm:$0xff]
        %v990 = vld [vmem:[%s490 + $0x8c8] sm:$0xff]
        %v991 = vld [vmem:[%s490 + $0x8d0] sm:$0xff]
        %v992 = vld [vmem:[%s490 + $0x8d8] sm:$0xff]
        %v993 = vld [vmem:[%s490 + $0x8e0] sm:$0xff]
        %v994 = vld [vmem:[%s490 + $0x8e8] sm:$0xff]
        %v995 = vld [vmem:[%s490 + $0x8f0] sm:$0xff]
        %v996 = vld [vmem:[%s490 + $0x8f8] sm:$0xff]
        %v997 = vld [vmem:[%s490 + $0x900] sm:$0xff]
        %v998 = vld [vmem:[%s490 + $0x908] sm:$0xff]
        %v999 = vld [vmem:[%s490 + $0x910] sm:$0xff]
        %v1000 = vld [vmem:[%s490 + $0x918] sm:$0xff]
        %v1001 = vld [vmem:[%s490 + $0x920] sm:$0xff]
        %v1002 = vld [vmem:[%s490 + $0x928] sm:$0xff]
        %v1003 = vld [vmem:[%s490 + $0x930] sm:$0xff]
        %v1004 = vld [vmem:[%s490 + $0x938] sm:$0xff]
        %v1005 = vld [vmem:[%s490 + $0x940] sm:$0xff]
        %v1006 = vld [vmem:[%s490 + $0x948] sm:$0xff]
        %v1007 = vld [vmem:[%s490 + $0x950] sm:$0xff]
        %v1008 = vld [vmem:[%s490 + $0x958] sm:$0xff]
        %v1009 = vld [vmem:[%s490 + $0x960] sm:$0xff]
        %v1010 = vld [vmem:[%s490 + $0x968] sm:$0xff]
        %v1011 = vld [vmem:[%s490 + $0x970] sm:$0xff]
        %v1012 = vld [vmem:[%s490 + $0x978] sm:$0xff]
        %v1013 = vld [vmem:[%s490 + $0x980] sm:$0xff]
        %v1014 = vld [vmem:[%s490 + $0x988] sm:$0xff]
        %v1015 = vld [vmem:[%s490 + $0x990] sm:$0xff]
        %v1016 = vld [vmem:[%s490 + $0x998] sm:$0xff]
        %v1017 = vld [vmem:[%s490 + $0x9a0] sm:$0xff]
        %v1018 = vld [vmem:[%s490 + $0x9a8] sm:$0xff]
        %v1019 = vld [vmem:[%s490 + $0x9b0] sm:$0xff]
        %v1020 = vld [vmem:[%s490 + $0x9b8] sm:$0xff]
        %v1021 = vld [vmem:[%s490 + $0x9c0] sm:$0xff]
        %v1022 = vld [vmem:[%s490 + $0x9c8] sm:$0xff]
        %v1023 = vld [vmem:[%s490 + $0x9d0] sm:$0xff]
        %v1024 = vld [vmem:[%s490 + $0x9d8] sm:$0xff]
        %v1025 = vld [vmem:[%s490 + $0x9e0] sm:$0xff]
        %v1026 = vld [vmem:[%s490 + $0x9e8] sm:$0xff]
        %v1027 = vld [vmem:[%s490 + $0x9f0] sm:$0xff]
        %v1028 = vld [vmem:[%s490 + $0x9f8] sm:$0xff]
        %v1029 = vld [vmem:[%s490 + $0xa00] sm:$0xff]
        %v1030 = vld [vmem:[%s490 + $0xa08] sm:$0xff]
        %v1031 = vld [vmem:[%s490 + $0xa10] sm:$0xff]
        %v1032 = vld [vmem:[%s490 + $0xa18] sm:$0xff]
        %v1033 = vld [vmem:[%s490 + $0xa20] sm:$0xff]
        %v1034 = vld [vmem:[%s490 + $0xa28] sm:$0xff]
        %v1035 = vld [vmem:[%s490 + $0xa30] sm:$0xff]
        %v1036 = vld [vmem:[%s490 + $0xa38] sm:$0xff]
        %v1037 = vld [vmem:[%s490 + $0xa40] sm:$0xff]
        %v1038 = vld [vmem:[%s490 + $0xa48] sm:$0xff]
        %v1039 = vld [vmem:[%s490 + $0xa50] sm:$0xff]
        %v1040 = vld [vmem:[%s490 + $0xa58] sm:$0xff]
        %v1041 = vld [vmem:[%s490 + $0xa60] sm:$0xff]
        %v1042 = vld [vmem:[%s490 + $0xa68] sm:$0xff]
        %v1043 = vld [vmem:[%s490 + $0xa70] sm:$0xff]
        %v1044 = vld [vmem:[%s490 + $0xa78] sm:$0xff]
        %v1045 = vpack.c.bf16 %v706, %v706
        %v1046 = vpack.c.bf16 %v707, %v707
        %v1047 = vpack.c.bf16 %v708, %v708
        %v1384 = vunpack.c.l.b16 %v709
        %v1385 = vunpack.c.h.b16 %v709
        %v1386 = vunpack.c.l.b16 %v710
        %v1387 = vunpack.c.h.b16 %v710
        %v1388 = vunpack.c.l.b16 %v711
        %v1389 = vunpack.c.h.b16 %v711
        %v1390 = vunpack.c.l.b16 %v712
        %v1391 = vunpack.c.h.b16 %v712
        %v1392 = vunpack.c.l.b16 %v713
        %v1393 = vunpack.c.h.b16 %v713
        %v1394 = vunpack.c.l.b16 %v714
        %v1395 = vunpack.c.h.b16 %v714
        %v1396 = vunpack.c.l.b16 %v715
        %v1397 = vunpack.c.h.b16 %v715
        %v1398 = vunpack.c.l.b16 %v716
        %v1399 = vunpack.c.h.b16 %v716
        %v1400 = vunpack.c.l.b16 %v717
        %v1401 = vunpack.c.h.b16 %v717
        %v1402 = vunpack.c.l.b16 %v718
        %v1403 = vunpack.c.h.b16 %v718
        %v1404 = vunpack.c.l.b16 %v719
        %v1405 = vunpack.c.h.b16 %v719
        %v1406 = vunpack.c.l.b16 %v720
        %v1407 = vunpack.c.h.b16 %v720
        %v1408 = vunpack.c.l.b16 %v721
        %v1409 = vunpack.c.h.b16 %v721
        %v1410 = vunpack.c.l.b16 %v722
        %v1411 = vunpack.c.h.b16 %v722
        %v1412 = vunpack.c.l.b16 %v723
        %v1413 = vunpack.c.h.b16 %v723
        %v1414 = vunpack.c.l.b16 %v724
        %v1415 = vunpack.c.h.b16 %v724
        %v1416 = vunpack.c.l.b16 %v725
        %v1417 = vunpack.c.h.b16 %v725
        %v1418 = vunpack.c.l.b16 %v726
        %v1419 = vunpack.c.h.b16 %v726
        %v1420 = vunpack.c.l.b16 %v727
        %v1421 = vunpack.c.h.b16 %v727
        %v1422 = vunpack.c.l.b16 %v728
        %v1423 = vunpack.c.h.b16 %v728
        %v1424 = vunpack.c.l.b16 %v729
        %v1425 = vunpack.c.h.b16 %v729
        %v1426 = vunpack.c.l.b16 %v730
        %v1427 = vunpack.c.h.b16 %v730
        %v1428 = vunpack.c.l.b16 %v731
        %v1429 = vunpack.c.h.b16 %v731
        %v1430 = vunpack.c.l.b16 %v732
        %v1431 = vunpack.c.h.b16 %v732
        %v1432 = vunpack.c.l.b16 %v733
        %v1433 = vunpack.c.h.b16 %v733
        %v1434 = vunpack.c.l.b16 %v734
        %v1435 = vunpack.c.h.b16 %v734
        %v1436 = vunpack.c.l.b16 %v735
        %v1437 = vunpack.c.h.b16 %v735
        %v1438 = vunpack.c.l.b16 %v736
        %v1439 = vunpack.c.h.b16 %v736
        %v1440 = vunpack.c.l.b16 %v737
        %v1441 = vunpack.c.h.b16 %v737
        %v1442 = vunpack.c.l.b16 %v738
        %v1443 = vunpack.c.h.b16 %v738
        %v1444 = vunpack.c.l.b16 %v739
        %v1445 = vunpack.c.h.b16 %v739
        %v1446 = vunpack.c.l.b16 %v740
        %v1447 = vunpack.c.h.b16 %v740
        %v1448 = vunpack.c.l.b16 %v741
        %v1449 = vunpack.c.h.b16 %v741
        %v1450 = vunpack.c.l.b16 %v742
        %v1451 = vunpack.c.h.b16 %v742
        %v1452 = vunpack.c.l.b16 %v743
        %v1453 = vunpack.c.h.b16 %v743
        %v1454 = vunpack.c.l.b16 %v744
        %v1455 = vunpack.c.h.b16 %v744
        %v1456 = vunpack.c.l.b16 %v745
        %v1457 = vunpack.c.h.b16 %v745
        %v1458 = vunpack.c.l.b16 %v746
        %v1459 = vunpack.c.h.b16 %v746
        %v1460 = vunpack.c.l.b16 %v747
        %v1461 = vunpack.c.h.b16 %v747
        %v1462 = vunpack.c.l.b16 %v748
        %v1463 = vunpack.c.h.b16 %v748
        %v1464 = vunpack.c.l.b16 %v749
        %v1465 = vunpack.c.h.b16 %v749
        %v1466 = vunpack.c.l.b16 %v750
        %v1467 = vunpack.c.h.b16 %v750
        %v1468 = vunpack.c.l.b16 %v751
        %v1469 = vunpack.c.h.b16 %v751
        %v1470 = vunpack.c.l.b16 %v752
        %v1471 = vunpack.c.h.b16 %v752
        %v1472 = vunpack.c.l.b16 %v753
        %v1473 = vunpack.c.h.b16 %v753
        %v1474 = vunpack.c.l.b16 %v754
        %v1475 = vunpack.c.h.b16 %v754
        %v1476 = vunpack.c.l.b16 %v755
        %v1477 = vunpack.c.h.b16 %v755
        %v1478 = vunpack.c.l.b16 %v756
        %v1479 = vunpack.c.h.b16 %v756
        %v1480 = vunpack.c.l.b16 %v757
        %v1481 = vunpack.c.h.b16 %v757
        %v1482 = vunpack.c.l.b16 %v758
        %v1483 = vunpack.c.h.b16 %v758
        %v1484 = vunpack.c.l.b16 %v759
        %v1485 = vunpack.c.h.b16 %v759
        %v1486 = vunpack.c.l.b16 %v760
        %v1487 = vunpack.c.h.b16 %v760
        %v1488 = vunpack.c.l.b16 %v761
        %v1489 = vunpack.c.h.b16 %v761
        %v1490 = vunpack.c.l.b16 %v762
        %v1491 = vunpack.c.h.b16 %v762
        %v1492 = vunpack.c.l.b16 %v763
        %v1493 = vunpack.c.h.b16 %v763
        %v1494 = vunpack.c.l.b16 %v764
        %v1495 = vunpack.c.h.b16 %v764
        %v1496 = vunpack.c.l.b16 %v765
        %v1497 = vunpack.c.h.b16 %v765
        %v1498 = vunpack.c.l.b16 %v766
        %v1499 = vunpack.c.h.b16 %v766
        %v1500 = vunpack.c.l.b16 %v767
        %v1501 = vunpack.c.h.b16 %v767
        %v1502 = vunpack.c.l.b16 %v768
        %v1503 = vunpack.c.h.b16 %v768
        %v1504 = vunpack.c.l.b16 %v769
        %v1505 = vunpack.c.h.b16 %v769
        %v1506 = vunpack.c.l.b16 %v770
        %v1507 = vunpack.c.h.b16 %v770
        %v1508 = vunpack.c.l.b16 %v771
        %v1509 = vunpack.c.h.b16 %v771
        %v1510 = vunpack.c.l.b16 %v772
        %v1511 = vunpack.c.h.b16 %v772
        %v1512 = vunpack.c.l.b16 %v773
        %v1513 = vunpack.c.h.b16 %v773
        %v1514 = vunpack.c.l.b16 %v774
        %v1515 = vunpack.c.h.b16 %v774
        %v1516 = vunpack.c.l.b16 %v775
        %v1517 = vunpack.c.h.b16 %v775
        %v1518 = vunpack.c.l.b16 %v776
        %v1519 = vunpack.c.h.b16 %v776
        %v1520 = vunpack.c.l.b16 %v777
        %v1521 = vunpack.c.h.b16 %v777
        %v1522 = vunpack.c.l.b16 %v778
        %v1523 = vunpack.c.h.b16 %v778
        %v1524 = vunpack.c.l.b16 %v779
        %v1525 = vunpack.c.h.b16 %v779
        %v1526 = vunpack.c.l.b16 %v780
        %v1527 = vunpack.c.h.b16 %v780
        %v1528 = vunpack.c.l.b16 %v781
        %v1529 = vunpack.c.h.b16 %v781
        %v1530 = vunpack.c.l.b16 %v782
        %v1531 = vunpack.c.h.b16 %v782
        %v1532 = vunpack.c.l.b16 %v783
        %v1533 = vunpack.c.h.b16 %v783
        %v1534 = vunpack.c.l.b16 %v784
        %v1535 = vunpack.c.h.b16 %v784
        %v1536 = vunpack.c.l.b16 %v785
        %v1537 = vunpack.c.h.b16 %v785
        %v1538 = vunpack.c.l.b16 %v786
        %v1539 = vunpack.c.h.b16 %v786
        %v1540 = vunpack.c.l.b16 %v787
        %v1541 = vunpack.c.h.b16 %v787
        %v1542 = vunpack.c.l.b16 %v788
        %v1543 = vunpack.c.h.b16 %v788
        %v1544 = vunpack.c.l.b16 %v789
        %v1545 = vunpack.c.h.b16 %v789
        %v1546 = vunpack.c.l.b16 %v790
        %v1547 = vunpack.c.h.b16 %v790
        %v1548 = vunpack.c.l.b16 %v791
        %v1549 = vunpack.c.h.b16 %v791
        %v1550 = vunpack.c.l.b16 %v792
        %v1551 = vunpack.c.h.b16 %v792
        %v1552 = vunpack.c.l.b16 %v793
        %v1553 = vunpack.c.h.b16 %v793
        %v1554 = vunpack.c.l.b16 %v794
        %v1555 = vunpack.c.h.b16 %v794
        %v1556 = vunpack.c.l.b16 %v795
        %v1557 = vunpack.c.h.b16 %v795
        %v1558 = vunpack.c.l.b16 %v796
        %v1559 = vunpack.c.h.b16 %v796
        %v1560 = vunpack.c.l.b16 %v797
        %v1561 = vunpack.c.h.b16 %v797
        %v1562 = vunpack.c.l.b16 %v798
        %v1563 = vunpack.c.h.b16 %v798
        %v1564 = vunpack.c.l.b16 %v799
        %v1565 = vunpack.c.h.b16 %v799
        %v1566 = vunpack.c.l.b16 %v800
        %v1567 = vunpack.c.h.b16 %v800
        %v1568 = vunpack.c.l.b16 %v801
        %v1569 = vunpack.c.h.b16 %v801
        %v1570 = vunpack.c.l.b16 %v802
        %v1571 = vunpack.c.h.b16 %v802
        %v1572 = vunpack.c.l.b16 %v803
        %v1573 = vunpack.c.h.b16 %v803
        %v1574 = vunpack.c.l.b16 %v804
        %v1575 = vunpack.c.h.b16 %v804
        %v1576 = vunpack.c.l.b16 %v805
        %v1577 = vunpack.c.h.b16 %v805
        %v1578 = vunpack.c.l.b16 %v806
        %v1579 = vunpack.c.h.b16 %v806
        %v1580 = vunpack.c.l.b16 %v807
        %v1581 = vunpack.c.h.b16 %v807
        %v1582 = vunpack.c.l.b16 %v808
        %v1583 = vunpack.c.h.b16 %v808
        %v1584 = vunpack.c.l.b16 %v809
        %v1585 = vunpack.c.h.b16 %v809
        %v1586 = vunpack.c.l.b16 %v810
        %v1587 = vunpack.c.h.b16 %v810
        %v1588 = vunpack.c.l.b16 %v811
        %v1589 = vunpack.c.h.b16 %v811
        %v1590 = vunpack.c.l.b16 %v812
        %v1591 = vunpack.c.h.b16 %v812
        %v1592 = vunpack.c.l.b16 %v813
        %v1593 = vunpack.c.h.b16 %v813
        %v1594 = vunpack.c.l.b16 %v814
        %v1595 = vunpack.c.h.b16 %v814
        %v1596 = vunpack.c.l.b16 %v815
        %v1597 = vunpack.c.h.b16 %v815
        %v1598 = vunpack.c.l.b16 %v816
        %v1599 = vunpack.c.h.b16 %v816
        %v1600 = vunpack.c.l.b16 %v817
        %v1601 = vunpack.c.h.b16 %v817
        %v1602 = vunpack.c.l.b16 %v818
        %v1603 = vunpack.c.h.b16 %v818
        %v1604 = vunpack.c.l.b16 %v819
        %v1605 = vunpack.c.h.b16 %v819
        %v1606 = vunpack.c.l.b16 %v820
        %v1607 = vunpack.c.h.b16 %v820
        %v1608 = vunpack.c.l.b16 %v821
        %v1609 = vunpack.c.h.b16 %v821
        %v1610 = vunpack.c.l.b16 %v822
        %v1611 = vunpack.c.h.b16 %v822
        %v1612 = vunpack.c.l.b16 %v823
        %v1613 = vunpack.c.h.b16 %v823
        %v1614 = vunpack.c.l.b16 %v824
        %v1615 = vunpack.c.h.b16 %v824
        %v1616 = vunpack.c.l.b16 %v825
        %v1617 = vunpack.c.h.b16 %v825
        %v1618 = vunpack.c.l.b16 %v826
        %v1619 = vunpack.c.h.b16 %v826
        %v1620 = vunpack.c.l.b16 %v827
        %v1621 = vunpack.c.h.b16 %v827
        %v1622 = vunpack.c.l.b16 %v828
        %v1623 = vunpack.c.h.b16 %v828
        %v1624 = vunpack.c.l.b16 %v829
        %v1625 = vunpack.c.h.b16 %v829
        %v1626 = vunpack.c.l.b16 %v830
        %v1627 = vunpack.c.h.b16 %v830
        %v1628 = vunpack.c.l.b16 %v831
        %v1629 = vunpack.c.h.b16 %v831
        %v1630 = vunpack.c.l.b16 %v832
        %v1631 = vunpack.c.h.b16 %v832
        %v1632 = vunpack.c.l.b16 %v833
        %v1633 = vunpack.c.h.b16 %v833
        %v1634 = vunpack.c.l.b16 %v834
        %v1635 = vunpack.c.h.b16 %v834
        %v1636 = vunpack.c.l.b16 %v835
        %v1637 = vunpack.c.h.b16 %v835
        %v1638 = vunpack.c.l.b16 %v836
        %v1639 = vunpack.c.h.b16 %v836
        %v1640 = vunpack.c.l.b16 %v837
        %v1641 = vunpack.c.h.b16 %v837
        %v1642 = vunpack.c.l.b16 %v838
        %v1643 = vunpack.c.h.b16 %v838
        %v1644 = vunpack.c.l.b16 %v839
        %v1645 = vunpack.c.h.b16 %v839
        %v1646 = vunpack.c.l.b16 %v840
        %v1647 = vunpack.c.h.b16 %v840
        %v1648 = vunpack.c.l.b16 %v841
        %v1649 = vunpack.c.h.b16 %v841
        %v1650 = vunpack.c.l.b16 %v842
        %v1651 = vunpack.c.h.b16 %v842
        %v1652 = vunpack.c.l.b16 %v843
        %v1653 = vunpack.c.h.b16 %v843
        %v1654 = vunpack.c.l.b16 %v844
        %v1655 = vunpack.c.h.b16 %v844
        %v1656 = vunpack.c.l.b16 %v845
        %v1657 = vunpack.c.h.b16 %v845
        %v1658 = vunpack.c.l.b16 %v846
        %v1659 = vunpack.c.h.b16 %v846
        %v1660 = vunpack.c.l.b16 %v847
        %v1661 = vunpack.c.h.b16 %v847
        %v1662 = vunpack.c.l.b16 %v848
        %v1663 = vunpack.c.h.b16 %v848
        %v1664 = vunpack.c.l.b16 %v849
        %v1665 = vunpack.c.h.b16 %v849
        %v1666 = vunpack.c.l.b16 %v850
        %v1667 = vunpack.c.h.b16 %v850
        %v1668 = vunpack.c.l.b16 %v851
        %v1669 = vunpack.c.h.b16 %v851
        %v1670 = vunpack.c.l.b16 %v852
        %v1671 = vunpack.c.h.b16 %v852
        %v1672 = vunpack.c.l.b16 %v853
        %v1673 = vunpack.c.h.b16 %v853
        %v1674 = vunpack.c.l.b16 %v854
        %v1675 = vunpack.c.h.b16 %v854
        %v1676 = vunpack.c.l.b16 %v855
        %v1677 = vunpack.c.h.b16 %v855
        %v1678 = vunpack.c.l.b16 %v856
        %v1679 = vunpack.c.h.b16 %v856
        %v1680 = vunpack.c.l.b16 %v857
        %v1681 = vunpack.c.h.b16 %v857
        %v1682 = vunpack.c.l.b16 %v858
        %v1683 = vunpack.c.h.b16 %v858
        %v1684 = vunpack.c.l.b16 %v859
        %v1685 = vunpack.c.h.b16 %v859
        %v1686 = vunpack.c.l.b16 %v860
        %v1687 = vunpack.c.h.b16 %v860
        %v1688 = vunpack.c.l.b16 %v861
        %v1689 = vunpack.c.h.b16 %v861
        %v1690 = vunpack.c.l.b16 %v862
        %v1691 = vunpack.c.h.b16 %v862
        %v1692 = vunpack.c.l.b16 %v863
        %v1693 = vunpack.c.h.b16 %v863
        %v1694 = vunpack.c.l.b16 %v864
        %v1695 = vunpack.c.h.b16 %v864
        %v1696 = vunpack.c.l.b16 %v865
        %v1697 = vunpack.c.h.b16 %v865
        %v1698 = vunpack.c.l.b16 %v866
        %v1699 = vunpack.c.h.b16 %v866
        %v1700 = vunpack.c.l.b16 %v867
        %v1701 = vunpack.c.h.b16 %v867
        %v1702 = vunpack.c.l.b16 %v868
        %v1703 = vunpack.c.h.b16 %v868
        %v1704 = vunpack.c.l.b16 %v869
        %v1705 = vunpack.c.h.b16 %v869
        %v1706 = vunpack.c.l.b16 %v870
        %v1707 = vunpack.c.h.b16 %v870
        %v1708 = vunpack.c.l.b16 %v871
        %v1709 = vunpack.c.h.b16 %v871
        %v1710 = vunpack.c.l.b16 %v872
        %v1711 = vunpack.c.h.b16 %v872
        %v1712 = vunpack.c.l.b16 %v873
        %v1713 = vunpack.c.h.b16 %v873
        %v1714 = vunpack.c.l.b16 %v874
        %v1715 = vunpack.c.h.b16 %v874
        %v1716 = vunpack.c.l.b16 %v875
        %v1717 = vunpack.c.h.b16 %v875
        %v1718 = vunpack.c.l.b16 %v876
        %v1719 = vunpack.c.h.b16 %v876
        %v1720 = vunpack.c.l.b16 %v877
        %v1721 = vunpack.c.h.b16 %v877
        %v1722 = vunpack.c.l.b16 %v878
        %v1723 = vunpack.c.h.b16 %v878
        %v1724 = vunpack.c.l.b16 %v879
        %v1725 = vunpack.c.h.b16 %v879
        %v1726 = vunpack.c.l.b16 %v880
        %v1727 = vunpack.c.h.b16 %v880
        %v1728 = vunpack.c.l.b16 %v881
        %v1729 = vunpack.c.h.b16 %v881
        %v1730 = vunpack.c.l.b16 %v882
        %v1731 = vunpack.c.h.b16 %v882
        %v1732 = vunpack.c.l.b16 %v883
        %v1733 = vunpack.c.h.b16 %v883
        %v1734 = vunpack.c.l.b16 %v884
        %v1735 = vunpack.c.h.b16 %v884
        %v1736 = vunpack.c.l.b16 %v885
        %v1737 = vunpack.c.h.b16 %v885
        %v1738 = vunpack.c.l.b16 %v886
        %v1739 = vunpack.c.h.b16 %v886
        %v1740 = vunpack.c.l.b16 %v887
        %v1741 = vunpack.c.h.b16 %v887
        %v1742 = vunpack.c.l.b16 %v888
        %v1743 = vunpack.c.h.b16 %v888
        %v1744 = vunpack.c.l.b16 %v889
        %v1745 = vunpack.c.h.b16 %v889
        %v1746 = vunpack.c.l.b16 %v890
        %v1747 = vunpack.c.h.b16 %v890
        %v1748 = vunpack.c.l.b16 %v891
        %v1749 = vunpack.c.h.b16 %v891
        %v1750 = vunpack.c.l.b16 %v892
        %v1751 = vunpack.c.h.b16 %v892
        %v1752 = vunpack.c.l.b16 %v893
        %v1753 = vunpack.c.h.b16 %v893
        %v1754 = vunpack.c.l.b16 %v894
        %v1755 = vunpack.c.h.b16 %v894
        %v1756 = vunpack.c.l.b16 %v895
        %v1757 = vunpack.c.h.b16 %v895
        %v1758 = vunpack.c.l.b16 %v896
        %v1759 = vunpack.c.h.b16 %v896
        %v1760 = vunpack.c.l.b16 %v897
        %v1761 = vunpack.c.h.b16 %v897
        %v1762 = vunpack.c.l.b16 %v898
        %v1763 = vunpack.c.h.b16 %v898
        %v1764 = vunpack.c.l.b16 %v899
        %v1765 = vunpack.c.h.b16 %v899
        %v1766 = vunpack.c.l.b16 %v900
        %v1767 = vunpack.c.h.b16 %v900
        %v1768 = vunpack.c.l.b16 %v901
        %v1769 = vunpack.c.h.b16 %v901
        %v1770 = vunpack.c.l.b16 %v902
        %v1771 = vunpack.c.h.b16 %v902
        %v1772 = vunpack.c.l.b16 %v903
        %v1773 = vunpack.c.h.b16 %v903
        %v1774 = vunpack.c.l.b16 %v904
        %v1775 = vunpack.c.h.b16 %v904
        %v1776 = vunpack.c.l.b16 %v905
        %v1777 = vunpack.c.h.b16 %v905
        %v1778 = vunpack.c.l.b16 %v906
        %v1779 = vunpack.c.h.b16 %v906
        %v1780 = vunpack.c.l.b16 %v907
        %v1781 = vunpack.c.h.b16 %v907
        %v1782 = vunpack.c.l.b16 %v908
        %v1783 = vunpack.c.h.b16 %v908
        %v1784 = vunpack.c.l.b16 %v909
        %v1785 = vunpack.c.h.b16 %v909
        %v1786 = vunpack.c.l.b16 %v910
        %v1787 = vunpack.c.h.b16 %v910
        %v1788 = vunpack.c.l.b16 %v911
        %v1789 = vunpack.c.h.b16 %v911
        %v1790 = vunpack.c.l.b16 %v912
        %v1791 = vunpack.c.h.b16 %v912
        %v1792 = vunpack.c.l.b16 %v913
        %v1793 = vunpack.c.h.b16 %v913
        %v1794 = vunpack.c.l.b16 %v914
        %v1795 = vunpack.c.h.b16 %v914
        %v1796 = vunpack.c.l.b16 %v915
        %v1797 = vunpack.c.h.b16 %v915
        %v1798 = vunpack.c.l.b16 %v916
        %v1799 = vunpack.c.h.b16 %v916
        %v1800 = vunpack.c.l.b16 %v917
        %v1801 = vunpack.c.h.b16 %v917
        %v1802 = vunpack.c.l.b16 %v918
        %v1803 = vunpack.c.h.b16 %v918
        %v1804 = vunpack.c.l.b16 %v919
        %v1805 = vunpack.c.h.b16 %v919
        %v1806 = vunpack.c.l.b16 %v920
        %v1807 = vunpack.c.h.b16 %v920
        %v1808 = vunpack.c.l.b16 %v921
        %v1809 = vunpack.c.h.b16 %v921
        %v1810 = vunpack.c.l.b16 %v922
        %v1811 = vunpack.c.h.b16 %v922
        %v1812 = vunpack.c.l.b16 %v923
        %v1813 = vunpack.c.h.b16 %v923
        %v1814 = vunpack.c.l.b16 %v924
        %v1815 = vunpack.c.h.b16 %v924
        %v1816 = vunpack.c.l.b16 %v925
        %v1817 = vunpack.c.h.b16 %v925
        %v1818 = vunpack.c.l.b16 %v926
        %v1819 = vunpack.c.h.b16 %v926
        %v1820 = vunpack.c.l.b16 %v927
        %v1821 = vunpack.c.h.b16 %v927
        %v1822 = vunpack.c.l.b16 %v928
        %v1823 = vunpack.c.h.b16 %v928
        %v1824 = vunpack.c.l.b16 %v929
        %v1825 = vunpack.c.h.b16 %v929
        %v1826 = vunpack.c.l.b16 %v930
        %v1827 = vunpack.c.h.b16 %v930
        %v1828 = vunpack.c.l.b16 %v931
        %v1829 = vunpack.c.h.b16 %v931
        %v1830 = vunpack.c.l.b16 %v932
        %v1831 = vunpack.c.h.b16 %v932
        %v1832 = vunpack.c.l.b16 %v933
        %v1833 = vunpack.c.h.b16 %v933
        %v1834 = vunpack.c.l.b16 %v934
        %v1835 = vunpack.c.h.b16 %v934
        %v1836 = vunpack.c.l.b16 %v935
        %v1837 = vunpack.c.h.b16 %v935
        %v1838 = vunpack.c.l.b16 %v936
        %v1839 = vunpack.c.h.b16 %v936
        %v1840 = vunpack.c.l.b16 %v937
        %v1841 = vunpack.c.h.b16 %v937
        %v1842 = vunpack.c.l.b16 %v938
        %v1843 = vunpack.c.h.b16 %v938
        %v1844 = vunpack.c.l.b16 %v939
        %v1845 = vunpack.c.h.b16 %v939
        %v1846 = vunpack.c.l.b16 %v940
        %v1847 = vunpack.c.h.b16 %v940
        %v1848 = vunpack.c.l.b16 %v941
        %v1849 = vunpack.c.h.b16 %v941
        %v1850 = vunpack.c.l.b16 %v942
        %v1851 = vunpack.c.h.b16 %v942
        %v1852 = vunpack.c.l.b16 %v943
        %v1853 = vunpack.c.h.b16 %v943
        %v1854 = vunpack.c.l.b16 %v944
        %v1855 = vunpack.c.h.b16 %v944
        %v1856 = vunpack.c.l.b16 %v945
        %v1857 = vunpack.c.h.b16 %v945
        %v1858 = vunpack.c.l.b16 %v946
        %v1859 = vunpack.c.h.b16 %v946
        %v1860 = vunpack.c.l.b16 %v947
        %v1861 = vunpack.c.h.b16 %v947
        %v1862 = vunpack.c.l.b16 %v948
        %v1863 = vunpack.c.h.b16 %v948
        %v1864 = vunpack.c.l.b16 %v949
        %v1865 = vunpack.c.h.b16 %v949
        %v1866 = vunpack.c.l.b16 %v950
        %v1867 = vunpack.c.h.b16 %v950
        %v1868 = vunpack.c.l.b16 %v951
        %v1869 = vunpack.c.h.b16 %v951
        %v1870 = vunpack.c.l.b16 %v952
        %v1871 = vunpack.c.h.b16 %v952
        %v1872 = vunpack.c.l.b16 %v953
        %v1873 = vunpack.c.h.b16 %v953
        %v1874 = vunpack.c.l.b16 %v954
        %v1875 = vunpack.c.h.b16 %v954
        %v1876 = vunpack.c.l.b16 %v955
        %v1877 = vunpack.c.h.b16 %v955
        %v1878 = vunpack.c.l.b16 %v956
        %v1879 = vunpack.c.h.b16 %v956
        %v1880 = vunpack.c.l.b16 %v957
        %v1881 = vunpack.c.h.b16 %v957
        %v1882 = vunpack.c.l.b16 %v958
        %v1883 = vunpack.c.h.b16 %v958
        %v1884 = vunpack.c.l.b16 %v959
        %v1885 = vunpack.c.h.b16 %v959
        %v1886 = vunpack.c.l.b16 %v960
        %v1887 = vunpack.c.h.b16 %v960
        %v1888 = vunpack.c.l.b16 %v961
        %v1889 = vunpack.c.h.b16 %v961
        %v1890 = vunpack.c.l.b16 %v962
        %v1891 = vunpack.c.h.b16 %v962
        %v1892 = vunpack.c.l.b16 %v963
        %v1893 = vunpack.c.h.b16 %v963
        %v1894 = vunpack.c.l.b16 %v964
        %v1895 = vunpack.c.h.b16 %v964
        %v1896 = vunpack.c.l.b16 %v965
        %v1897 = vunpack.c.h.b16 %v965
        %v1898 = vunpack.c.l.b16 %v966
        %v1899 = vunpack.c.h.b16 %v966
        %v1900 = vunpack.c.l.b16 %v967
        %v1901 = vunpack.c.h.b16 %v967
        %v1902 = vunpack.c.l.b16 %v968
        %v1903 = vunpack.c.h.b16 %v968
        %v1904 = vunpack.c.l.b16 %v969
        %v1905 = vunpack.c.h.b16 %v969
        %v1906 = vunpack.c.l.b16 %v970
        %v1907 = vunpack.c.h.b16 %v970
        %v1908 = vunpack.c.l.b16 %v971
        %v1909 = vunpack.c.h.b16 %v971
        %v1910 = vunpack.c.l.b16 %v972
        %v1911 = vunpack.c.h.b16 %v972
        %v1912 = vunpack.c.l.b16 %v973
        %v1913 = vunpack.c.h.b16 %v973
        %v1914 = vunpack.c.l.b16 %v974
        %v1915 = vunpack.c.h.b16 %v974
        %v1916 = vunpack.c.l.b16 %v975
        %v1917 = vunpack.c.h.b16 %v975
        %v1918 = vunpack.c.l.b16 %v976
        %v1919 = vunpack.c.h.b16 %v976
        %v1920 = vunpack.c.l.b16 %v977
        %v1921 = vunpack.c.h.b16 %v977
        %v1922 = vunpack.c.l.b16 %v978
        %v1923 = vunpack.c.h.b16 %v978
        %v1924 = vunpack.c.l.b16 %v979
        %v1925 = vunpack.c.h.b16 %v979
        %v1926 = vunpack.c.l.b16 %v980
        %v1927 = vunpack.c.h.b16 %v980
        %v1928 = vunpack.c.l.b16 %v981
        %v1929 = vunpack.c.h.b16 %v981
        %v1930 = vunpack.c.l.b16 %v982
        %v1931 = vunpack.c.h.b16 %v982
        %v1932 = vunpack.c.l.b16 %v983
        %v1933 = vunpack.c.h.b16 %v983
        %v1934 = vunpack.c.l.b16 %v984
        %v1935 = vunpack.c.h.b16 %v984
        %v1936 = vunpack.c.l.b16 %v985
        %v1937 = vunpack.c.h.b16 %v985
        %v1938 = vunpack.c.l.b16 %v986
        %v1939 = vunpack.c.h.b16 %v986
        %v1940 = vunpack.c.l.b16 %v987
        %v1941 = vunpack.c.h.b16 %v987
        %v1942 = vunpack.c.l.b16 %v988
        %v1943 = vunpack.c.h.b16 %v988
        %v1944 = vunpack.c.l.b16 %v989
        %v1945 = vunpack.c.h.b16 %v989
        %v1946 = vunpack.c.l.b16 %v990
        %v1947 = vunpack.c.h.b16 %v990
        %v1948 = vunpack.c.l.b16 %v991
        %v1949 = vunpack.c.h.b16 %v991
        %v1950 = vunpack.c.l.b16 %v992
        %v1951 = vunpack.c.h.b16 %v992
        %v1952 = vunpack.c.l.b16 %v993
        %v1953 = vunpack.c.h.b16 %v993
        %v1954 = vunpack.c.l.b16 %v994
        %v1955 = vunpack.c.h.b16 %v994
        %v1956 = vunpack.c.l.b16 %v995
        %v1957 = vunpack.c.h.b16 %v995
        %v1958 = vunpack.c.l.b16 %v996
        %v1959 = vunpack.c.h.b16 %v996
        %v1960 = vunpack.c.l.b16 %v997
        %v1961 = vunpack.c.h.b16 %v997
        %v1962 = vunpack.c.l.b16 %v998
        %v1963 = vunpack.c.h.b16 %v998
        %v1964 = vunpack.c.l.b16 %v999
        %v1965 = vunpack.c.h.b16 %v999
        %v1966 = vunpack.c.l.b16 %v1000
        %v1967 = vunpack.c.h.b16 %v1000
        %v1968 = vunpack.c.l.b16 %v1001
        %v1969 = vunpack.c.h.b16 %v1001
        %v1970 = vunpack.c.l.b16 %v1002
        %v1971 = vunpack.c.h.b16 %v1002
        %v1972 = vunpack.c.l.b16 %v1003
        %v1973 = vunpack.c.h.b16 %v1003
        %v1974 = vunpack.c.l.b16 %v1004
        %v1975 = vunpack.c.h.b16 %v1004
        %v1976 = vunpack.c.l.b16 %v1005
        %v1977 = vunpack.c.h.b16 %v1005
        %v1978 = vunpack.c.l.b16 %v1006
        %v1979 = vunpack.c.h.b16 %v1006
        %v1980 = vunpack.c.l.b16 %v1007
        %v1981 = vunpack.c.h.b16 %v1007
        %v1982 = vunpack.c.l.b16 %v1008
        %v1983 = vunpack.c.h.b16 %v1008
        %v1984 = vunpack.c.l.b16 %v1009
        %v1985 = vunpack.c.h.b16 %v1009
        %v1986 = vunpack.c.l.b16 %v1010
        %v1987 = vunpack.c.h.b16 %v1010
        %v1988 = vunpack.c.l.b16 %v1011
        %v1989 = vunpack.c.h.b16 %v1011
        %v1990 = vunpack.c.l.b16 %v1012
        %v1991 = vunpack.c.h.b16 %v1012
        %v1992 = vunpack.c.l.b16 %v1013
        %v1993 = vunpack.c.h.b16 %v1013
        %v1994 = vunpack.c.l.b16 %v1014
        %v1995 = vunpack.c.h.b16 %v1014
        %v1996 = vunpack.c.l.b16 %v1015
        %v1997 = vunpack.c.h.b16 %v1015
        %v1998 = vunpack.c.l.b16 %v1016
        %v1999 = vunpack.c.h.b16 %v1016
        %v2000 = vunpack.c.l.b16 %v1017
        %v2001 = vunpack.c.h.b16 %v1017
        %v2002 = vunpack.c.l.b16 %v1018
        %v2003 = vunpack.c.h.b16 %v1018
        %v2004 = vunpack.c.l.b16 %v1019
        %v2005 = vunpack.c.h.b16 %v1019
        %v2006 = vunpack.c.l.b16 %v1020
        %v2007 = vunpack.c.h.b16 %v1020
        %v2008 = vunpack.c.l.b16 %v1021
        %v2009 = vunpack.c.h.b16 %v1021
        %v2010 = vunpack.c.l.b16 %v1022
        %v2011 = vunpack.c.h.b16 %v1022
        %v2012 = vunpack.c.l.b16 %v1023
        %v2013 = vunpack.c.h.b16 %v1023
        %v2014 = vunpack.c.l.b16 %v1024
        %v2015 = vunpack.c.h.b16 %v1024
        %v2016 = vunpack.c.l.b16 %v1025
        %v2017 = vunpack.c.h.b16 %v1025
        %v2018 = vunpack.c.l.b16 %v1026
        %v2019 = vunpack.c.h.b16 %v1026
        %v2020 = vunpack.c.l.b16 %v1027
        %v2021 = vunpack.c.h.b16 %v1027
        %v2022 = vunpack.c.l.b16 %v1028
        %v2023 = vunpack.c.h.b16 %v1028
        %v2024 = vunpack.c.l.b16 %v1029
        %v2025 = vunpack.c.h.b16 %v1029
        %v2026 = vunpack.c.l.b16 %v1030
        %v2027 = vunpack.c.h.b16 %v1030
        %v2028 = vunpack.c.l.b16 %v1031
        %v2029 = vunpack.c.h.b16 %v1031
        %v2030 = vunpack.c.l.b16 %v1032
        %v2031 = vunpack.c.h.b16 %v1032
        %v2032 = vunpack.c.l.b16 %v1033
        %v2033 = vunpack.c.h.b16 %v1033
        %v2034 = vunpack.c.l.b16 %v1034
        %v2035 = vunpack.c.h.b16 %v1034
        %v2036 = vunpack.c.l.b16 %v1035
        %v2037 = vunpack.c.h.b16 %v1035
        %v2038 = vunpack.c.l.b16 %v1036
        %v2039 = vunpack.c.h.b16 %v1036
        %v2040 = vunpack.c.l.b16 %v1037
        %v2041 = vunpack.c.h.b16 %v1037
        %v2042 = vunpack.c.l.b16 %v1038
        %v2043 = vunpack.c.h.b16 %v1038
        %v2044 = vunpack.c.l.b16 %v1039
        %v2045 = vunpack.c.h.b16 %v1039
        %v2046 = vunpack.c.l.b16 %v1040
        %v2047 = vunpack.c.h.b16 %v1040
        %v2048 = vunpack.c.l.b16 %v1041
        %v2049 = vunpack.c.h.b16 %v1041
        %v2050 = vunpack.c.l.b16 %v1042
        %v2051 = vunpack.c.h.b16 %v1042
        %v2052 = vunpack.c.l.b16 %v1043
        %v2053 = vunpack.c.h.b16 %v1043
        %v2054 = vunpack.c.l.b16 %v1044
        %v2055 = vunpack.c.h.b16 %v1044
        %v2056 = vpack.c.b16 %v1398, %v1384
        %v2057 = vpack.c.b16 %v1399, %v1385
        %v2058 = vpack.c.b16 %v1400, %v1386
        %v2059 = vpack.c.b16 %v1401, %v1387
        %v2060 = vpack.c.b16 %v1402, %v1388
        %v2061 = vpack.c.b16 %v1403, %v1389
        %v2062 = vpack.c.b16 %v1404, %v1390
        %v2063 = vpack.c.b16 %v1405, %v1391
        %v2064 = vpack.c.b16 %v1406, %v1392
        %v2065 = vpack.c.b16 %v1407, %v1393
        %v2066 = vpack.c.b16 %v1408, %v1394
        %v2067 = vpack.c.b16 %v1409, %v1395
        %v2068 = vpack.c.b16 %v1410, %v1396
        %v2069 = vpack.c.b16 %v1411, %v1397
        %v2070 = vpack.c.b16 %v1426, %v1412
        %v2071 = vpack.c.b16 %v1427, %v1413
        %v2072 = vpack.c.b16 %v1428, %v1414
        %v2073 = vpack.c.b16 %v1429, %v1415
        %v2074 = vpack.c.b16 %v1430, %v1416
        %v2075 = vpack.c.b16 %v1431, %v1417
        %v2076 = vpack.c.b16 %v1432, %v1418
        %v2077 = vpack.c.b16 %v1433, %v1419
        %v2078 = vpack.c.b16 %v1434, %v1420
        %v2079 = vpack.c.b16 %v1435, %v1421
        %v2080 = vpack.c.b16 %v1436, %v1422
        %v2081 = vpack.c.b16 %v1437, %v1423
        %v2082 = vpack.c.b16 %v1438, %v1424
        %v2083 = vpack.c.b16 %v1439, %v1425
        %v2084 = vpack.c.b16 %v1454, %v1440
        %v2085 = vpack.c.b16 %v1455, %v1441
        %v2086 = vpack.c.b16 %v1456, %v1442
        %v2087 = vpack.c.b16 %v1457, %v1443
        %v2088 = vpack.c.b16 %v1458, %v1444
        %v2089 = vpack.c.b16 %v1459, %v1445
        %v2090 = vpack.c.b16 %v1460, %v1446
        %v2091 = vpack.c.b16 %v1461, %v1447
        %v2092 = vpack.c.b16 %v1462, %v1448
        %v2093 = vpack.c.b16 %v1463, %v1449
        %v2094 = vpack.c.b16 %v1464, %v1450
        %v2095 = vpack.c.b16 %v1465, %v1451
        %v2096 = vpack.c.b16 %v1466, %v1452
        %v2097 = vpack.c.b16 %v1467, %v1453
        %v2098 = vpack.c.b16 %v1482, %v1468
        %v2099 = vpack.c.b16 %v1483, %v1469
        %v2100 = vpack.c.b16 %v1484, %v1470
        %v2101 = vpack.c.b16 %v1485, %v1471
        %v2102 = vpack.c.b16 %v1486, %v1472
        %v2103 = vpack.c.b16 %v1487, %v1473
        %v2104 = vpack.c.b16 %v1488, %v1474
        %v2105 = vpack.c.b16 %v1489, %v1475
        %v2106 = vpack.c.b16 %v1490, %v1476
        %v2107 = vpack.c.b16 %v1491, %v1477
        %v2108 = vpack.c.b16 %v1492, %v1478
        %v2109 = vpack.c.b16 %v1493, %v1479
        %v2110 = vpack.c.b16 %v1494, %v1480
        %v2111 = vpack.c.b16 %v1495, %v1481
        %v2112 = vpack.c.b16 %v1510, %v1496
        %v2113 = vpack.c.b16 %v1511, %v1497
        %v2114 = vpack.c.b16 %v1512, %v1498
        %v2115 = vpack.c.b16 %v1513, %v1499
        %v2116 = vpack.c.b16 %v1514, %v1500
        %v2117 = vpack.c.b16 %v1515, %v1501
        %v2118 = vpack.c.b16 %v1516, %v1502
        %v2119 = vpack.c.b16 %v1517, %v1503
        %v2120 = vpack.c.b16 %v1518, %v1504
        %v2121 = vpack.c.b16 %v1519, %v1505
        %v2122 = vpack.c.b16 %v1520, %v1506
        %v2123 = vpack.c.b16 %v1521, %v1507
        %v2124 = vpack.c.b16 %v1522, %v1508
        %v2125 = vpack.c.b16 %v1523, %v1509
        %v2126 = vpack.c.b16 %v1538, %v1524
        %v2127 = vpack.c.b16 %v1539, %v1525
        %v2128 = vpack.c.b16 %v1540, %v1526
        %v2129 = vpack.c.b16 %v1541, %v1527
        %v2130 = vpack.c.b16 %v1542, %v1528
        %v2131 = vpack.c.b16 %v1543, %v1529
        %v2132 = vpack.c.b16 %v1544, %v1530
        %v2133 = vpack.c.b16 %v1545, %v1531
        %v2134 = vpack.c.b16 %v1546, %v1532
        %v2135 = vpack.c.b16 %v1547, %v1533
        %v2136 = vpack.c.b16 %v1548, %v1534
        %v2137 = vpack.c.b16 %v1549, %v1535
        %v2138 = vpack.c.b16 %v1550, %v1536
        %v2139 = vpack.c.b16 %v1551, %v1537
        %v2140 = vpack.c.b16 %v1566, %v1552
        %v2141 = vpack.c.b16 %v1567, %v1553
        %v2142 = vpack.c.b16 %v1568, %v1554
        %v2143 = vpack.c.b16 %v1569, %v1555
        %v2144 = vpack.c.b16 %v1570, %v1556
        %v2145 = vpack.c.b16 %v1571, %v1557
        %v2146 = vpack.c.b16 %v1572, %v1558
        %v2147 = vpack.c.b16 %v1573, %v1559
        %v2148 = vpack.c.b16 %v1574, %v1560
        %v2149 = vpack.c.b16 %v1575, %v1561
        %v2150 = vpack.c.b16 %v1576, %v1562
        %v2151 = vpack.c.b16 %v1577, %v1563
        %v2152 = vpack.c.b16 %v1578, %v1564
        %v2153 = vpack.c.b16 %v1579, %v1565
        %v2154 = vpack.c.b16 %v1594, %v1580
        %v2155 = vpack.c.b16 %v1595, %v1581
        %v2156 = vpack.c.b16 %v1596, %v1582
        %v2157 = vpack.c.b16 %v1597, %v1583
        %v2158 = vpack.c.b16 %v1598, %v1584
        %v2159 = vpack.c.b16 %v1599, %v1585
        %v2160 = vpack.c.b16 %v1600, %v1586
        %v2161 = vpack.c.b16 %v1601, %v1587
        %v2162 = vpack.c.b16 %v1602, %v1588
        %v2163 = vpack.c.b16 %v1603, %v1589
        %v2164 = vpack.c.b16 %v1604, %v1590
        %v2165 = vpack.c.b16 %v1605, %v1591
        %v2166 = vpack.c.b16 %v1606, %v1592
        %v2167 = vpack.c.b16 %v1607, %v1593
        %v2168 = vpack.c.b16 %v1622, %v1608
        %v2169 = vpack.c.b16 %v1623, %v1609
        %v2170 = vpack.c.b16 %v1624, %v1610
        %v2171 = vpack.c.b16 %v1625, %v1611
        %v2172 = vpack.c.b16 %v1626, %v1612
        %v2173 = vpack.c.b16 %v1627, %v1613
        %v2174 = vpack.c.b16 %v1628, %v1614
        %v2175 = vpack.c.b16 %v1629, %v1615
        %v2176 = vpack.c.b16 %v1630, %v1616
        %v2177 = vpack.c.b16 %v1631, %v1617
        %v2178 = vpack.c.b16 %v1632, %v1618
        %v2179 = vpack.c.b16 %v1633, %v1619
        %v2180 = vpack.c.b16 %v1634, %v1620
        %v2181 = vpack.c.b16 %v1635, %v1621
        %v2182 = vpack.c.b16 %v1650, %v1636
        %v2183 = vpack.c.b16 %v1651, %v1637
        %v2184 = vpack.c.b16 %v1652, %v1638
        %v2185 = vpack.c.b16 %v1653, %v1639
        %v2186 = vpack.c.b16 %v1654, %v1640
        %v2187 = vpack.c.b16 %v1655, %v1641
        %v2188 = vpack.c.b16 %v1656, %v1642
        %v2189 = vpack.c.b16 %v1657, %v1643
        %v2190 = vpack.c.b16 %v1658, %v1644
        %v2191 = vpack.c.b16 %v1659, %v1645
        %v2192 = vpack.c.b16 %v1660, %v1646
        %v2193 = vpack.c.b16 %v1661, %v1647
        %v2194 = vpack.c.b16 %v1662, %v1648
        %v2195 = vpack.c.b16 %v1663, %v1649
        %v2196 = vpack.c.b16 %v1678, %v1664
        %v2197 = vpack.c.b16 %v1679, %v1665
        %v2198 = vpack.c.b16 %v1680, %v1666
        %v2199 = vpack.c.b16 %v1681, %v1667
        %v2200 = vpack.c.b16 %v1682, %v1668
        %v2201 = vpack.c.b16 %v1683, %v1669
        %v2202 = vpack.c.b16 %v1684, %v1670
        %v2203 = vpack.c.b16 %v1685, %v1671
        %v2204 = vpack.c.b16 %v1686, %v1672
        %v2205 = vpack.c.b16 %v1687, %v1673
        %v2206 = vpack.c.b16 %v1688, %v1674
        %v2207 = vpack.c.b16 %v1689, %v1675
        %v2208 = vpack.c.b16 %v1690, %v1676
        %v2209 = vpack.c.b16 %v1691, %v1677
        %v2210 = vpack.c.b16 %v1706, %v1692
        %v2211 = vpack.c.b16 %v1707, %v1693
        %v2212 = vpack.c.b16 %v1708, %v1694
        %v2213 = vpack.c.b16 %v1709, %v1695
        %v2214 = vpack.c.b16 %v1710, %v1696
        %v2215 = vpack.c.b16 %v1711, %v1697
        %v2216 = vpack.c.b16 %v1712, %v1698
        %v2217 = vpack.c.b16 %v1713, %v1699
        %v2218 = vpack.c.b16 %v1714, %v1700
        %v2219 = vpack.c.b16 %v1715, %v1701
        %v2220 = vpack.c.b16 %v1716, %v1702
        %v2221 = vpack.c.b16 %v1717, %v1703
        %v2222 = vpack.c.b16 %v1718, %v1704
        %v2223 = vpack.c.b16 %v1719, %v1705
        %v2224 = vpack.c.b16 %v1734, %v1720
        %v2225 = vpack.c.b16 %v1735, %v1721
        %v2226 = vpack.c.b16 %v1736, %v1722
        %v2227 = vpack.c.b16 %v1737, %v1723
        %v2228 = vpack.c.b16 %v1738, %v1724
        %v2229 = vpack.c.b16 %v1739, %v1725
        %v2230 = vpack.c.b16 %v1740, %v1726
        %v2231 = vpack.c.b16 %v1741, %v1727
        %v2232 = vpack.c.b16 %v1742, %v1728
        %v2233 = vpack.c.b16 %v1743, %v1729
        %v2234 = vpack.c.b16 %v1744, %v1730
        %v2235 = vpack.c.b16 %v1745, %v1731
        %v2236 = vpack.c.b16 %v1746, %v1732
        %v2237 = vpack.c.b16 %v1747, %v1733
        %v2238 = vpack.c.b16 %v1762, %v1748
        %v2239 = vpack.c.b16 %v1763, %v1749
        %v2240 = vpack.c.b16 %v1764, %v1750
        %v2241 = vpack.c.b16 %v1765, %v1751
        %v2242 = vpack.c.b16 %v1766, %v1752
        %v2243 = vpack.c.b16 %v1767, %v1753
        %v2244 = vpack.c.b16 %v1768, %v1754
        %v2245 = vpack.c.b16 %v1769, %v1755
        %v2246 = vpack.c.b16 %v1770, %v1756
        %v2247 = vpack.c.b16 %v1771, %v1757
        %v2248 = vpack.c.b16 %v1772, %v1758
        %v2249 = vpack.c.b16 %v1773, %v1759
        %v2250 = vpack.c.b16 %v1774, %v1760
        %v2251 = vpack.c.b16 %v1775, %v1761
        %v2252 = vpack.c.b16 %v1790, %v1776
        %v2253 = vpack.c.b16 %v1791, %v1777
        %v2254 = vpack.c.b16 %v1792, %v1778
        %v2255 = vpack.c.b16 %v1793, %v1779
        %v2256 = vpack.c.b16 %v1794, %v1780
        %v2257 = vpack.c.b16 %v1795, %v1781
        %v2258 = vpack.c.b16 %v1796, %v1782
        %v2259 = vpack.c.b16 %v1797, %v1783
        %v2260 = vpack.c.b16 %v1798, %v1784
        %v2261 = vpack.c.b16 %v1799, %v1785
        %v2262 = vpack.c.b16 %v1800, %v1786
        %v2263 = vpack.c.b16 %v1801, %v1787
        %v2264 = vpack.c.b16 %v1802, %v1788
        %v2265 = vpack.c.b16 %v1803, %v1789
        %v2266 = vpack.c.b16 %v1818, %v1804
        %v2267 = vpack.c.b16 %v1819, %v1805
        %v2268 = vpack.c.b16 %v1820, %v1806
        %v2269 = vpack.c.b16 %v1821, %v1807
        %v2270 = vpack.c.b16 %v1822, %v1808
        %v2271 = vpack.c.b16 %v1823, %v1809
        %v2272 = vpack.c.b16 %v1824, %v1810
        %v2273 = vpack.c.b16 %v1825, %v1811
        %v2274 = vpack.c.b16 %v1826, %v1812
        %v2275 = vpack.c.b16 %v1827, %v1813
        %v2276 = vpack.c.b16 %v1828, %v1814
        %v2277 = vpack.c.b16 %v1829, %v1815
        %v2278 = vpack.c.b16 %v1830, %v1816
        %v2279 = vpack.c.b16 %v1831, %v1817
        %v2280 = vpack.c.b16 %v1846, %v1832
        %v2281 = vpack.c.b16 %v1847, %v1833
        %v2282 = vpack.c.b16 %v1848, %v1834
        %v2283 = vpack.c.b16 %v1849, %v1835
        %v2284 = vpack.c.b16 %v1850, %v1836
        %v2285 = vpack.c.b16 %v1851, %v1837
        %v2286 = vpack.c.b16 %v1852, %v1838
        %v2287 = vpack.c.b16 %v1853, %v1839
        %v2288 = vpack.c.b16 %v1854, %v1840
        %v2289 = vpack.c.b16 %v1855, %v1841
        %v2290 = vpack.c.b16 %v1856, %v1842
        %v2291 = vpack.c.b16 %v1857, %v1843
        %v2292 = vpack.c.b16 %v1858, %v1844
        %v2293 = vpack.c.b16 %v1859, %v1845
        %v2294 = vpack.c.b16 %v1874, %v1860
        %v2295 = vpack.c.b16 %v1875, %v1861
        %v2296 = vpack.c.b16 %v1876, %v1862
        %v2297 = vpack.c.b16 %v1877, %v1863
        %v2298 = vpack.c.b16 %v1878, %v1864
        %v2299 = vpack.c.b16 %v1879, %v1865
        %v2300 = vpack.c.b16 %v1880, %v1866
        %v2301 = vpack.c.b16 %v1881, %v1867
        %v2302 = vpack.c.b16 %v1882, %v1868
        %v2303 = vpack.c.b16 %v1883, %v1869
        %v2304 = vpack.c.b16 %v1884, %v1870
        %v2305 = vpack.c.b16 %v1885, %v1871
        %v2306 = vpack.c.b16 %v1886, %v1872
        %v2307 = vpack.c.b16 %v1887, %v1873
        %v2308 = vpack.c.b16 %v1902, %v1888
        %v2309 = vpack.c.b16 %v1903, %v1889
        %v2310 = vpack.c.b16 %v1904, %v1890
        %v2311 = vpack.c.b16 %v1905, %v1891
        %v2312 = vpack.c.b16 %v1906, %v1892
        %v2313 = vpack.c.b16 %v1907, %v1893
        %v2314 = vpack.c.b16 %v1908, %v1894
        %v2315 = vpack.c.b16 %v1909, %v1895
        %v2316 = vpack.c.b16 %v1910, %v1896
        %v2317 = vpack.c.b16 %v1911, %v1897
        %v2318 = vpack.c.b16 %v1912, %v1898
        %v2319 = vpack.c.b16 %v1913, %v1899
        %v2320 = vpack.c.b16 %v1914, %v1900
        %v2321 = vpack.c.b16 %v1915, %v1901
        %v2322 = vpack.c.b16 %v1930, %v1916
        %v2323 = vpack.c.b16 %v1931, %v1917
        %v2324 = vpack.c.b16 %v1932, %v1918
        %v2325 = vpack.c.b16 %v1933, %v1919
        %v2326 = vpack.c.b16 %v1934, %v1920
        %v2327 = vpack.c.b16 %v1935, %v1921
        %v2328 = vpack.c.b16 %v1936, %v1922
        %v2329 = vpack.c.b16 %v1937, %v1923
        %v2330 = vpack.c.b16 %v1938, %v1924
        %v2331 = vpack.c.b16 %v1939, %v1925
        %v2332 = vpack.c.b16 %v1940, %v1926
        %v2333 = vpack.c.b16 %v1941, %v1927
        %v2334 = vpack.c.b16 %v1942, %v1928
        %v2335 = vpack.c.b16 %v1943, %v1929
        %v2336 = vpack.c.b16 %v1958, %v1944
        %v2337 = vpack.c.b16 %v1959, %v1945
        %v2338 = vpack.c.b16 %v1960, %v1946
        %v2339 = vpack.c.b16 %v1961, %v1947
        %v2340 = vpack.c.b16 %v1962, %v1948
        %v2341 = vpack.c.b16 %v1963, %v1949
        %v2342 = vpack.c.b16 %v1964, %v1950
        %v2343 = vpack.c.b16 %v1965, %v1951
        %v2344 = vpack.c.b16 %v1966, %v1952
        %v2345 = vpack.c.b16 %v1967, %v1953
        %v2346 = vpack.c.b16 %v1968, %v1954
        %v2347 = vpack.c.b16 %v1969, %v1955
        %v2348 = vpack.c.b16 %v1970, %v1956
        %v2349 = vpack.c.b16 %v1971, %v1957
        %v2350 = vpack.c.b16 %v1986, %v1972
        %v2351 = vpack.c.b16 %v1987, %v1973
        %v2352 = vpack.c.b16 %v1988, %v1974
        %v2353 = vpack.c.b16 %v1989, %v1975
        %v2354 = vpack.c.b16 %v1990, %v1976
        %v2355 = vpack.c.b16 %v1991, %v1977
        %v2356 = vpack.c.b16 %v1992, %v1978
        %v2357 = vpack.c.b16 %v1993, %v1979
        %v2358 = vpack.c.b16 %v1994, %v1980
        %v2359 = vpack.c.b16 %v1995, %v1981
        %v2360 = vpack.c.b16 %v1996, %v1982
        %v2361 = vpack.c.b16 %v1997, %v1983
        %v2362 = vpack.c.b16 %v1998, %v1984
        %v2363 = vpack.c.b16 %v1999, %v1985
        %v2364 = vpack.c.b16 %v2014, %v2000
        %v2365 = vpack.c.b16 %v2015, %v2001
        %v2366 = vpack.c.b16 %v2016, %v2002
        %v2367 = vpack.c.b16 %v2017, %v2003
        %v2368 = vpack.c.b16 %v2018, %v2004
        %v2369 = vpack.c.b16 %v2019, %v2005
        %v2370 = vpack.c.b16 %v2020, %v2006
        %v2371 = vpack.c.b16 %v2021, %v2007
        %v2372 = vpack.c.b16 %v2022, %v2008
        %v2373 = vpack.c.b16 %v2023, %v2009
        %v2374 = vpack.c.b16 %v2024, %v2010
        %v2375 = vpack.c.b16 %v2025, %v2011
        %v2376 = vpack.c.b16 %v2026, %v2012
        %v2377 = vpack.c.b16 %v2027, %v2013
        %v2378 = vpack.c.b16 %v2042, %v2028
        %v2379 = vpack.c.b16 %v2043, %v2029
        %v2380 = vpack.c.b16 %v2044, %v2030
        %v2381 = vpack.c.b16 %v2045, %v2031
        %v2382 = vpack.c.b16 %v2046, %v2032
        %v2383 = vpack.c.b16 %v2047, %v2033
        %v2384 = vpack.c.b16 %v2048, %v2034
        %v2385 = vpack.c.b16 %v2049, %v2035
        %v2386 = vpack.c.b16 %v2050, %v2036
        %v2387 = vpack.c.b16 %v2051, %v2037
        %v2388 = vpack.c.b16 %v2052, %v2038
        %v2389 = vpack.c.b16 %v2053, %v2039
        %v2390 = vpack.c.b16 %v2054, %v2040
        %v2391 = vpack.c.b16 %v2055, %v2041
        %2728 = vmatprep.subr.bf16.mxu0 %v2057
        %2729 = vmatpush1.bf16.msra.mxu0 %v2056
        %2730 = vmatprep.subr.bf16.mxu0 %v2071
        %2731 = vmatpush1.bf16.msra.mxu0 %v2070
        %2732 = vmatprep.subr.bf16.mxu0 %v2085
        %2733 = vmatpush1.bf16.msra.mxu0 %v2084
        %2734 = vmatprep.subr.bf16.mxu0 %v2099
        %2735 = vmatpush1.bf16.msra.mxu0 %v2098
        %2736 = vmatprep.subr.bf16.mxu0 %v2113
        %2737 = vmatpush1.bf16.msra.mxu0 %v2112
        %2738 = vmatprep.subr.bf16.mxu0 %v2127
        %2739 = vmatpush1.bf16.msra.mxu0 %v2126
        %2740 = vmatprep.subr.bf16.mxu0 %v2141
        %2741 = vmatpush1.bf16.msra.mxu0 %v2140
        %2742 = vmatprep.subr.bf16.mxu0 %v2155
        %2743 = vmatpush1.bf16.msra.mxu0 %v2154
        %2744 = vmatprep.subr.bf16.mxu0 %v2169
        %2745 = vmatpush1.bf16.msra.mxu0 %v2168
        %2746 = vmatprep.subr.bf16.mxu0 %v2183
        %2747 = vmatpush1.bf16.msra.mxu0 %v2182
        %2748 = vmatprep.subr.bf16.mxu0 %v2197
        %2749 = vmatpush1.bf16.msra.mxu0 %v2196
        %2750 = vmatprep.subr.bf16.mxu0 %v2211
        %2751 = vmatpush1.bf16.msra.mxu0 %v2210
        %2752 = vmatprep.subr.bf16.mxu0 %v2225
        %2753 = vmatpush1.bf16.msra.mxu0 %v2224
        %2754 = vmatprep.subr.bf16.mxu0 %v2239
        %2755 = vmatpush1.bf16.msra.mxu0 %v2238
        %2756 = vmatprep.subr.bf16.mxu0 %v2253
        %2757 = vmatpush1.bf16.msra.mxu0 %v2252
        %2758 = vmatprep.subr.bf16.mxu0 %v2267
        %2759 = vmatpush1.bf16.msra.mxu0 %v2266
        %2760 = vmatprep.mubr.bf16.mxu0 %v1046
        %2761 = vmatmul.mubr.bf16.gmra.mrb[0].mxu0 %v1045
        %v2762 = vpop.f32.mrb[0].mxu0
        %v2763 = vadd.f32 0.0, %v2762
        %v2764 = vpop.f32.mrb[0].mxu0
        %v2765 = vadd.f32 0.0, %v2764
        %v2766 = vpop.f32.mrb[0].mxu0
        %v2767 = vpop.f32.mrb[0].mxu0
        %2768 = vdwg.mxu0
        %2769 = vmatprep.subr.bf16.mxu0 %v2281
        %2770 = vmatpush1.bf16.msra.mxu0 %v2280
        %2771 = vmatprep.subr.bf16.mxu0 %v2295
        %2772 = vmatpush1.bf16.msra.mxu0 %v2294
        %2773 = vmatprep.subr.bf16.mxu0 %v2309
        %2774 = vmatpush1.bf16.msra.mxu0 %v2308
        %2775 = vmatprep.subr.bf16.mxu0 %v2323
        %2776 = vmatpush1.bf16.msra.mxu0 %v2322
        %2777 = vmatprep.subr.bf16.mxu0 %v2337
        %2778 = vmatpush1.bf16.msra.mxu0 %v2336
        %2779 = vmatprep.subr.bf16.mxu0 %v2351
        %2780 = vmatpush1.bf16.msra.mxu0 %v2350
        %2781 = vmatprep.subr.bf16.mxu0 %v2365
        %2782 = vmatpush1.bf16.msra.mxu0 %v2364
        %2783 = vmatprep.subr.bf16.mxu0 %v2379
        %2784 = vmatpush1.bf16.msra.mxu0 %v2378
        %2785 = vmatprep.subr.bf16.mxu0 0
        %2786 = vmatpush1.bf16.msra.mxu0 0
        %2787 = vmatprep.subr.bf16.mxu0 0
        %2788 = vmatpush1.bf16.msra.mxu0 0
        %2789 = vmatprep.subr.bf16.mxu0 0
        %2790 = vmatpush1.bf16.msra.mxu0 0
        %2791 = vmatprep.subr.bf16.mxu0 0
        %2792 = vmatpush1.bf16.msra.mxu0 0
        %2793 = vmatprep.subr.bf16.mxu0 0
        %2794 = vmatpush1.bf16.msra.mxu0 0
        %2795 = vmatprep.subr.bf16.mxu0 0
        %2796 = vmatpush1.bf16.msra.mxu0 0
        %2797 = vmatprep.subr.bf16.mxu0 0
        %2798 = vmatpush1.bf16.msra.mxu0 0
        %2799 = vmatprep.subr.bf16.mxu0 0
        %2800 = vmatpush1.bf16.msra.mxu0 0
        %2801 = vmatprep.mubr.bf16.mxu0 0
        %2802 = vmatmul.mubr.bf16.gmra.mrb[0].mxu0 %v1047
        %v2803 = vpop.f32.mrb[0].mxu0
        %v2804 = vadd.f32 %v2763, %v2803
        %v2805 = vpop.f32.mrb[0].mxu0
        %v2806 = vadd.f32 %v2765, %v2805
        %v2807 = vpop.f32.mrb[0].mxu0
        %v2808 = vpop.f32.mrb[0].mxu0
        %2809 = vdwg.mxu0
        %2810 = vmatprep.subr.bf16.mxu0 %v2059
        %2811 = vmatpush1.bf16.msra.mxu0 %v2058
        %2812 = vmatprep.subr.bf16.mxu0 %v2073
        %2813 = vmatpush1.bf16.msra.mxu0 %v2072
        %2814 = vmatprep.subr.bf16.mxu0 %v2087
        %2815 = vmatpush1.bf16.msra.mxu0 %v2086
        %2816 = vmatprep.subr.bf16.mxu0 %v2101
        %2817 = vmatpush1.bf16.msra.mxu0 %v2100
        %2818 = vmatprep.subr.bf16.mxu0 %v2115
        %2819 = vmatpush1.bf16.msra.mxu0 %v2114
        %2820 = vmatprep.subr.bf16.mxu0 %v2129
        %2821 = vmatpush1.bf16.msra.mxu0 %v2128
        %2822 = vmatprep.subr.bf16.mxu0 %v2143
        %2823 = vmatpush1.bf16.msra.mxu0 %v2142
        %2824 = vmatprep.subr.bf16.mxu0 %v2157
        %2825 = vmatpush1.bf16.msra.mxu0 %v2156
        %2826 = vmatprep.subr.bf16.mxu0 %v2171
        %2827 = vmatpush1.bf16.msra.mxu0 %v2170
        %2828 = vmatprep.subr.bf16.mxu0 %v2185
        %2829 = vmatpush1.bf16.msra.mxu0 %v2184
        %2830 = vmatprep.subr.bf16.mxu0 %v2199
        %2831 = vmatpush1.bf16.msra.mxu0 %v2198
        %2832 = vmatprep.subr.bf16.mxu0 %v2213
        %2833 = vmatpush1.bf16.msra.mxu0 %v2212
        %2834 = vmatprep.subr.bf16.mxu0 %v2227
        %2835 = vmatpush1.bf16.msra.mxu0 %v2226
        %2836 = vmatprep.subr.bf16.mxu0 %v2241
        %2837 = vmatpush1.bf16.msra.mxu0 %v2240
        %2838 = vmatprep.subr.bf16.mxu0 %v2255
        %2839 = vmatpush1.bf16.msra.mxu0 %v2254
        %2840 = vmatprep.subr.bf16.mxu0 %v2269
        %2841 = vmatpush1.bf16.msra.mxu0 %v2268
        %2842 = vmatprep.mubr.bf16.mxu0 %v1046
        %2843 = vmatmul.mubr.bf16.gmra.mrb[0].mxu0 %v1045
        %v2844 = vpop.f32.mrb[0].mxu0
        %v2845 = vadd.f32 0.0, %v2844
        %v2846 = vpop.f32.mrb[0].mxu0
        %v2847 = vadd.f32 0.0, %v2846
        %v2848 = vpop.f32.mrb[0].mxu0
        %v2849 = vpop.f32.mrb[0].mxu0
        %2850 = vdwg.mxu0
        %2851 = vmatprep.subr.bf16.mxu0 %v2283
        %2852 = vmatpush1.bf16.msra.mxu0 %v2282
        %2853 = vmatprep.subr.bf16.mxu0 %v2297
        %2854 = vmatpush1.bf16.msra.mxu0 %v2296
        %2855 = vmatprep.subr.bf16.mxu0 %v2311
        %2856 = vmatpush1.bf16.msra.mxu0 %v2310
        %2857 = vmatprep.subr.bf16.mxu0 %v2325
        %2858 = vmatpush1.bf16.msra.mxu0 %v2324
        %2859 = vmatprep.subr.bf16.mxu0 %v2339
        %2860 = vmatpush1.bf16.msra.mxu0 %v2338
        %2861 = vmatprep.subr.bf16.mxu0 %v2353
        %2862 = vmatpush1.bf16.msra.mxu0 %v2352
        %2863 = vmatprep.subr.bf16.mxu0 %v2367
        %2864 = vmatpush1.bf16.msra.mxu0 %v2366
        %2865 = vmatprep.subr.bf16.mxu0 %v2381
        %2866 = vmatpush1.bf16.msra.mxu0 %v2380
        %2867 = vmatprep.subr.bf16.mxu0 0
        %2868 = vmatpush1.bf16.msra.mxu0 0
        %2869 = vmatprep.subr.bf16.mxu0 0
        %2870 = vmatpush1.bf16.msra.mxu0 0
        %2871 = vmatprep.subr.bf16.mxu0 0
        %2872 = vmatpush1.bf16.msra.mxu0 0
        %2873 = vmatprep.subr.bf16.mxu0 0
        %2874 = vmatpush1.bf16.msra.mxu0 0
        %2875 = vmatprep.subr.bf16.mxu0 0
        %2876 = vmatpush1.bf16.msra.mxu0 0
        %2877 = vmatprep.subr.bf16.mxu0 0
        %2878 = vmatpush1.bf16.msra.mxu0 0
        %2879 = vmatprep.subr.bf16.mxu0 0
        %2880 = vmatpush1.bf16.msra.mxu0 0
        %2881 = vmatprep.subr.bf16.mxu0 0
        %2882 = vmatpush1.bf16.msra.mxu0 0
        %2883 = vmatprep.mubr.bf16.mxu0 0
        %2884 = vmatmul.mubr.bf16.gmra.mrb[0].mxu0 %v1047
        %v2885 = vpop.f32.mrb[0].mxu0
        %v2886 = vadd.f32 %v2845, %v2885
        %v2887 = vpop.f32.mrb[0].mxu0
        %v2888 = vadd.f32 %v2847, %v2887
        %v2889 = vpop.f32.mrb[0].mxu0
        %v2890 = vpop.f32.mrb[0].mxu0
        %2891 = vdwg.mxu0
        %2892 = vmatprep.subr.bf16.mxu0 %v2061
        %2893 = vmatpush1.bf16.msra.mxu0 %v2060
        %2894 = vmatprep.subr.bf16.mxu0 %v2075
        %2895 = vmatpush1.bf16.msra.mxu0 %v2074
        %2896 = vmatprep.subr.bf16.mxu0 %v2089
        %2897 = vmatpush1.bf16.msra.mxu0 %v2088
        %2898 = vmatprep.subr.bf16.mxu0 %v2103
        %2899 = vmatpush1.bf16.msra.mxu0 %v2102
        %2900 = vmatprep.subr.bf16.mxu0 %v2117
        %2901 = vmatpush1.bf16.msra.mxu0 %v2116
        %2902 = vmatprep.subr.bf16.mxu0 %v2131
        %2903 = vmatpush1.bf16.msra.mxu0 %v2130
        %2904 = vmatprep.subr.bf16.mxu0 %v2145
        %2905 = vmatpush1.bf16.msra.mxu0 %v2144
        %2906 = vmatprep.subr.bf16.mxu0 %v2159
        %2907 = vmatpush1.bf16.msra.mxu0 %v2158
        %2908 = vmatprep.subr.bf16.mxu0 %v2173
        %2909 = vmatpush1.bf16.msra.mxu0 %v2172
        %2910 = vmatprep.subr.bf16.mxu0 %v2187
        %2911 = vmatpush1.bf16.msra.mxu0 %v2186
        %2912 = vmatprep.subr.bf16.mxu0 %v2201
        %2913 = vmatpush1.bf16.msra.mxu0 %v2200
        %2914 = vmatprep.subr.bf16.mxu0 %v2215
        %2915 = vmatpush1.bf16.msra.mxu0 %v2214
        %2916 = vmatprep.subr.bf16.mxu0 %v2229
        %2917 = vmatpush1.bf16.msra.mxu0 %v2228
        %2918 = vmatprep.subr.bf16.mxu0 %v2243
        %2919 = vmatpush1.bf16.msra.mxu0 %v2242
        %2920 = vmatprep.subr.bf16.mxu0 %v2257
        %2921 = vmatpush1.bf16.msra.mxu0 %v2256
        %2922 = vmatprep.subr.bf16.mxu0 %v2271
        %2923 = vmatpush1.bf16.msra.mxu0 %v2270
        %2924 = vmatprep.mubr.bf16.mxu0 %v1046
        %2925 = vmatmul.mubr.bf16.gmra.mrb[0].mxu0 %v1045
        %v2926 = vpop.f32.mrb[0].mxu0
        %v2927 = vadd.f32 0.0, %v2926
        %v2928 = vpop.f32.mrb[0].mxu0
        %v2929 = vadd.f32 0.0, %v2928
        %v2930 = vpop.f32.mrb[0].mxu0
        %v2931 = vpop.f32.mrb[0].mxu0
        %2932 = vdwg.mxu0
        %2933 = vmatprep.subr.bf16.mxu0 %v2285
        %2934 = vmatpush1.bf16.msra.mxu0 %v2284
        %2935 = vmatprep.subr.bf16.mxu0 %v2299
        %2936 = vmatpush1.bf16.msra.mxu0 %v2298
        %2937 = vmatprep.subr.bf16.mxu0 %v2313
        %2938 = vmatpush1.bf16.msra.mxu0 %v2312
        %2939 = vmatprep.subr.bf16.mxu0 %v2327
        %2940 = vmatpush1.bf16.msra.mxu0 %v2326
        %2941 = vmatprep.subr.bf16.mxu0 %v2341
        %2942 = vmatpush1.bf16.msra.mxu0 %v2340
        %2943 = vmatprep.subr.bf16.mxu0 %v2355
        %2944 = vmatpush1.bf16.msra.mxu0 %v2354
        %2945 = vmatprep.subr.bf16.mxu0 %v2369
        %2946 = vmatpush1.bf16.msra.mxu0 %v2368
        %2947 = vmatprep.subr.bf16.mxu0 %v2383
        %2948 = vmatpush1.bf16.msra.mxu0 %v2382
        %2949 = vmatprep.subr.bf16.mxu0 0
        %2950 = vmatpush1.bf16.msra.mxu0 0
        %2951 = vmatprep.subr.bf16.mxu0 0
        %2952 = vmatpush1.bf16.msra.mxu0 0
        %2953 = vmatprep.subr.bf16.mxu0 0
        %2954 = vmatpush1.bf16.msra.mxu0 0
        %2955 = vmatprep.subr.bf16.mxu0 0
        %2956 = vmatpush1.bf16.msra.mxu0 0
        %2957 = vmatprep.subr.bf16.mxu0 0
        %2958 = vmatpush1.bf16.msra.mxu0 0
        %2959 = vmatprep.subr.bf16.mxu0 0
        %2960 = vmatpush1.bf16.msra.mxu0 0
        %2961 = vmatprep.subr.bf16.mxu0 0
        %2962 = vmatpush1.bf16.msra.mxu0 0
        %2963 = vmatprep.subr.bf16.mxu0 0
        %2964 = vmatpush1.bf16.msra.mxu0 0
        %2965 = vmatprep.mubr.bf16.mxu0 0
        %2966 = vmatmul.mubr.bf16.gmra.mrb[0].mxu0 %v1047
        %v2967 = vpop.f32.mrb[0].mxu0
        %v2968 = vadd.f32 %v2927, %v2967
        %v2969 = vpop.f32.mrb[0].mxu0
        %v2970 = vadd.f32 %v2929, %v2969
        %v2971 = vpop.f32.mrb[0].mxu0
        %v2972 = vpop.f32.mrb[0].mxu0
        %2973 = vdwg.mxu0
        %2974 = vmatprep.subr.bf16.mxu0 %v2063
        %2975 = vmatpush1.bf16.msra.mxu0 %v2062
        %2976 = vmatprep.subr.bf16.mxu0 %v2077
        %2977 = vmatpush1.bf16.msra.mxu0 %v2076
        %2978 = vmatprep.subr.bf16.mxu0 %v2091
        %2979 = vmatpush1.bf16.msra.mxu0 %v2090
        %2980 = vmatprep.subr.bf16.mxu0 %v2105
        %2981 = vmatpush1.bf16.msra.mxu0 %v2104
        %2982 = vmatprep.subr.bf16.mxu0 %v2119
        %2983 = vmatpush1.bf16.msra.mxu0 %v2118
        %2984 = vmatprep.subr.bf16.mxu0 %v2133
        %2985 = vmatpush1.bf16.msra.mxu0 %v2132
        %2986 = vmatprep.subr.bf16.mxu0 %v2147
        %2987 = vmatpush1.bf16.msra.mxu0 %v2146
        %2988 = vmatprep.subr.bf16.mxu0 %v2161
        %2989 = vmatpush1.bf16.msra.mxu0 %v2160
        %2990 = vmatprep.subr.bf16.mxu0 %v2175
        %2991 = vmatpush1.bf16.msra.mxu0 %v2174
        %2992 = vmatprep.subr.bf16.mxu0 %v2189
        %2993 = vmatpush1.bf16.msra.mxu0 %v2188
        %2994 = vmatprep.subr.bf16.mxu0 %v2203
        %2995 = vmatpush1.bf16.msra.mxu0 %v2202
        %2996 = vmatprep.subr.bf16.mxu0 %v2217
        %2997 = vmatpush1.bf16.msra.mxu0 %v2216
        %2998 = vmatprep.subr.bf16.mxu0 %v2231
        %2999 = vmatpush1.bf16.msra.mxu0 %v2230
        %3000 = vmatprep.subr.bf16.mxu0 %v2245
        %3001 = vmatpush1.bf16.msra.mxu0 %v2244
        %3002 = vmatprep.subr.bf16.mxu0 %v2259
        %3003 = vmatpush1.bf16.msra.mxu0 %v2258
        %3004 = vmatprep.subr.bf16.mxu0 %v2273
        %3005 = vmatpush1.bf16.msra.mxu0 %v2272
        %3006 = vmatprep.mubr.bf16.mxu0 %v1046
        %3007 = vmatmul.mubr.bf16.gmra.mrb[0].mxu0 %v1045
        %v3008 = vpop.f32.mrb[0].mxu0
        %v3009 = vadd.f32 0.0, %v3008
        %v3010 = vpop.f32.mrb[0].mxu0
        %v3011 = vadd.f32 0.0, %v3010
        %v3012 = vpop.f32.mrb[0].mxu0
        %v3013 = vpop.f32.mrb[0].mxu0
        %3014 = vdwg.mxu0
        %3015 = vmatprep.subr.bf16.mxu0 %v2287
        %3016 = vmatpush1.bf16.msra.mxu0 %v2286
        %3017 = vmatprep.subr.bf16.mxu0 %v2301
        %3018 = vmatpush1.bf16.msra.mxu0 %v2300
        %3019 = vmatprep.subr.bf16.mxu0 %v2315
        %3020 = vmatpush1.bf16.msra.mxu0 %v2314
        %3021 = vmatprep.subr.bf16.mxu0 %v2329
        %3022 = vmatpush1.bf16.msra.mxu0 %v2328
        %3023 = vmatprep.subr.bf16.mxu0 %v2343
        %3024 = vmatpush1.bf16.msra.mxu0 %v2342
        %3025 = vmatprep.subr.bf16.mxu0 %v2357
        %3026 = vmatpush1.bf16.msra.mxu0 %v2356
        %3027 = vmatprep.subr.bf16.mxu0 %v2371
        %3028 = vmatpush1.bf16.msra.mxu0 %v2370
        %3029 = vmatprep.subr.bf16.mxu0 %v2385
        %3030 = vmatpush1.bf16.msra.mxu0 %v2384
        %3031 = vmatprep.subr.bf16.mxu0 0
        %3032 = vmatpush1.bf16.msra.mxu0 0
        %3033 = vmatprep.subr.bf16.mxu0 0
        %3034 = vmatpush1.bf16.msra.mxu0 0
        %3035 = vmatprep.subr.bf16.mxu0 0
        %3036 = vmatpush1.bf16.msra.mxu0 0
        %3037 = vmatprep.subr.bf16.mxu0 0
        %3038 = vmatpush1.bf16.msra.mxu0 0
        %3039 = vmatprep.subr.bf16.mxu0 0
        %3040 = vmatpush1.bf16.msra.mxu0 0
        %3041 = vmatprep.subr.bf16.mxu0 0
        %3042 = vmatpush1.bf16.msra.mxu0 0
        %3043 = vmatprep.subr.bf16.mxu0 0
        %3044 = vmatpush1.bf16.msra.mxu0 0
        %3045 = vmatprep.subr.bf16.mxu0 0
        %3046 = vmatpush1.bf16.msra.mxu0 0
        %3047 = vmatprep.mubr.bf16.mxu0 0
        %3048 = vmatmul.mubr.bf16.gmra.mrb[0].mxu0 %v1047
        %v3049 = vpop.f32.mrb[0].mxu0
        %v3050 = vadd.f32 %v3009, %v3049
        %v3051 = vpop.f32.mrb[0].mxu0
        %v3052 = vadd.f32 %v3011, %v3051
        %v3053 = vpop.f32.mrb[0].mxu0
        %v3054 = vpop.f32.mrb[0].mxu0
        %3055 = vdwg.mxu0
        %3056 = vmatprep.subr.bf16.mxu0 %v2065
        %3057 = vmatpush1.bf16.msra.mxu0 %v2064
        %3058 = vmatprep.subr.bf16.mxu0 %v2079
        %3059 = vmatpush1.bf16.msra.mxu0 %v2078
        %3060 = vmatprep.subr.bf16.mxu0 %v2093
        %3061 = vmatpush1.bf16.msra.mxu0 %v2092
        %3062 = vmatprep.subr.bf16.mxu0 %v2107
        %3063 = vmatpush1.bf16.msra.mxu0 %v2106
        %3064 = vmatprep.subr.bf16.mxu0 %v2121
        %3065 = vmatpush1.bf16.msra.mxu0 %v2120
        %3066 = vmatprep.subr.bf16.mxu0 %v2135
        %3067 = vmatpush1.bf16.msra.mxu0 %v2134
        %3068 = vmatprep.subr.bf16.mxu0 %v2149
        %3069 = vmatpush1.bf16.msra.mxu0 %v2148
        %3070 = vmatprep.subr.bf16.mxu0 %v2163
        %3071 = vmatpush1.bf16.msra.mxu0 %v2162
        %3072 = vmatprep.subr.bf16.mxu0 %v2177
        %3073 = vmatpush1.bf16.msra.mxu0 %v2176
        %3074 = vmatprep.subr.bf16.mxu0 %v2191
        %3075 = vmatpush1.bf16.msra.mxu0 %v2190
        %3076 = vmatprep.subr.bf16.mxu0 %v2205
        %3077 = vmatpush1.bf16.msra.mxu0 %v2204
        %3078 = vmatprep.subr.bf16.mxu0 %v2219
        %3079 = vmatpush1.bf16.msra.mxu0 %v2218
        %3080 = vmatprep.subr.bf16.mxu0 %v2233
        %3081 = vmatpush1.bf16.msra.mxu0 %v2232
        %3082 = vmatprep.subr.bf16.mxu0 %v2247
        %3083 = vmatpush1.bf16.msra.mxu0 %v2246
        %3084 = vmatprep.subr.bf16.mxu0 %v2261
        %3085 = vmatpush1.bf16.msra.mxu0 %v2260
        %3086 = vmatprep.subr.bf16.mxu0 %v2275
        %3087 = vmatpush1.bf16.msra.mxu0 %v2274
        %3088 = vmatprep.mubr.bf16.mxu0 %v1046
        %3089 = vmatmul.mubr.bf16.gmra.mrb[0].mxu0 %v1045
        %v3090 = vpop.f32.mrb[0].mxu0
        %v3091 = vadd.f32 0.0, %v3090
        %v3092 = vpop.f32.mrb[0].mxu0
        %v3093 = vadd.f32 0.0, %v3092
        %v3094 = vpop.f32.mrb[0].mxu0
        %v3095 = vpop.f32.mrb[0].mxu0
        %3096 = vdwg.mxu0
        %3097 = vmatprep.subr.bf16.mxu0 %v2289
        %3098 = vmatpush1.bf16.msra.mxu0 %v2288
        %3099 = vmatprep.subr.bf16.mxu0 %v2303
        %3100 = vmatpush1.bf16.msra.mxu0 %v2302
        %3101 = vmatprep.subr.bf16.mxu0 %v2317
        %3102 = vmatpush1.bf16.msra.mxu0 %v2316
        %3103 = vmatprep.subr.bf16.mxu0 %v2331
        %3104 = vmatpush1.bf16.msra.mxu0 %v2330
        %3105 = vmatprep.subr.bf16.mxu0 %v2345
        %3106 = vmatpush1.bf16.msra.mxu0 %v2344
        %3107 = vmatprep.subr.bf16.mxu0 %v2359
        %3108 = vmatpush1.bf16.msra.mxu0 %v2358
        %3109 = vmatprep.subr.bf16.mxu0 %v2373
        %3110 = vmatpush1.bf16.msra.mxu0 %v2372
        %3111 = vmatprep.subr.bf16.mxu0 %v2387
        %3112 = vmatpush1.bf16.msra.mxu0 %v2386
        %3113 = vmatprep.subr.bf16.mxu0 0
        %3114 = vmatpush1.bf16.msra.mxu0 0
        %3115 = vmatprep.subr.bf16.mxu0 0
        %3116 = vmatpush1.bf16.msra.mxu0 0
        %3117 = vmatprep.subr.bf16.mxu0 0
        %3118 = vmatpush1.bf16.msra.mxu0 0
        %3119 = vmatprep.subr.bf16.mxu0 0
        %3120 = vmatpush1.bf16.msra.mxu0 0
        %3121 = vmatprep.subr.bf16.mxu0 0
        %3122 = vmatpush1.bf16.msra.mxu0 0
        %3123 = vmatprep.subr.bf16.mxu0 0
        %3124 = vmatpush1.bf16.msra.mxu0 0
        %3125 = vmatprep.subr.bf16.mxu0 0
        %3126 = vmatpush1.bf16.msra.mxu0 0
        %3127 = vmatprep.subr.bf16.mxu0 0
        %3128 = vmatpush1.bf16.msra.mxu0 0
        %3129 = vmatprep.mubr.bf16.mxu0 0
        %3130 = vmatmul.mubr.bf16.gmra.mrb[0].mxu0 %v1047
        %v3131 = vpop.f32.mrb[0].mxu0
        %v3132 = vadd.f32 %v3091, %v3131
        %v3133 = vpop.f32.mrb[0].mxu0
        %v3134 = vadd.f32 %v3093, %v3133
        %v3135 = vpop.f32.mrb[0].mxu0
        %v3136 = vpop.f32.mrb[0].mxu0
        %3137 = vdwg.mxu0
        %3138 = vmatprep.subr.bf16.mxu0 %v2067
        %3139 = vmatpush1.bf16.msra.mxu0 %v2066
        %3140 = vmatprep.subr.bf16.mxu0 %v2081
        %3141 = vmatpush1.bf16.msra.mxu0 %v2080
        %3142 = vmatprep.subr.bf16.mxu0 %v2095
        %3143 = vmatpush1.bf16.msra.mxu0 %v2094
        %3144 = vmatprep.subr.bf16.mxu0 %v2109
        %3145 = vmatpush1.bf16.msra.mxu0 %v2108
        %3146 = vmatprep.subr.bf16.mxu0 %v2123
        %3147 = vmatpush1.bf16.msra.mxu0 %v2122
        %3148 = vmatprep.subr.bf16.mxu0 %v2137
        %3149 = vmatpush1.bf16.msra.mxu0 %v2136
        %3150 = vmatprep.subr.bf16.mxu0 %v2151
        %3151 = vmatpush1.bf16.msra.mxu0 %v2150
        %3152 = vmatprep.subr.bf16.mxu0 %v2165
        %3153 = vmatpush1.bf16.msra.mxu0 %v2164
        %3154 = vmatprep.subr.bf16.mxu0 %v2179
        %3155 = vmatpush1.bf16.msra.mxu0 %v2178
        %3156 = vmatprep.subr.bf16.mxu0 %v2193
        %3157 = vmatpush1.bf16.msra.mxu0 %v2192
        %3158 = vmatprep.subr.bf16.mxu0 %v2207
        %3159 = vmatpush1.bf16.msra.mxu0 %v2206
        %3160 = vmatprep.subr.bf16.mxu0 %v2221
        %3161 = vmatpush1.bf16.msra.mxu0 %v2220
        %3162 = vmatprep.subr.bf16.mxu0 %v2235
        %3163 = vmatpush1.bf16.msra.mxu0 %v2234
        %3164 = vmatprep.subr.bf16.mxu0 %v2249
        %3165 = vmatpush1.bf16.msra.mxu0 %v2248
        %3166 = vmatprep.subr.bf16.mxu0 %v2263
        %3167 = vmatpush1.bf16.msra.mxu0 %v2262
        %3168 = vmatprep.subr.bf16.mxu0 %v2277
        %3169 = vmatpush1.bf16.msra.mxu0 %v2276
        %3170 = vmatprep.mubr.bf16.mxu0 %v1046
        %3171 = vmatmul.mubr.bf16.gmra.mrb[0].mxu0 %v1045
        %v3172 = vpop.f32.mrb[0].mxu0
        %v3173 = vadd.f32 0.0, %v3172
        %v3174 = vpop.f32.mrb[0].mxu0
        %v3175 = vadd.f32 0.0, %v3174
        %v3176 = vpop.f32.mrb[0].mxu0
        %v3177 = vpop.f32.mrb[0].mxu0
        %3178 = vdwg.mxu0
        %3179 = vmatprep.subr.bf16.mxu0 %v2291
        %3180 = vmatpush1.bf16.msra.mxu0 %v2290
        %3181 = vmatprep.subr.bf16.mxu0 %v2305
        %3182 = vmatpush1.bf16.msra.mxu0 %v2304
        %3183 = vmatprep.subr.bf16.mxu0 %v2319
        %3184 = vmatpush1.bf16.msra.mxu0 %v2318
        %3185 = vmatprep.subr.bf16.mxu0 %v2333
        %3186 = vmatpush1.bf16.msra.mxu0 %v2332
        %3187 = vmatprep.subr.bf16.mxu0 %v2347
        %3188 = vmatpush1.bf16.msra.mxu0 %v2346
        %3189 = vmatprep.subr.bf16.mxu0 %v2361
        %3190 = vmatpush1.bf16.msra.mxu0 %v2360
        %3191 = vmatprep.subr.bf16.mxu0 %v2375
        %3192 = vmatpush1.bf16.msra.mxu0 %v2374
        %3193 = vmatprep.subr.bf16.mxu0 %v2389
        %3194 = vmatpush1.bf16.msra.mxu0 %v2388
        %3195 = vmatprep.subr.bf16.mxu0 0
        %3196 = vmatpush1.bf16.msra.mxu0 0
        %3197 = vmatprep.subr.bf16.mxu0 0
        %3198 = vmatpush1.bf16.msra.mxu0 0
        %3199 = vmatprep.subr.bf16.mxu0 0
        %3200 = vmatpush1.bf16.msra.mxu0 0
        %3201 = vmatprep.subr.bf16.mxu0 0
        %3202 = vmatpush1.bf16.msra.mxu0 0
        %3203 = vmatprep.subr.bf16.mxu0 0
        %3204 = vmatpush1.bf16.msra.mxu0 0
        %3205 = vmatprep.subr.bf16.mxu0 0
        %3206 = vmatpush1.bf16.msra.mxu0 0
        %3207 = vmatprep.subr.bf16.mxu0 0
        %3208 = vmatpush1.bf16.msra.mxu0 0
        %3209 = vmatprep.subr.bf16.mxu0 0
        %3210 = vmatpush1.bf16.msra.mxu0 0
        %3211 = vmatprep.mubr.bf16.mxu0 0
        %3212 = vmatmul.mubr.bf16.gmra.mrb[0].mxu0 %v1047
        %v3213 = vpop.f32.mrb[0].mxu0
        %v3214 = vadd.f32 %v3173, %v3213
        %v3215 = vpop.f32.mrb[0].mxu0
        %v3216 = vadd.f32 %v3175, %v3215
        %v3217 = vpop.f32.mrb[0].mxu0
        %v3218 = vpop.f32.mrb[0].mxu0
        %3219 = vdwg.mxu0
        %3220 = vmatprep.subr.bf16.mxu0 %v2069
        %3221 = vmatpush1.bf16.msra.mxu0 %v2068
        %3222 = vmatprep.subr.bf16.mxu0 %v2083
        %3223 = vmatpush1.bf16.msra.mxu0 %v2082
        %3224 = vmatprep.subr.bf16.mxu0 %v2097
        %3225 = vmatpush1.bf16.msra.mxu0 %v2096
        %3226 = vmatprep.subr.bf16.mxu0 %v2111
        %3227 = vmatpush1.bf16.msra.mxu0 %v2110
        %3228 = vmatprep.subr.bf16.mxu0 %v2125
        %3229 = vmatpush1.bf16.msra.mxu0 %v2124
        %3230 = vmatprep.subr.bf16.mxu0 %v2139
        %3231 = vmatpush1.bf16.msra.mxu0 %v2138
        %3232 = vmatprep.subr.bf16.mxu0 %v2153
        %3233 = vmatpush1.bf16.msra.mxu0 %v2152
        %3234 = vmatprep.subr.bf16.mxu0 %v2167
        %3235 = vmatpush1.bf16.msra.mxu0 %v2166
        %3236 = vmatprep.subr.bf16.mxu0 %v2181
        %3237 = vmatpush1.bf16.msra.mxu0 %v2180
        %3238 = vmatprep.subr.bf16.mxu0 %v2195
        %3239 = vmatpush1.bf16.msra.mxu0 %v2194
        %3240 = vmatprep.subr.bf16.mxu0 %v2209
        %3241 = vmatpush1.bf16.msra.mxu0 %v2208
        %3242 = vmatprep.subr.bf16.mxu0 %v2223
        %3243 = vmatpush1.bf16.msra.mxu0 %v2222
        %3244 = vmatprep.subr.bf16.mxu0 %v2237
        %3245 = vmatpush1.bf16.msra.mxu0 %v2236
        %3246 = vmatprep.subr.bf16.mxu0 %v2251
        %3247 = vmatpush1.bf16.msra.mxu0 %v2250
        %3248 = vmatprep.subr.bf16.mxu0 %v2265
        %3249 = vmatpush1.bf16.msra.mxu0 %v2264
        %3250 = vmatprep.subr.bf16.mxu0 %v2279
        %3251 = vmatpush1.bf16.msra.mxu0 %v2278
        %3252 = vmatprep.mubr.bf16.mxu0 %v1046
        %3253 = vmatmul.mubr.bf16.gmra.mrb[0].mxu0 %v1045
        %v3254 = vpop.f32.mrb[0].mxu0
        %v3255 = vadd.f32 0.0, %v3254
        %v3256 = vpop.f32.mrb[0].mxu0
        %v3257 = vadd.f32 0.0, %v3256
        %v3258 = vpop.f32.mrb[0].mxu0
        %v3259 = vpop.f32.mrb[0].mxu0
        %3260 = vdwg.mxu0
        %3261 = vmatprep.subr.bf16.mxu0 %v2293
        %3262 = vmatpush1.bf16.msra.mxu0 %v2292
        %3263 = vmatprep.subr.bf16.mxu0 %v2307
        %3264 = vmatpush1.bf16.msra.mxu0 %v2306
        %3265 = vmatprep.subr.bf16.mxu0 %v2321
        %3266 = vmatpush1.bf16.msra.mxu0 %v2320
        %3267 = vmatprep.subr.bf16.mxu0 %v2335
        %3268 = vmatpush1.bf16.msra.mxu0 %v2334
        %3269 = vmatprep.subr.bf16.mxu0 %v2349
        %3270 = vmatpush1.bf16.msra.mxu0 %v2348
        %3271 = vmatprep.subr.bf16.mxu0 %v2363
        %3272 = vmatpush1.bf16.msra.mxu0 %v2362
        %3273 = vmatprep.subr.bf16.mxu0 %v2377
        %3274 = vmatpush1.bf16.msra.mxu0 %v2376
        %3275 = vmatprep.subr.bf16.mxu0 %v2391
        %3276 = vmatpush1.bf16.msra.mxu0 %v2390
        %3277 = vmatprep.subr.bf16.mxu0 0
        %3278 = vmatpush1.bf16.msra.mxu0 0
        %3279 = vmatprep.subr.bf16.mxu0 0
        %3280 = vmatpush1.bf16.msra.mxu0 0
        %3281 = vmatprep.subr.bf16.mxu0 0
        %3282 = vmatpush1.bf16.msra.mxu0 0
        %3283 = vmatprep.subr.bf16.mxu0 0
        %3284 = vmatpush1.bf16.msra.mxu0 0
        %3285 = vmatprep.subr.bf16.mxu0 0
        %3286 = vmatpush1.bf16.msra.mxu0 0
        %3287 = vmatprep.subr.bf16.mxu0 0
        %3288 = vmatpush1.bf16.msra.mxu0 0
        %3289 = vmatprep.subr.bf16.mxu0 0
        %3290 = vmatpush1.bf16.msra.mxu0 0
        %3291 = vmatprep.subr.bf16.mxu0 0
        %3292 = vmatpush1.bf16.msra.mxu0 0
        %3293 = vmatprep.mubr.bf16.mxu0 0
        %3294 = vmatmul.mubr.bf16.gmra.mrb[0].mxu0 %v1047
        %v3295 = vpop.f32.mrb[0].mxu0
        %v3296 = vadd.f32 %v3255, %v3295
        %v3297 = vpop.f32.mrb[0].mxu0
        %v3298 = vadd.f32 %v3257, %v3297
        %v3299 = vpop.f32.mrb[0].mxu0
        %v3300 = vpop.f32.mrb[0].mxu0
        %3301 = vdwg.mxu0
        %v3302 = vmul.f32 %v3050, 0.5
        %v3303 = vmul.f32 %v3052, 0.5
        %v3304 = vmul.f32 %v3132, 0.5
        %v3305 = vmul.f32 %v3134, 0.5
        %v3306 = vmul.f32 %v3214, 0.5
        %v3307 = vmul.f32 %v3216, 0.5
        %v3308 = vmul.f32 %v3050, 0.70710677
        %v3309 = vmul.f32 %v3052, 0.70710677
        %v3310 = vmul.f32 %v3132, 0.70710677
        %v3311 = vmul.f32 %v3134, 0.70710677
        %v3312 = vmul.f32 %v3214, 0.70710677
        %v3313 = vmul.f32 %v3216, 0.70710677
        %vm3314 = vcmp.ge.f32.partialorder %v3308, 0.0
        %vm3315 = vcmp.ge.f32.partialorder %v3309, 0.0
        %vm3316 = vcmp.ge.f32.partialorder %v3310, 0.0
        %vm3317 = vcmp.ge.f32.partialorder %v3311, 0.0
        %vm3318 = vcmp.ge.f32.partialorder %v3312, 0.0
        %vm3319 = vcmp.ge.f32.partialorder %v3313, 0.0
        %v3320 = vsel %vm3314, 1.0, -1.0
        %v3321 = vsel %vm3315, 1.0, -1.0
        %v3322 = vsel %vm3316, 1.0, -1.0
        %v3323 = vsel %vm3317, 1.0, -1.0
        %v3324 = vsel %vm3318, 1.0, -1.0
        %v3325 = vsel %vm3319, 1.0, -1.0
        %v3326 = vand.u32 2147483647, %v3308
        %v3327 = vand.u32 2147483647, %v3309
        %v3328 = vand.u32 2147483647, %v3310
        %v3329 = vand.u32 2147483647, %v3311
        %v3330 = vand.u32 2147483647, %v3312
        %v3331 = vand.u32 2147483647, %v3313
        %v3332 = vmul.f32 %v3326, 0.3275911
        %v3333 = vmul.f32 %v3327, 0.3275911
        %v3334 = vmul.f32 %v3328, 0.3275911
        %v3335 = vmul.f32 %v3329, 0.3275911
        %v3336 = vmul.f32 %v3330, 0.3275911
        %v3337 = vmul.f32 %v3331, 0.3275911
        %v3338 = vadd.f32 %v3332, 1.0
        %v3339 = vadd.f32 %v3333, 1.0
        %v3340 = vadd.f32 %v3334, 1.0
        %v3341 = vadd.f32 %v3335, 1.0
        %v3342 = vadd.f32 %v3336, 1.0
        %v3343 = vadd.f32 %v3337, 1.0
        %v3344 = vrcp.pop %v3338
        %v3345 = vmul.f32 1.0, %v3344
        %v3346 = vrcp.pop %v3339
        %v3347 = vmul.f32 1.0, %v3346
        %v3348 = vrcp.pop %v3340
        %v3349 = vmul.f32 1.0, %v3348
        %v3350 = vrcp.pop %v3341
        %v3351 = vmul.f32 1.0, %v3350
        %v3352 = vrcp.pop %v3342
        %v3353 = vmul.f32 1.0, %v3352
        %v3354 = vrcp.pop %v3343
        %v3355 = vmul.f32 1.0, %v3354
        %v3356 = vmul.f32 %v3345, 1.0614054
        %v3357 = vmul.f32 %v3347, 1.0614054
        %v3358 = vmul.f32 %v3349, 1.0614054
        %v3359 = vmul.f32 %v3351, 1.0614054
        %v3360 = vmul.f32 %v3353, 1.0614054
        %v3361 = vmul.f32 %v3355, 1.0614054
        %v3362 = vadd.f32 %v3356, -1.4531521
        %v3363 = vadd.f32 %v3357, -1.4531521
        %v3364 = vadd.f32 %v3358, -1.4531521
        %v3365 = vadd.f32 %v3359, -1.4531521
        %v3366 = vadd.f32 %v3360, -1.4531521
        %v3367 = vadd.f32 %v3361, -1.4531521
        %v3368 = vmul.f32 %v3362, %v3345
        %v3369 = vmul.f32 %v3363, %v3347
        %v3370 = vmul.f32 %v3364, %v3349
        %v3371 = vmul.f32 %v3365, %v3351
        %v3372 = vmul.f32 %v3366, %v3353
        %v3373 = vmul.f32 %v3367, %v3355
        %v3374 = vadd.f32 %v3368, 1.4214138
        %v3375 = vadd.f32 %v3369, 1.4214138
        %v3376 = vadd.f32 %v3370, 1.4214138
        %v3377 = vadd.f32 %v3371, 1.4214138
        %v3378 = vadd.f32 %v3372, 1.4214138
        %v3379 = vadd.f32 %v3373, 1.4214138
        %v3380 = vmul.f32 %v3374, %v3345
        %v3381 = vmul.f32 %v3375, %v3347
        %v3382 = vmul.f32 %v3376, %v3349
        %v3383 = vmul.f32 %v3377, %v3351
        %v3384 = vmul.f32 %v3378, %v3353
        %v3385 = vmul.f32 %v3379, %v3355
        %v3386 = vadd.f32 %v3380, -0.28449672
        %v3387 = vadd.f32 %v3381, -0.28449672
        %v3388 = vadd.f32 %v3382, -0.28449672
        %v3389 = vadd.f32 %v3383, -0.28449672
        %v3390 = vadd.f32 %v3384, -0.28449672
        %v3391 = vadd.f32 %v3385, -0.28449672
        %v3392 = vmul.f32 %v3386, %v3345
        %v3393 = vmul.f32 %v3387, %v3347
        %v3394 = vmul.f32 %v3388, %v3349
        %v3395 = vmul.f32 %v3389, %v3351
        %v3396 = vmul.f32 %v3390, %v3353
        %v3397 = vmul.f32 %v3391, %v3355
        %v3398 = vadd.f32 %v3392, 0.2548296
        %v3399 = vadd.f32 %v3393, 0.2548296
        %v3400 = vadd.f32 %v3394, 0.2548296
        %v3401 = vadd.f32 %v3395, 0.2548296
        %v3402 = vadd.f32 %v3396, 0.2548296
        %v3403 = vadd.f32 %v3397, 0.2548296
        %v3404 = vmul.f32 %v3398, %v3345
        %v3405 = vmul.f32 %v3399, %v3347
        %v3406 = vmul.f32 %v3400, %v3349
        %v3407 = vmul.f32 %v3401, %v3351
        %v3408 = vmul.f32 %v3402, %v3353
        %v3409 = vmul.f32 %v3403, %v3355
        %v3410 = vsub.f32 0.0, %v3326
        %v3411 = vsub.f32 0.0, %v3327
        %v3412 = vsub.f32 0.0, %v3328
        %v3413 = vsub.f32 0.0, %v3329
        %v3414 = vsub.f32 0.0, %v3330
        %v3415 = vsub.f32 0.0, %v3331
        %v3416 = vmul.f32 %v3410, %v3326
        %v3417 = vmul.f32 %v3411, %v3327
        %v3418 = vmul.f32 %v3412, %v3328
        %v3419 = vmul.f32 %v3413, %v3329
        %v3420 = vmul.f32 %v3414, %v3330
        %v3421 = vmul.f32 %v3415, %v3331
        %v3422 = vmul.f32 %v3416, 1.442695
        %v3423 = vpow.pop %v3422
        %v3424 = vmul.f32 %v3417, 1.442695
        %v3425 = vpow.pop %v3424
        %v3426 = vmul.f32 %v3418, 1.442695
        %v3427 = vpow.pop %v3426
        %v3428 = vmul.f32 %v3419, 1.442695
        %v3429 = vpow.pop %v3428
        %v3430 = vmul.f32 %v3420, 1.442695
        %v3431 = vpow.pop %v3430
        %v3432 = vmul.f32 %v3421, 1.442695
        %v3433 = vpow.pop %v3432
        %v3434 = vmul.f32 %v3404, %v3423
        %v3435 = vmul.f32 %v3405, %v3425
        %v3436 = vmul.f32 %v3406, %v3427
        %v3437 = vmul.f32 %v3407, %v3429
        %v3438 = vmul.f32 %v3408, %v3431
        %v3439 = vmul.f32 %v3409, %v3433
        %v3440 = vsub.f32 1.0, %v3434
        %v3441 = vsub.f32 1.0, %v3435
        %v3442 = vsub.f32 1.0, %v3436
        %v3443 = vsub.f32 1.0, %v3437
        %v3444 = vsub.f32 1.0, %v3438
        %v3445 = vsub.f32 1.0, %v3439
        %v3446 = vmul.f32 %v3320, %v3440
        %v3447 = vmul.f32 %v3321, %v3441
        %v3448 = vmul.f32 %v3322, %v3442
        %v3449 = vmul.f32 %v3323, %v3443
        %v3450 = vmul.f32 %v3324, %v3444
        %v3451 = vmul.f32 %v3325, %v3445
        %v3452 = vadd.f32 %v3446, 1.0
        %v3453 = vadd.f32 %v3447, 1.0
        %v3454 = vadd.f32 %v3448, 1.0
        %v3455 = vadd.f32 %v3449, 1.0
        %v3456 = vadd.f32 %v3450, 1.0
        %v3457 = vadd.f32 %v3451, 1.0
        %v3458 = vmul.f32 %v3302, %v3452
        %v3459 = vmul.f32 %v3303, %v3453
        %v3460 = vmul.f32 %v3304, %v3454
        %v3461 = vmul.f32 %v3305, %v3455
        %v3462 = vmul.f32 %v3306, %v3456
        %v3463 = vmul.f32 %v3307, %v3457
        %v3464 = vmul.f32 %v2804, %v3458
        %v3465 = vmul.f32 %v2806, %v3459
        %v3466 = vmul.f32 %v2886, %v3460
        %v3467 = vmul.f32 %v2888, %v3461
        %v3468 = vmul.f32 %v2968, %v3462
        %v3469 = vmul.f32 %v2970, %v3463
        %v3470 = vld [vmem:[#allocation3] sm:$0xff]
        %s3471 = sld [smem:[#allocation17 + %s40]]
        %v3472 = vstv %s3471
        %v3473 = vadd.f32 %v3470, %v3472
        %v3474 = vsub.f32 0.0, %v3473
        %v3475 = vmul.f32 %v3474, 1.442695
        %v3476 = vpow.pop %v3475
        %v3477 = vadd.f32 %v3476, 1.0
        %v3478 = vrcp.pop %v3477
        %v3479 = vmul.f32 1.0, %v3478
        %vm3480 = vcmp.le.f32.partialorder %v3470, 0.0
        %v3481 = vsel %vm3480, %v3479, -inf
        %3482 = vmatprep.subr.mxu0 0.0
        %3483 = vmatpush1.xpose.msra.mxu0 %v3298
        %3484 = vmatprep.subr.mxu0 0.0
        %3485 = vmatpush1.xpose.msra.mxu0 0.0
        %3486 = vmatprep.subr.mxu0 0.0
        %3487 = vmatpush1.xpose.msra.mxu0 0.0
        %3488 = vmatprep.subr.mxu0 0.0
        %3489 = vmatpush1.xpose.msra.mxu0 0.0
        %3490 = vmatprep.subr.mxu0 0.0
        %3491 = vmatpush1.xpose.msra.mxu0 0.0
        %3492 = vmatprep.subr.mxu0 0.0
        %3493 = vmatpush1.xpose.msra.mxu0 0.0
        %3494 = vmatprep.subr.mxu0 0.0
        %3495 = vmatpush1.xpose.msra.mxu0 0.0
        %3496 = vmatprep.subr.mxu0 0.0
        %3497 = vmatpush1.xpose.msra.mxu0 0.0
        %3498 = vmatprep.subr.mxu0 0.0
        %3499 = vmatpush1.xpose.msra.mxu0 0.0
        %3500 = vmatprep.subr.mxu0 0.0
        %3501 = vmatpush1.xpose.msra.mxu0 0.0
        %3502 = vmatprep.subr.mxu0 0.0
        %3503 = vmatpush1.xpose.msra.mxu0 0.0
        %3504 = vmatprep.subr.mxu0 0.0
        %3505 = vmatpush1.xpose.msra.mxu0 0.0
        %3506 = vmatprep.subr.mxu0 0.0
        %3507 = vmatpush1.xpose.msra.mxu0 0.0
        %3508 = vmatprep.subr.mxu0 0.0
        %3509 = vmatpush1.xpose.msra.mxu0 0.0
        %3510 = vmatprep.subr.mxu0 0.0
        %3511 = vmatpush1.xpose.msra.mxu0 0.0
        %3512 = vmatprep.subr.mxu0 0.0
        %3513 = vmatpush1.xpose.msra.mxu0 0.0
        %3514 = vmatprep.subr.mxu0 0.0
        %3515 = vmatpush1.xpose.msra.mxu0 0.0
        %3516 = vmatprep.subr.mxu0 0.0
        %3517 = vmatpush1.xpose.msra.mxu0 0.0
        %3518 = vmatprep.subr.mxu0 0.0
        %3519 = vmatpush1.xpose.msra.mxu0 0.0
        %3520 = vmatprep.subr.mxu0 0.0
        %3521 = vmatpush1.xpose.msra.mxu0 0.0
        %3522 = vmatprep.subr.mxu0 0.0
        %3523 = vmatpush1.xpose.msra.mxu0 0.0
        %3524 = vmatprep.subr.mxu0 0.0
        %3525 = vmatpush1.xpose.msra.mxu0 0.0
        %3526 = vmatprep.subr.mxu0 0.0
        %3527 = vmatpush1.xpose.msra.mxu0 0.0
        %3528 = vmatprep.subr.mxu0 0.0
        %3529 = vmatpush1.xpose.msra.mxu0 0.0
        %3530 = vmatprep.subr.mxu0 0.0
        %3531 = vmatpush1.xpose.msra.mxu0 0.0
        %3532 = vmatprep.subr.mxu0 0.0
        %3533 = vmatpush1.xpose.msra.mxu0 0.0
        %3534 = vmatprep.subr.mxu0 0.0
        %3535 = vmatpush1.xpose.msra.mxu0 0.0
        %3536 = vmatprep.subr.mxu0 0.0
        %3537 = vmatpush1.xpose.msra.mxu0 0.0
        %3538 = vmatprep.subr.mxu0 0.0
        %3539 = vmatpush1.xpose.msra.mxu0 0.0
        %3540 = vmatprep.subr.mxu0 0.0
        %3541 = vmatpush1.xpose.msra.mxu0 0.0
        %3542 = vmatprep.subr.mxu0 0.0
        %3543 = vmatpush1.xpose.msra.mxu0 0.0
        %3544 = vmatprep.subr.mxu0 0.0
        %3545 = vmatpush1.xpose.msra.mxu0 0.0
        %3546 = vmatprep.mubr.f32.mxu0 0.0
        %3547 = vmatmul.mubr.f32.gmra.mrb[0].mxu0 %v3296
        %v3548 = vpop.f32.mrb[0].mxu0
        %v3549 = vadd.f32 %v3481, %v3548
        %v3550 = vpop.f32.mrb[0].mxu0
        %3551 = vdwg.mxu0
        %vm3552 = vcmask 64512
        %v3553 = vsel %vm3552, %v3549, -inf
        %3554 = vmax.xlane.f32.xlu0 %v3553
        %v3555 = vpop.xlane.xlu0 %3554
        %v3556 = vsub.f32 %v3549, %v3555
        %v3557 = vmul.f32 %v3556, 1.442695
        %v3558 = vpow.pop %v3557
        %v3559 = vsel %vm3552, %v3558, 0.0
        %3560 = vadd.xlane.f32.xlu0 %v3559
        %v3561 = vpop.xlane.xlu0 %3560
        %v3562 = vrcp.pop %v3561
        %v3563 = vmul.f32 %v3558, %v3562
        %v3565 = vsel %vm3552, %v3563, 0
        %3567 = vmatprep.subr.mxu0 %v3468
        %3568 = vmatpush1.msra.mxu0 %v3467
        %3569 = vmatprep.subr.mxu0 0.0
        %3570 = vmatpush1.msra.mxu0 0.0
        %3571 = vmatprep.subr.mxu0 0.0
        %3572 = vmatpush1.msra.mxu0 0.0
        %3573 = vmatprep.subr.mxu0 0.0
        %3574 = vmatpush1.msra.mxu0 0.0
        %3575 = vmatprep.subr.mxu0 0.0
        %3576 = vmatpush1.msra.mxu0 0.0
        %3577 = vmatprep.subr.mxu0 0.0
        %3578 = vmatpush1.msra.mxu0 0.0
        %3579 = vmatprep.subr.mxu0 0.0
        %3580 = vmatpush1.msra.mxu0 0.0
        %3581 = vmatprep.subr.mxu0 0.0
        %3582 = vmatpush1.msra.mxu0 0.0
        %3583 = vmatprep.subr.mxu0 0.0
        %3584 = vmatpush1.msra.mxu0 0.0
        %3585 = vmatprep.subr.mxu0 0.0
        %3586 = vmatpush1.msra.mxu0 0.0
        %3587 = vmatprep.subr.mxu0 0.0
        %3588 = vmatpush1.msra.mxu0 0.0
        %3589 = vmatprep.subr.mxu0 0.0
        %3590 = vmatpush1.msra.mxu0 0.0
        %3591 = vmatprep.subr.mxu0 0.0
        %3592 = vmatpush1.msra.mxu0 0.0
        %3593 = vmatprep.subr.mxu0 0.0
        %3594 = vmatpush1.msra.mxu0 0.0
        %3595 = vmatprep.subr.mxu0 0.0
        %3596 = vmatpush1.msra.mxu0 0.0
        %3597 = vmatprep.subr.mxu0 0.0
        %3598 = vmatpush1.msra.mxu0 0.0
        %3599 = vmatprep.subr.mxu0 0.0
        %3600 = vmatpush1.msra.mxu0 0.0
        %3601 = vmatprep.subr.mxu0 0.0
        %3602 = vmatpush1.msra.mxu0 0.0
        %3603 = vmatprep.subr.mxu0 0.0
        %3604 = vmatpush1.msra.mxu0 0.0
        %3605 = vmatprep.subr.mxu0 0.0
        %3606 = vmatpush1.msra.mxu0 0.0
        %3607 = vmatprep.subr.mxu0 0.0
        %3608 = vmatpush1.msra.mxu0 0.0
        %3609 = vmatprep.subr.mxu0 0.0
        %3610 = vmatpush1.msra.mxu0 0.0
        %3611 = vmatprep.subr.mxu0 0.0
        %3612 = vmatpush1.msra.mxu0 0.0
        %3613 = vmatprep.subr.mxu0 0.0
        %3614 = vmatpush1.msra.mxu0 0.0
        %3615 = vmatprep.subr.mxu0 0.0
        %3616 = vmatpush1.msra.mxu0 0.0
        %3617 = vmatprep.subr.mxu0 0.0
        %3618 = vmatpush1.msra.mxu0 0.0
        %3619 = vmatprep.subr.mxu0 0.0
        %3620 = vmatpush1.msra.mxu0 0.0
        %3621 = vmatprep.subr.mxu0 0.0
        %3622 = vmatpush1.msra.mxu0 0.0
        %3623 = vmatprep.subr.mxu0 0.0
        %3624 = vmatpush1.msra.mxu0 0.0
        %3625 = vmatprep.subr.mxu0 0.0
        %3626 = vmatpush1.msra.mxu0 0.0
        %3627 = vmatprep.subr.mxu0 0.0
        %3628 = vmatpush1.msra.mxu0 0.0
        %3629 = vmatprep.subr.mxu0 0.0
        %3630 = vmatpush1.msra.mxu0 0.0
        %3631 = vmatprep.mubr.f32.mxu0 0.0
        %3632 = vmatmul.mubr.f32.gmra.mrb[0].mxu0 %v3565
        %v3633 = vpop.f32.mrb[0].mxu0
        %v3634 = vadd.f32 0.0, %v3633
        %v3635 = vpop.f32.mrb[0].mxu0
        %v3636 = vadd.f32 0.0, %v3635
        %3637 = vdwg.mxu0
        %3638 = vmatprep.subr.mxu0 0.0
        %3639 = vmatpush1.msra.mxu0 %v3469
        %3640 = vmatprep.subr.mxu0 0.0
        %3641 = vmatpush1.msra.mxu0 0.0
        %3642 = vmatprep.subr.mxu0 0.0
        %3643 = vmatpush1.msra.mxu0 0.0
        %3644 = vmatprep.subr.mxu0 0.0
        %3645 = vmatpush1.msra.mxu0 0.0
        %3646 = vmatprep.subr.mxu0 0.0
        %3647 = vmatpush1.msra.mxu0 0.0
        %3648 = vmatprep.subr.mxu0 0.0
        %3649 = vmatpush1.msra.mxu0 0.0
        %3650 = vmatprep.subr.mxu0 0.0
        %3651 = vmatpush1.msra.mxu0 0.0
        %3652 = vmatprep.subr.mxu0 0.0
        %3653 = vmatpush1.msra.mxu0 0.0
        %3654 = vmatprep.subr.mxu0 0.0
        %3655 = vmatpush1.msra.mxu0 0.0
        %3656 = vmatprep.subr.mxu0 0.0
        %3657 = vmatpush1.msra.mxu0 0.0
        %3658 = vmatprep.subr.mxu0 0.0
        %3659 = vmatpush1.msra.mxu0 0.0
        %3660 = vmatprep.subr.mxu0 0.0
        %3661 = vmatpush1.msra.mxu0 0.0
        %3662 = vmatprep.subr.mxu0 0.0
        %3663 = vmatpush1.msra.mxu0 0.0
        %3664 = vmatprep.subr.mxu0 0.0
        %3665 = vmatpush1.msra.mxu0 0.0
        %3666 = vmatprep.subr.mxu0 0.0
        %3667 = vmatpush1.msra.mxu0 0.0
        %3668 = vmatprep.subr.mxu0 0.0
        %3669 = vmatpush1.msra.mxu0 0.0
        %3670 = vmatprep.subr.mxu0 0.0
        %3671 = vmatpush1.msra.mxu0 0.0
        %3672 = vmatprep.subr.mxu0 0.0
        %3673 = vmatpush1.msra.mxu0 0.0
        %3674 = vmatprep.subr.mxu0 0.0
        %3675 = vmatpush1.msra.mxu0 0.0
        %3676 = vmatprep.subr.mxu0 0.0
        %3677 = vmatpush1.msra.mxu0 0.0
        %3678 = vmatprep.subr.mxu0 0.0
        %3679 = vmatpush1.msra.mxu0 0.0
        %3680 = vmatprep.subr.mxu0 0.0
        %3681 = vmatpush1.msra.mxu0 0.0
        %3682 = vmatprep.subr.mxu0 0.0
        %3683 = vmatpush1.msra.mxu0 0.0
        %3684 = vmatprep.subr.mxu0 0.0
        %3685 = vmatpush1.msra.mxu0 0.0
        %3686 = vmatprep.subr.mxu0 0.0
        %3687 = vmatpush1.msra.mxu0 0.0
        %3688 = vmatprep.subr.mxu0 0.0
        %3689 = vmatpush1.msra.mxu0 0.0
        %3690 = vmatprep.subr.mxu0 0.0
        %3691 = vmatpush1.msra.mxu0 0.0
        %3692 = vmatprep.subr.mxu0 0.0
        %3693 = vmatpush1.msra.mxu0 0.0
        %3694 = vmatprep.subr.mxu0 0.0
        %3695 = vmatpush1.msra.mxu0 0.0
        %3696 = vmatprep.subr.mxu0 0.0
        %3697 = vmatpush1.msra.mxu0 0.0
        %3698 = vmatprep.subr.mxu0 0.0
        %3699 = vmatpush1.msra.mxu0 0.0
        %3700 = vmatprep.subr.mxu0 0.0
        %3701 = vmatpush1.msra.mxu0 0.0
        %3702 = vmatprep.mubr.f32.mxu0 0.0
        %3703 = vmatmul.mubr.f32.gmra.mrb[0].mxu0 %v3565
        %v3704 = vpop.f32.mrb[0].mxu0
        %v3705 = vadd.f32 0.0, %v3704
        %v3706 = vpop.f32.mrb[0].mxu0
        %3707 = vdwg.mxu0
        %v3708 = vld [vmem:[%s499] sm:$0xff]
        %v3709 = vld [vmem:[%s499 + $0x8] sm:$0xf]
        %v3710 = vld [vmem:[%s499 + $0xc] sm:$0xff]
        %v3711 = vld [vmem:[%s499 + $0x14] sm:$0xf]
        %v3712 = vld [vmem:[%s499 + $0x18] sm:$0xff]
        %v3713 = vld [vmem:[%s499 + $0x20] sm:$0xf]
        %v3714 = vld [vmem:[%s499 + $0x24] sm:$0xff]
        %v3715 = vld [vmem:[%s499 + $0x2c] sm:$0xf]
        %v3716 = vld [vmem:[%s499 + $0x30] sm:$0xff]
        %v3717 = vld [vmem:[%s499 + $0x38] sm:$0xf]
        %v3718 = vld [vmem:[%s499 + $0x3c] sm:$0xff]
        %v3719 = vld [vmem:[%s499 + $0x44] sm:$0xf]
        %v3720 = vld [vmem:[%s499 + $0x48] sm:$0xff]
        %v3721 = vld [vmem:[%s499 + $0x50] sm:$0xf]
        %v3722 = vld [vmem:[%s499 + $0x54] sm:$0xff]
        %v3723 = vld [vmem:[%s499 + $0x5c] sm:$0xf]
        %v3724 = vld [vmem:[%s499 + $0x60] sm:$0xff]
        %v3725 = vld [vmem:[%s499 + $0x68] sm:$0xf]
        %v3726 = vld [vmem:[%s499 + $0x6c] sm:$0xff]
        %v3727 = vld [vmem:[%s499 + $0x74] sm:$0xf]
        %v3728 = vld [vmem:[%s499 + $0x78] sm:$0xff]
        %v3729 = vld [vmem:[%s499 + $0x80] sm:$0xf]
        %v3730 = vld [vmem:[%s499 + $0x84] sm:$0xff]
        %v3731 = vld [vmem:[%s499 + $0x8c] sm:$0xf]
        %v3732 = vld [vmem:[%s499 + $0x90] sm:$0xff]
        %v3733 = vld [vmem:[%s499 + $0x98] sm:$0xf]
        %v3734 = vld [vmem:[%s499 + $0x9c] sm:$0xff]
        %v3735 = vld [vmem:[%s499 + $0xa4] sm:$0xf]
        %v3736 = vld [vmem:[%s499 + $0xa8] sm:$0xff]
        %v3737 = vld [vmem:[%s499 + $0xb0] sm:$0xf]
        %v3738 = vld [vmem:[%s499 + $0xb4] sm:$0xff]
        %v3739 = vld [vmem:[%s499 + $0xbc] sm:$0xf]
        %v3740 = vld [vmem:[%s499 + $0xc0] sm:$0xff]
        %v3741 = vld [vmem:[%s499 + $0xc8] sm:$0xf]
        %v3742 = vld [vmem:[%s499 + $0xcc] sm:$0xff]
        %v3743 = vld [vmem:[%s499 + $0xd4] sm:$0xf]
        %v3744 = vld [vmem:[%s499 + $0xd8] sm:$0xff]
        %v3745 = vld [vmem:[%s499 + $0xe0] sm:$0xf]
        %v3746 = vld [vmem:[%s499 + $0xe4] sm:$0xff]
        %v3747 = vld [vmem:[%s499 + $0xec] sm:$0xf]
        %v3748 = vld [vmem:[%s499 + $0xf0] sm:$0xff]
        %v3749 = vld [vmem:[%s499 + $0xf8] sm:$0xf]
        %v3750 = vld [vmem:[%s499 + $0xfc] sm:$0xff]
        %v3751 = vld [vmem:[%s499 + $0x104] sm:$0xf]
        %v3752 = vld [vmem:[%s499 + $0x108] sm:$0xff]
        %v3753 = vld [vmem:[%s499 + $0x110] sm:$0xf]
        %v3754 = vld [vmem:[%s499 + $0x114] sm:$0xff]
        %v3755 = vld [vmem:[%s499 + $0x11c] sm:$0xf]
        %v3756 = vld [vmem:[%s499 + $0x120] sm:$0xff]
        %v3757 = vld [vmem:[%s499 + $0x128] sm:$0xf]
        %v3758 = vld [vmem:[%s499 + $0x12c] sm:$0xff]
        %v3759 = vld [vmem:[%s499 + $0x134] sm:$0xf]
        %v3760 = vld [vmem:[%s499 + $0x138] sm:$0xff]
        %v3761 = vld [vmem:[%s499 + $0x140] sm:$0xf]
        %v3762 = vld [vmem:[%s499 + $0x144] sm:$0xff]
        %v3763 = vld [vmem:[%s499 + $0x14c] sm:$0xf]
        %v3764 = vld [vmem:[%s499 + $0x150] sm:$0xff]
        %v3765 = vld [vmem:[%s499 + $0x158] sm:$0xf]
        %v3766 = vld [vmem:[%s499 + $0x15c] sm:$0xff]
        %v3767 = vld [vmem:[%s499 + $0x164] sm:$0xf]
        %v3768 = vld [vmem:[%s499 + $0x168] sm:$0xff]
        %v3769 = vld [vmem:[%s499 + $0x170] sm:$0xf]
        %v3770 = vld [vmem:[%s499 + $0x174] sm:$0xff]
        %v3771 = vld [vmem:[%s499 + $0x17c] sm:$0xf]
        %v3772 = vld [vmem:[%s499 + $0x180] sm:$0xff]
        %v3773 = vld [vmem:[%s499 + $0x188] sm:$0xf]
        %v3774 = vld [vmem:[%s499 + $0x18c] sm:$0xff]
        %v3775 = vld [vmem:[%s499 + $0x194] sm:$0xf]
        %v3776 = vld [vmem:[%s499 + $0x198] sm:$0xff]
        %v3777 = vld [vmem:[%s499 + $0x1a0] sm:$0xf]
        %v3778 = vld [vmem:[%s499 + $0x1a4] sm:$0xff]
        %v3779 = vld [vmem:[%s499 + $0x1ac] sm:$0xf]
        %v3780 = vld [vmem:[%s499 + $0x1b0] sm:$0xff]
        %v3781 = vld [vmem:[%s499 + $0x1b8] sm:$0xf]
        %v3782 = vld [vmem:[%s499 + $0x1bc] sm:$0xff]
        %v3783 = vld [vmem:[%s499 + $0x1c4] sm:$0xf]
        %v3784 = vld [vmem:[%s499 + $0x1c8] sm:$0xff]
        %v3785 = vld [vmem:[%s499 + $0x1d0] sm:$0xf]
        %v3786 = vld [vmem:[%s499 + $0x1d4] sm:$0xff]
        %v3787 = vld [vmem:[%s499 + $0x1dc] sm:$0xf]
        %v3788 = vld [vmem:[%s499 + $0x1e0] sm:$0xff]
        %v3789 = vld [vmem:[%s499 + $0x1e8] sm:$0xf]
        %v3790 = vld [vmem:[%s499 + $0x1ec] sm:$0xff]
        %v3791 = vld [vmem:[%s499 + $0x1f4] sm:$0xf]
        %v3792 = vld [vmem:[%s499 + $0x1f8] sm:$0xff]
        %v3793 = vld [vmem:[%s499 + $0x200] sm:$0xf]
        %v3794 = vld [vmem:[%s499 + $0x204] sm:$0xff]
        %v3795 = vld [vmem:[%s499 + $0x20c] sm:$0xf]
        %v3796 = vld [vmem:[%s499 + $0x210] sm:$0xff]
        %v3797 = vld [vmem:[%s499 + $0x218] sm:$0xf]
        %v3798 = vld [vmem:[%s499 + $0x21c] sm:$0xff]
        %v3799 = vld [vmem:[%s499 + $0x224] sm:$0xf]
        %v3800 = vld [vmem:[%s499 + $0x228] sm:$0xff]
        %v3801 = vld [vmem:[%s499 + $0x230] sm:$0xf]
        %v3802 = vld [vmem:[%s499 + $0x234] sm:$0xff]
        %v3803 = vld [vmem:[%s499 + $0x23c] sm:$0xf]
        %v3804 = vpack.c.bf16 %v3464, %v3464
        %v3805 = vpack.c.bf16 %v3465, %v3465
        %v3806 = vpack.c.bf16 %v3466, %v3466
        %v3807 = vld [vmem:[%s499 + $0x240] sm:$0xff]
        %v3808 = vld [vmem:[%s499 + $0x248] sm:$0xf]
        %v3809 = vld [vmem:[%s499 + $0x24c] sm:$0xff]
        %v3810 = vld [vmem:[%s499 + $0x254] sm:$0xf]
        %v3811 = vld [vmem:[%s499 + $0x258] sm:$0xff]
        %v3812 = vld [vmem:[%s499 + $0x260] sm:$0xf]
        %v3813 = vld [vmem:[%s499 + $0x264] sm:$0xff]
        %v3814 = vld [vmem:[%s499 + $0x26c] sm:$0xf]
        %v3815 = vld [vmem:[%s499 + $0x270] sm:$0xff]
        %v3816 = vld [vmem:[%s499 + $0x278] sm:$0xf]
        %v3817 = vld [vmem:[%s499 + $0x27c] sm:$0xff]
        %v3818 = vld [vmem:[%s499 + $0x284] sm:$0xf]
        %v3819 = vld [vmem:[%s499 + $0x288] sm:$0xff]
        %v3820 = vld [vmem:[%s499 + $0x290] sm:$0xf]
        %v3821 = vld [vmem:[%s499 + $0x294] sm:$0xff]
        %v3822 = vld [vmem:[%s499 + $0x29c] sm:$0xf]
        %v3823 = vld [vmem:[%s499 + $0x2a0] sm:$0xff]
        %v3824 = vld [vmem:[%s499 + $0x2a8] sm:$0xf]
        %v3825 = vld [vmem:[%s499 + $0x2ac] sm:$0xff]
        %v3826 = vld [vmem:[%s499 + $0x2b4] sm:$0xf]
        %v3827 = vld [vmem:[%s499 + $0x2b8] sm:$0xff]
        %v3828 = vld [vmem:[%s499 + $0x2c0] sm:$0xf]
        %v3829 = vld [vmem:[%s499 + $0x2c4] sm:$0xff]
        %v3830 = vld [vmem:[%s499 + $0x2cc] sm:$0xf]
        %v3831 = vld [vmem:[%s499 + $0x2d0] sm:$0xff]
        %v3832 = vld [vmem:[%s499 + $0x2d8] sm:$0xf]
        %v3833 = vld [vmem:[%s499 + $0x2dc] sm:$0xff]
        %v3834 = vld [vmem:[%s499 + $0x2e4] sm:$0xf]
        %v3835 = vld [vmem:[%s499 + $0x2e8] sm:$0xff]
        %v3836 = vld [vmem:[%s499 + $0x2f0] sm:$0xf]
        %v3837 = vld [vmem:[%s499 + $0x2f4] sm:$0xff]
        %v3838 = vld [vmem:[%s499 + $0x2fc] sm:$0xf]
        %v3839 = vld [vmem:[%s499 + $0x300] sm:$0xff]
        %v3840 = vld [vmem:[%s499 + $0x308] sm:$0xf]
        %v3841 = vld [vmem:[%s499 + $0x30c] sm:$0xff]
        %v3842 = vld [vmem:[%s499 + $0x314] sm:$0xf]
        %v3843 = vld [vmem:[%s499 + $0x318] sm:$0xff]
        %v3844 = vld [vmem:[%s499 + $0x320] sm:$0xf]
        %v3845 = vld [vmem:[%s499 + $0x324] sm:$0xff]
        %v3846 = vld [vmem:[%s499 + $0x32c] sm:$0xf]
        %v3847 = vld [vmem:[%s499 + $0x330] sm:$0xff]
        %v3848 = vld [vmem:[%s499 + $0x338] sm:$0xf]
        %v3849 = vld [vmem:[%s499 + $0x33c] sm:$0xff]
        %v3850 = vld [vmem:[%s499 + $0x344] sm:$0xf]
        %v3851 = vld [vmem:[%s499 + $0x348] sm:$0xff]
        %v3852 = vld [vmem:[%s499 + $0x350] sm:$0xf]
        %v3853 = vld [vmem:[%s499 + $0x354] sm:$0xff]
        %v3854 = vld [vmem:[%s499 + $0x35c] sm:$0xf]
        %v3855 = vld [vmem:[%s499 + $0x360] sm:$0xff]
        %v3856 = vld [vmem:[%s499 + $0x368] sm:$0xf]
        %v3857 = vld [vmem:[%s499 + $0x36c] sm:$0xff]
        %v3858 = vld [vmem:[%s499 + $0x374] sm:$0xf]
        %v3859 = vld [vmem:[%s499 + $0x378] sm:$0xff]
        %v3860 = vld [vmem:[%s499 + $0x380] sm:$0xf]
        %v3861 = vld [vmem:[%s499 + $0x384] sm:$0xff]
        %v3862 = vld [vmem:[%s499 + $0x38c] sm:$0xf]
        %v3863 = vld [vmem:[%s499 + $0x390] sm:$0xff]
        %v3864 = vld [vmem:[%s499 + $0x398] sm:$0xf]
        %v3865 = vld [vmem:[%s499 + $0x39c] sm:$0xff]
        %v3866 = vld [vmem:[%s499 + $0x3a4] sm:$0xf]
        %v3867 = vld [vmem:[%s499 + $0x3a8] sm:$0xff]
        %v3868 = vld [vmem:[%s499 + $0x3b0] sm:$0xf]
        %v3869 = vld [vmem:[%s499 + $0x3b4] sm:$0xff]
        %v3870 = vld [vmem:[%s499 + $0x3bc] sm:$0xf]
        %v3871 = vld [vmem:[%s499 + $0x3c0] sm:$0xff]
        %v3872 = vld [vmem:[%s499 + $0x3c8] sm:$0xf]
        %v3873 = vld [vmem:[%s499 + $0x3cc] sm:$0xff]
        %v3874 = vld [vmem:[%s499 + $0x3d4] sm:$0xf]
        %v3875 = vld [vmem:[%s499 + $0x3d8] sm:$0xff]
        %v3876 = vld [vmem:[%s499 + $0x3e0] sm:$0xf]
        %v3877 = vld [vmem:[%s499 + $0x3e4] sm:$0xff]
        %v3878 = vld [vmem:[%s499 + $0x3ec] sm:$0xf]
        %v3879 = vld [vmem:[%s499 + $0x3f0] sm:$0xff]
        %v3880 = vld [vmem:[%s499 + $0x3f8] sm:$0xf]
        %v3881 = vld [vmem:[%s499 + $0x3fc] sm:$0xff]
        %v3882 = vld [vmem:[%s499 + $0x404] sm:$0xf]
        %v3883 = vld [vmem:[%s499 + $0x408] sm:$0xff]
        %v3884 = vld [vmem:[%s499 + $0x410] sm:$0xf]
        %v3885 = vld [vmem:[%s499 + $0x414] sm:$0xff]
        %v3886 = vld [vmem:[%s499 + $0x41c] sm:$0xf]
        %v3887 = vld [vmem:[%s499 + $0x420] sm:$0xff]
        %v3888 = vld [vmem:[%s499 + $0x428] sm:$0xf]
        %v3889 = vld [vmem:[%s499 + $0x42c] sm:$0xff]
        %v3890 = vld [vmem:[%s499 + $0x434] sm:$0xf]
        %v3891 = vld [vmem:[%s499 + $0x438] sm:$0xff]
        %v3892 = vld [vmem:[%s499 + $0x440] sm:$0xf]
        %v3893 = vld [vmem:[%s499 + $0x444] sm:$0xff]
        %v3894 = vld [vmem:[%s499 + $0x44c] sm:$0xf]
        %v3895 = vld [vmem:[%s499 + $0x450] sm:$0xff]
        %v3896 = vld [vmem:[%s499 + $0x458] sm:$0xf]
        %v3897 = vld [vmem:[%s499 + $0x45c] sm:$0xff]
        %v3898 = vld [vmem:[%s499 + $0x464] sm:$0xf]
        %v3899 = vld [vmem:[%s499 + $0x468] sm:$0xff]
        %v3900 = vld [vmem:[%s499 + $0x470] sm:$0xf]
        %v3901 = vld [vmem:[%s499 + $0x474] sm:$0xff]
        %v3902 = vld [vmem:[%s499 + $0x47c] sm:$0xf]
        %v3903 = vpack.c.bf16 %v3634, %v3634
        %v3904 = vpack.c.bf16 %v3636, %v3636
        %v3905 = vpack.c.bf16 %v3705, %v3705
        %v4002 = vunpack.c.l.b16 %v3807
        %v4003 = vunpack.c.h.b16 %v3807
        %v4004 = vunpack.c.l.b16 %v3808
        %v4005 = vunpack.c.l.b16 %v3809
        %v4006 = vunpack.c.h.b16 %v3809
        %v4007 = vunpack.c.l.b16 %v3810
        %v4008 = vunpack.c.l.b16 %v3811
        %v4009 = vunpack.c.h.b16 %v3811
        %v4010 = vunpack.c.l.b16 %v3812
        %v4011 = vunpack.c.l.b16 %v3813
        %v4012 = vunpack.c.h.b16 %v3813
        %v4013 = vunpack.c.l.b16 %v3814
        %v4014 = vunpack.c.l.b16 %v3815
        %v4015 = vunpack.c.h.b16 %v3815
        %v4016 = vunpack.c.l.b16 %v3816
        %v4017 = vunpack.c.l.b16 %v3817
        %v4018 = vunpack.c.h.b16 %v3817
        %v4019 = vunpack.c.l.b16 %v3818
        %v4020 = vunpack.c.l.b16 %v3819
        %v4021 = vunpack.c.h.b16 %v3819
        %v4022 = vunpack.c.l.b16 %v3820
        %v4023 = vunpack.c.l.b16 %v3821
        %v4024 = vunpack.c.h.b16 %v3821
        %v4025 = vunpack.c.l.b16 %v3822
        %v4026 = vunpack.c.l.b16 %v3823
        %v4027 = vunpack.c.h.b16 %v3823
        %v4028 = vunpack.c.l.b16 %v3824
        %v4029 = vunpack.c.l.b16 %v3825
        %v4030 = vunpack.c.h.b16 %v3825
        %v4031 = vunpack.c.l.b16 %v3826
        %v4032 = vunpack.c.l.b16 %v3827
        %v4033 = vunpack.c.h.b16 %v3827
        %v4034 = vunpack.c.l.b16 %v3828
        %v4035 = vunpack.c.l.b16 %v3829
        %v4036 = vunpack.c.h.b16 %v3829
        %v4037 = vunpack.c.l.b16 %v3830
        %v4038 = vunpack.c.l.b16 %v3831
        %v4039 = vunpack.c.h.b16 %v3831
        %v4040 = vunpack.c.l.b16 %v3832
        %v4041 = vunpack.c.l.b16 %v3833
        %v4042 = vunpack.c.h.b16 %v3833
        %v4043 = vunpack.c.l.b16 %v3834
        %v4044 = vunpack.c.l.b16 %v3835
        %v4045 = vunpack.c.h.b16 %v3835
        %v4046 = vunpack.c.l.b16 %v3836
        %v4047 = vunpack.c.l.b16 %v3837
        %v4048 = vunpack.c.h.b16 %v3837
        %v4049 = vunpack.c.l.b16 %v3838
        %v4050 = vunpack.c.l.b16 %v3839
        %v4051 = vunpack.c.h.b16 %v3839
        %v4052 = vunpack.c.l.b16 %v3840
        %v4053 = vunpack.c.l.b16 %v3841
        %v4054 = vunpack.c.h.b16 %v3841
        %v4055 = vunpack.c.l.b16 %v3842
        %v4056 = vunpack.c.l.b16 %v3843
        %v4057 = vunpack.c.h.b16 %v3843
        %v4058 = vunpack.c.l.b16 %v3844
        %v4059 = vunpack.c.l.b16 %v3845
        %v4060 = vunpack.c.h.b16 %v3845
        %v4061 = vunpack.c.l.b16 %v3846
        %v4062 = vunpack.c.l.b16 %v3847
        %v4063 = vunpack.c.h.b16 %v3847
        %v4064 = vunpack.c.l.b16 %v3848
        %v4065 = vunpack.c.l.b16 %v3849
        %v4066 = vunpack.c.h.b16 %v3849
        %v4067 = vunpack.c.l.b16 %v3850
        %v4068 = vunpack.c.l.b16 %v3851
        %v4069 = vunpack.c.h.b16 %v3851
        %v4070 = vunpack.c.l.b16 %v3852
        %v4071 = vunpack.c.l.b16 %v3853
        %v4072 = vunpack.c.h.b16 %v3853
        %v4073 = vunpack.c.l.b16 %v3854
        %v4074 = vunpack.c.l.b16 %v3855
        %v4075 = vunpack.c.h.b16 %v3855
        %v4076 = vunpack.c.l.b16 %v3856
        %v4077 = vunpack.c.l.b16 %v3857
        %v4078 = vunpack.c.h.b16 %v3857
        %v4079 = vunpack.c.l.b16 %v3858
        %v4080 = vunpack.c.l.b16 %v3859
        %v4081 = vunpack.c.h.b16 %v3859
        %v4082 = vunpack.c.l.b16 %v3860
        %v4083 = vunpack.c.l.b16 %v3861
        %v4084 = vunpack.c.h.b16 %v3861
        %v4085 = vunpack.c.l.b16 %v3862
        %v4086 = vunpack.c.l.b16 %v3863
        %v4087 = vunpack.c.h.b16 %v3863
        %v4088 = vunpack.c.l.b16 %v3864
        %v4089 = vunpack.c.l.b16 %v3865
        %v4090 = vunpack.c.h.b16 %v3865
        %v4091 = vunpack.c.l.b16 %v3866
        %v4092 = vunpack.c.l.b16 %v3867
        %v4093 = vunpack.c.h.b16 %v3867
        %v4094 = vunpack.c.l.b16 %v3868
        %v4095 = vunpack.c.l.b16 %v3869
        %v4096 = vunpack.c.h.b16 %v3869
        %v4097 = vunpack.c.l.b16 %v3870
        %v4098 = vunpack.c.l.b16 %v3871
        %v4099 = vunpack.c.h.b16 %v3871
        %v4100 = vunpack.c.l.b16 %v3872
        %v4101 = vunpack.c.l.b16 %v3873
        %v4102 = vunpack.c.h.b16 %v3873
        %v4103 = vunpack.c.l.b16 %v3874
        %v4104 = vunpack.c.l.b16 %v3875
        %v4105 = vunpack.c.h.b16 %v3875
        %v4106 = vunpack.c.l.b16 %v3876
        %v4107 = vunpack.c.l.b16 %v3877
        %v4108 = vunpack.c.h.b16 %v3877
        %v4109 = vunpack.c.l.b16 %v3878
        %v4110 = vunpack.c.l.b16 %v3879
        %v4111 = vunpack.c.h.b16 %v3879
        %v4112 = vunpack.c.l.b16 %v3880
        %v4113 = vunpack.c.l.b16 %v3881
        %v4114 = vunpack.c.h.b16 %v3881
        %v4115 = vunpack.c.l.b16 %v3882
        %v4116 = vunpack.c.l.b16 %v3883
        %v4117 = vunpack.c.h.b16 %v3883
        %v4118 = vunpack.c.l.b16 %v3884
        %v4119 = vunpack.c.l.b16 %v3885
        %v4120 = vunpack.c.h.b16 %v3885
        %v4121 = vunpack.c.l.b16 %v3886
        %v4122 = vunpack.c.l.b16 %v3887
        %v4123 = vunpack.c.h.b16 %v3887
        %v4124 = vunpack.c.l.b16 %v3888
        %v4125 = vunpack.c.l.b16 %v3889
        %v4126 = vunpack.c.h.b16 %v3889
        %v4127 = vunpack.c.l.b16 %v3890
        %v4128 = vunpack.c.l.b16 %v3891
        %v4129 = vunpack.c.h.b16 %v3891
        %v4130 = vunpack.c.l.b16 %v3892
        %v4131 = vunpack.c.l.b16 %v3893
        %v4132 = vunpack.c.h.b16 %v3893
        %v4133 = vunpack.c.l.b16 %v3894
        %v4134 = vunpack.c.l.b16 %v3895
        %v4135 = vunpack.c.h.b16 %v3895
        %v4136 = vunpack.c.l.b16 %v3896
        %v4137 = vunpack.c.l.b16 %v3897
        %v4138 = vunpack.c.h.b16 %v3897
        %v4139 = vunpack.c.l.b16 %v3898
        %v4140 = vunpack.c.l.b16 %v3899
        %v4141 = vunpack.c.h.b16 %v3899
        %v4142 = vunpack.c.l.b16 %v3900
        %v4143 = vunpack.c.l.b16 %v3901
        %v4144 = vunpack.c.h.b16 %v3901
        %v4145 = vunpack.c.l.b16 %v3902
        %v4146 = vpack.c.b16 %v4005, %v4002
        %v4147 = vpack.c.b16 %v4006, %v4003
        %v4148 = vpack.c.b16 %v4007, %v4004
        %v4149 = vpack.c.b16 %v4011, %v4008
        %v4150 = vpack.c.b16 %v4012, %v4009
        %v4151 = vpack.c.b16 %v4013, %v4010
        %v4152 = vpack.c.b16 %v4017, %v4014
        %v4153 = vpack.c.b16 %v4018, %v4015
        %v4154 = vpack.c.b16 %v4019, %v4016
        %v4155 = vpack.c.b16 %v4023, %v4020
        %v4156 = vpack.c.b16 %v4024, %v4021
        %v4157 = vpack.c.b16 %v4025, %v4022
        %v4158 = vpack.c.b16 %v4029, %v4026
        %v4159 = vpack.c.b16 %v4030, %v4027
        %v4160 = vpack.c.b16 %v4031, %v4028
        %v4161 = vpack.c.b16 %v4035, %v4032
        %v4162 = vpack.c.b16 %v4036, %v4033
        %v4163 = vpack.c.b16 %v4037, %v4034
        %v4164 = vpack.c.b16 %v4041, %v4038
        %v4165 = vpack.c.b16 %v4042, %v4039
        %v4166 = vpack.c.b16 %v4043, %v4040
        %v4167 = vpack.c.b16 %v4047, %v4044
        %v4168 = vpack.c.b16 %v4048, %v4045
        %v4169 = vpack.c.b16 %v4049, %v4046
        %v4170 = vpack.c.b16 %v4053, %v4050
        %v4171 = vpack.c.b16 %v4054, %v4051
        %v4172 = vpack.c.b16 %v4055, %v4052
        %v4173 = vpack.c.b16 %v4059, %v4056
        %v4174 = vpack.c.b16 %v4060, %v4057
        %v4175 = vpack.c.b16 %v4061, %v4058
        %v4176 = vpack.c.b16 %v4065, %v4062
        %v4177 = vpack.c.b16 %v4066, %v4063
        %v4178 = vpack.c.b16 %v4067, %v4064
        %v4179 = vpack.c.b16 %v4071, %v4068
        %v4180 = vpack.c.b16 %v4072, %v4069
        %v4181 = vpack.c.b16 %v4073, %v4070
        %v4182 = vpack.c.b16 %v4077, %v4074
        %v4183 = vpack.c.b16 %v4078, %v4075
        %v4184 = vpack.c.b16 %v4079, %v4076
        %v4185 = vpack.c.b16 %v4083, %v4080
        %v4186 = vpack.c.b16 %v4084, %v4081
        %v4187 = vpack.c.b16 %v4085, %v4082
        %v4188 = vpack.c.b16 %v4089, %v4086
        %v4189 = vpack.c.b16 %v4090, %v4087
        %v4190 = vpack.c.b16 %v4091, %v4088
        %v4191 = vpack.c.b16 %v4095, %v4092
        %v4192 = vpack.c.b16 %v4096, %v4093
        %v4193 = vpack.c.b16 %v4097, %v4094
        %v4194 = vpack.c.b16 %v4101, %v4098
        %v4195 = vpack.c.b16 %v4102, %v4099
        %v4196 = vpack.c.b16 %v4103, %v4100
        %v4197 = vpack.c.b16 %v4107, %v4104
        %v4198 = vpack.c.b16 %v4108, %v4105
        %v4199 = vpack.c.b16 %v4109, %v4106
        %v4200 = vpack.c.b16 %v4113, %v4110
        %v4201 = vpack.c.b16 %v4114, %v4111
        %v4202 = vpack.c.b16 %v4115, %v4112
        %v4203 = vpack.c.b16 %v4119, %v4116
        %v4204 = vpack.c.b16 %v4120, %v4117
        %v4205 = vpack.c.b16 %v4121, %v4118
        %v4206 = vpack.c.b16 %v4125, %v4122
        %v4207 = vpack.c.b16 %v4126, %v4123
        %v4208 = vpack.c.b16 %v4127, %v4124
        %v4209 = vpack.c.b16 %v4131, %v4128
        %v4210 = vpack.c.b16 %v4132, %v4129
        %v4211 = vpack.c.b16 %v4133, %v4130
        %v4212 = vpack.c.b16 %v4137, %v4134
        %v4213 = vpack.c.b16 %v4138, %v4135
        %v4214 = vpack.c.b16 %v4139, %v4136
        %v4215 = vpack.c.b16 %v4143, %v4140
        %v4216 = vpack.c.b16 %v4144, %v4141
        %v4217 = vpack.c.b16 %v4145, %v4142
        %4290 = vmatprep.subr.bf16.mxu0 %v4147
        %4291 = vmatpush1.bf16.msra.mxu0 %v4146
        %4292 = vmatprep.subr.bf16.mxu0 %v4150
        %4293 = vmatpush1.bf16.msra.mxu0 %v4149
        %4294 = vmatprep.subr.bf16.mxu0 %v4153
        %4295 = vmatpush1.bf16.msra.mxu0 %v4152
        %4296 = vmatprep.subr.bf16.mxu0 %v4156
        %4297 = vmatpush1.bf16.msra.mxu0 %v4155
        %4298 = vmatprep.subr.bf16.mxu0 %v4159
        %4299 = vmatpush1.bf16.msra.mxu0 %v4158
        %4300 = vmatprep.subr.bf16.mxu0 %v4162
        %4301 = vmatpush1.bf16.msra.mxu0 %v4161
        %4302 = vmatprep.subr.bf16.mxu0 %v4165
        %4303 = vmatpush1.bf16.msra.mxu0 %v4164
        %4304 = vmatprep.subr.bf16.mxu0 %v4168
        %4305 = vmatpush1.bf16.msra.mxu0 %v4167
        %4306 = vmatprep.subr.bf16.mxu0 %v4171
        %4307 = vmatpush1.bf16.msra.mxu0 %v4170
        %4308 = vmatprep.subr.bf16.mxu0 %v4174
        %4309 = vmatpush1.bf16.msra.mxu0 %v4173
        %4310 = vmatprep.subr.bf16.mxu0 %v4177
        %4311 = vmatpush1.bf16.msra.mxu0 %v4176
        %4312 = vmatprep.subr.bf16.mxu0 %v4180
        %4313 = vmatpush1.bf16.msra.mxu0 %v4179
        %4314 = vmatprep.subr.bf16.mxu0 %v4183
        %4315 = vmatpush1.bf16.msra.mxu0 %v4182
        %4316 = vmatprep.subr.bf16.mxu0 %v4186
        %4317 = vmatpush1.bf16.msra.mxu0 %v4185
        %4318 = vmatprep.subr.bf16.mxu0 %v4189
        %4319 = vmatpush1.bf16.msra.mxu0 %v4188
        %4320 = vmatprep.subr.bf16.mxu0 %v4192
        %4321 = vmatpush1.bf16.msra.mxu0 %v4191
        %4322 = vmatprep.mubr.bf16.mxu0 %v3904
        %4323 = vmatmul.mubr.bf16.gmra.mrb[0].mxu0 %v3903
        %v4324 = vpop.f32.mrb[0].mxu0
        %v4325 = vadd.f32 0.0, %v4324
        %v4326 = vpop.f32.mrb[0].mxu0
        %v4327 = vadd.f32 0.0, %v4326
        %v4328 = vpop.f32.mrb[0].mxu0
        %v4329 = vpop.f32.mrb[0].mxu0
        %4330 = vdwg.mxu0
        %4331 = vmatprep.subr.bf16.mxu0 %v4195
        %4332 = vmatpush1.bf16.msra.mxu0 %v4194
        %4333 = vmatprep.subr.bf16.mxu0 %v4198
        %4334 = vmatpush1.bf16.msra.mxu0 %v4197
        %4335 = vmatprep.subr.bf16.mxu0 %v4201
        %4336 = vmatpush1.bf16.msra.mxu0 %v4200
        %4337 = vmatprep.subr.bf16.mxu0 %v4204
        %4338 = vmatpush1.bf16.msra.mxu0 %v4203
        %4339 = vmatprep.subr.bf16.mxu0 %v4207
        %4340 = vmatpush1.bf16.msra.mxu0 %v4206
        %4341 = vmatprep.subr.bf16.mxu0 %v4210
        %4342 = vmatpush1.bf16.msra.mxu0 %v4209
        %4343 = vmatprep.subr.bf16.mxu0 %v4213
        %4344 = vmatpush1.bf16.msra.mxu0 %v4212
        %4345 = vmatprep.subr.bf16.mxu0 %v4216
        %4346 = vmatpush1.bf16.msra.mxu0 %v4215
        %4347 = vmatprep.subr.bf16.mxu0 0
        %4348 = vmatpush1.bf16.msra.mxu0 0
        %4349 = vmatprep.subr.bf16.mxu0 0
        %4350 = vmatpush1.bf16.msra.mxu0 0
        %4351 = vmatprep.subr.bf16.mxu0 0
        %4352 = vmatpush1.bf16.msra.mxu0 0
        %4353 = vmatprep.subr.bf16.mxu0 0
        %4354 = vmatpush1.bf16.msra.mxu0 0
        %4355 = vmatprep.subr.bf16.mxu0 0
        %4356 = vmatpush1.bf16.msra.mxu0 0
        %4357 = vmatprep.subr.bf16.mxu0 0
        %4358 = vmatpush1.bf16.msra.mxu0 0
        %4359 = vmatprep.subr.bf16.mxu0 0
        %4360 = vmatpush1.bf16.msra.mxu0 0
        %4361 = vmatprep.subr.bf16.mxu0 0
        %4362 = vmatpush1.bf16.msra.mxu0 0
        %4363 = vmatprep.mubr.bf16.mxu0 0
        %4364 = vmatmul.mubr.bf16.gmra.mrb[0].mxu0 %v3905
        %v4365 = vpop.f32.mrb[0].mxu0
        %v4366 = vadd.f32 %v4325, %v4365
        %v4367 = vpop.f32.mrb[0].mxu0
        %v4368 = vadd.f32 %v4327, %v4367
        %v4369 = vpop.f32.mrb[0].mxu0
        %v4370 = vpop.f32.mrb[0].mxu0
        %4371 = vdwg.mxu0
        %4372 = vmatprep.subr.bf16.mxu0 0
        %4373 = vmatpush1.bf16.msra.mxu0 %v4148
        %4374 = vmatprep.subr.bf16.mxu0 0
        %4375 = vmatpush1.bf16.msra.mxu0 %v4151
        %4376 = vmatprep.subr.bf16.mxu0 0
        %4377 = vmatpush1.bf16.msra.mxu0 %v4154
        %4378 = vmatprep.subr.bf16.mxu0 0
        %4379 = vmatpush1.bf16.msra.mxu0 %v4157
        %4380 = vmatprep.subr.bf16.mxu0 0
        %4381 = vmatpush1.bf16.msra.mxu0 %v4160
        %4382 = vmatprep.subr.bf16.mxu0 0
        %4383 = vmatpush1.bf16.msra.mxu0 %v4163
        %4384 = vmatprep.subr.bf16.mxu0 0
        %4385 = vmatpush1.bf16.msra.mxu0 %v4166
        %4386 = vmatprep.subr.bf16.mxu0 0
        %4387 = vmatpush1.bf16.msra.mxu0 %v4169
        %4388 = vmatprep.subr.bf16.mxu0 0
        %4389 = vmatpush1.bf16.msra.mxu0 %v4172
        %4390 = vmatprep.subr.bf16.mxu0 0
        %4391 = vmatpush1.bf16.msra.mxu0 %v4175
        %4392 = vmatprep.subr.bf16.mxu0 0
        %4393 = vmatpush1.bf16.msra.mxu0 %v4178
        %4394 = vmatprep.subr.bf16.mxu0 0
        %4395 = vmatpush1.bf16.msra.mxu0 %v4181
        %4396 = vmatprep.subr.bf16.mxu0 0
        %4397 = vmatpush1.bf16.msra.mxu0 %v4184
        %4398 = vmatprep.subr.bf16.mxu0 0
        %4399 = vmatpush1.bf16.msra.mxu0 %v4187
        %4400 = vmatprep.subr.bf16.mxu0 0
        %4401 = vmatpush1.bf16.msra.mxu0 %v4190
        %4402 = vmatprep.subr.bf16.mxu0 0
        %4403 = vmatpush1.bf16.msra.mxu0 %v4193
        %4404 = vmatprep.mubr.bf16.mxu0 %v3904
        %4405 = vmatmul.mubr.bf16.gmra.mrb[0].mxu0 %v3903
        %v4406 = vpop.f32.mrb[0].mxu0
        %v4407 = vadd.f32 0.0, %v4406
        %v4408 = vpop.f32.mrb[0].mxu0
        %v4409 = vpop.f32.mrb[0].mxu0
        %v4410 = vpop.f32.mrb[0].mxu0
        %4411 = vdwg.mxu0
        %4412 = vmatprep.subr.bf16.mxu0 0
        %4413 = vmatpush1.bf16.msra.mxu0 %v4196
        %4414 = vmatprep.subr.bf16.mxu0 0
        %4415 = vmatpush1.bf16.msra.mxu0 %v4199
        %4416 = vmatprep.subr.bf16.mxu0 0
        %4417 = vmatpush1.bf16.msra.mxu0 %v4202
        %4418 = vmatprep.subr.bf16.mxu0 0
        %4419 = vmatpush1.bf16.msra.mxu0 %v4205
        %4420 = vmatprep.subr.bf16.mxu0 0
        %4421 = vmatpush1.bf16.msra.mxu0 %v4208
        %4422 = vmatprep.subr.bf16.mxu0 0
        %4423 = vmatpush1.bf16.msra.mxu0 %v4211
        %4424 = vmatprep.subr.bf16.mxu0 0
        %4425 = vmatpush1.bf16.msra.mxu0 %v4214
        %4426 = vmatprep.subr.bf16.mxu0 0
        %4427 = vmatpush1.bf16.msra.mxu0 %v4217
        %4428 = vmatprep.subr.bf16.mxu0 0
        %4429 = vmatpush1.bf16.msra.mxu0 0
        %4430 = vmatprep.subr.bf16.mxu0 0
        %4431 = vmatpush1.bf16.msra.mxu0 0
        %4432 = vmatprep.subr.bf16.mxu0 0
        %4433 = vmatpush1.bf16.msra.mxu0 0
        %4434 = vmatprep.subr.bf16.mxu0 0
        %4435 = vmatpush1.bf16.msra.mxu0 0
        %4436 = vmatprep.subr.bf16.mxu0 0
        %4437 = vmatpush1.bf16.msra.mxu0 0
        %4438 = vmatprep.subr.bf16.mxu0 0
        %4439 = vmatpush1.bf16.msra.mxu0 0
        %4440 = vmatprep.subr.bf16.mxu0 0
        %4441 = vmatpush1.bf16.msra.mxu0 0
        %4442 = vmatprep.subr.bf16.mxu0 0
        %4443 = vmatpush1.bf16.msra.mxu0 0
        %4444 = vmatprep.mubr.bf16.mxu0 0
        %4445 = vmatmul.mubr.bf16.gmra.mrb[0].mxu0 %v3905
        %v4446 = vpop.f32.mrb[0].mxu0
        %v4447 = vadd.f32 %v4407, %v4446
        %v4448 = vpop.f32.mrb[0].mxu0
        %v4449 = vpop.f32.mrb[0].mxu0
        %v4450 = vpop.f32.mrb[0].mxu0
        %4451 = vdwg.mxu0
        %v4548 = vunpack.c.l.b16 %v3708
        %v4549 = vunpack.c.h.b16 %v3708
        %v4550 = vunpack.c.l.b16 %v3709
        %v4551 = vunpack.c.l.b16 %v3710
        %v4552 = vunpack.c.h.b16 %v3710
        %v4553 = vunpack.c.l.b16 %v3711
        %v4554 = vunpack.c.l.b16 %v3712
        %v4555 = vunpack.c.h.b16 %v3712
        %v4556 = vunpack.c.l.b16 %v3713
        %v4557 = vunpack.c.l.b16 %v3714
        %v4558 = vunpack.c.h.b16 %v3714
        %v4559 = vunpack.c.l.b16 %v3715
        %v4560 = vunpack.c.l.b16 %v3716
        %v4561 = vunpack.c.h.b16 %v3716
        %v4562 = vunpack.c.l.b16 %v3717
        %v4563 = vunpack.c.l.b16 %v3718
        %v4564 = vunpack.c.h.b16 %v3718
        %v4565 = vunpack.c.l.b16 %v3719
        %v4566 = vunpack.c.l.b16 %v3720
        %v4567 = vunpack.c.h.b16 %v3720
        %v4568 = vunpack.c.l.b16 %v3721
        %v4569 = vunpack.c.l.b16 %v3722
        %v4570 = vunpack.c.h.b16 %v3722
        %v4571 = vunpack.c.l.b16 %v3723
        %v4572 = vunpack.c.l.b16 %v3724
        %v4573 = vunpack.c.h.b16 %v3724
        %v4574 = vunpack.c.l.b16 %v3725
        %v4575 = vunpack.c.l.b16 %v3726
        %v4576 = vunpack.c.h.b16 %v3726
        %v4577 = vunpack.c.l.b16 %v3727
        %v4578 = vunpack.c.l.b16 %v3728
        %v4579 = vunpack.c.h.b16 %v3728
        %v4580 = vunpack.c.l.b16 %v3729
        %v4581 = vunpack.c.l.b16 %v3730
        %v4582 = vunpack.c.h.b16 %v3730
        %v4583 = vunpack.c.l.b16 %v3731
        %v4584 = vunpack.c.l.b16 %v3732
        %v4585 = vunpack.c.h.b16 %v3732
        %v4586 = vunpack.c.l.b16 %v3733
        %v4587 = vunpack.c.l.b16 %v3734
        %v4588 = vunpack.c.h.b16 %v3734
        %v4589 = vunpack.c.l.b16 %v3735
        %v4590 = vunpack.c.l.b16 %v3736
        %v4591 = vunpack.c.h.b16 %v3736
        %v4592 = vunpack.c.l.b16 %v3737
        %v4593 = vunpack.c.l.b16 %v3738
        %v4594 = vunpack.c.h.b16 %v3738
        %v4595 = vunpack.c.l.b16 %v3739
        %v4596 = vunpack.c.l.b16 %v3740
        %v4597 = vunpack.c.h.b16 %v3740
        %v4598 = vunpack.c.l.b16 %v3741
        %v4599 = vunpack.c.l.b16 %v3742
        %v4600 = vunpack.c.h.b16 %v3742
        %v4601 = vunpack.c.l.b16 %v3743
        %v4602 = vunpack.c.l.b16 %v3744
        %v4603 = vunpack.c.h.b16 %v3744
        %v4604 = vunpack.c.l.b16 %v3745
        %v4605 = vunpack.c.l.b16 %v3746
        %v4606 = vunpack.c.h.b16 %v3746
        %v4607 = vunpack.c.l.b16 %v3747
        %v4608 = vunpack.c.l.b16 %v3748
        %v4609 = vunpack.c.h.b16 %v3748
        %v4610 = vunpack.c.l.b16 %v3749
        %v4611 = vunpack.c.l.b16 %v3750
        %v4612 = vunpack.c.h.b16 %v3750
        %v4613 = vunpack.c.l.b16 %v3751
        %v4614 = vunpack.c.l.b16 %v3752
        %v4615 = vunpack.c.h.b16 %v3752
        %v4616 = vunpack.c.l.b16 %v3753
        %v4617 = vunpack.c.l.b16 %v3754
        %v4618 = vunpack.c.h.b16 %v3754
        %v4619 = vunpack.c.l.b16 %v3755
        %v4620 = vunpack.c.l.b16 %v3756
        %v4621 = vunpack.c.h.b16 %v3756
        %v4622 = vunpack.c.l.b16 %v3757
        %v4623 = vunpack.c.l.b16 %v3758
        %v4624 = vunpack.c.h.b16 %v3758
        %v4625 = vunpack.c.l.b16 %v3759
        %v4626 = vunpack.c.l.b16 %v3760
        %v4627 = vunpack.c.h.b16 %v3760
        %v4628 = vunpack.c.l.b16 %v3761
        %v4629 = vunpack.c.l.b16 %v3762
        %v4630 = vunpack.c.h.b16 %v3762
        %v4631 = vunpack.c.l.b16 %v3763
        %v4632 = vunpack.c.l.b16 %v3764
        %v4633 = vunpack.c.h.b16 %v3764
        %v4634 = vunpack.c.l.b16 %v3765
        %v4635 = vunpack.c.l.b16 %v3766
        %v4636 = vunpack.c.h.b16 %v3766
        %v4637 = vunpack.c.l.b16 %v3767
        %v4638 = vunpack.c.l.b16 %v3768
        %v4639 = vunpack.c.h.b16 %v3768
        %v4640 = vunpack.c.l.b16 %v3769
        %v4641 = vunpack.c.l.b16 %v3770
        %v4642 = vunpack.c.h.b16 %v3770
        %v4643 = vunpack.c.l.b16 %v3771
        %v4644 = vunpack.c.l.b16 %v3772
        %v4645 = vunpack.c.h.b16 %v3772
        %v4646 = vunpack.c.l.b16 %v3773
        %v4647 = vunpack.c.l.b16 %v3774
        %v4648 = vunpack.c.h.b16 %v3774
        %v4649 = vunpack.c.l.b16 %v3775
        %v4650 = vunpack.c.l.b16 %v3776
        %v4651 = vunpack.c.h.b16 %v3776
        %v4652 = vunpack.c.l.b16 %v3777
        %v4653 = vunpack.c.l.b16 %v3778
        %v4654 = vunpack.c.h.b16 %v3778
        %v4655 = vunpack.c.l.b16 %v3779
        %v4656 = vunpack.c.l.b16 %v3780
        %v4657 = vunpack.c.h.b16 %v3780
        %v4658 = vunpack.c.l.b16 %v3781
        %v4659 = vunpack.c.l.b16 %v3782
        %v4660 = vunpack.c.h.b16 %v3782
        %v4661 = vunpack.c.l.b16 %v3783
        %v4662 = vunpack.c.l.b16 %v3784
        %v4663 = vunpack.c.h.b16 %v3784
        %v4664 = vunpack.c.l.b16 %v3785
        %v4665 = vunpack.c.l.b16 %v3786
        %v4666 = vunpack.c.h.b16 %v3786
        %v4667 = vunpack.c.l.b16 %v3787
        %v4668 = vunpack.c.l.b16 %v3788
        %v4669 = vunpack.c.h.b16 %v3788
        %v4670 = vunpack.c.l.b16 %v3789
        %v4671 = vunpack.c.l.b16 %v3790
        %v4672 = vunpack.c.h.b16 %v3790
        %v4673 = vunpack.c.l.b16 %v3791
        %v4674 = vunpack.c.l.b16 %v3792
        %v4675 = vunpack.c.h.b16 %v3792
        %v4676 = vunpack.c.l.b16 %v3793
        %v4677 = vunpack.c.l.b16 %v3794
        %v4678 = vunpack.c.h.b16 %v3794
        %v4679 = vunpack.c.l.b16 %v3795
        %v4680 = vunpack.c.l.b16 %v3796
        %v4681 = vunpack.c.h.b16 %v3796
        %v4682 = vunpack.c.l.b16 %v3797
        %v4683 = vunpack.c.l.b16 %v3798
        %v4684 = vunpack.c.h.b16 %v3798
        %v4685 = vunpack.c.l.b16 %v3799
        %v4686 = vunpack.c.l.b16 %v3800
        %v4687 = vunpack.c.h.b16 %v3800
        %v4688 = vunpack.c.l.b16 %v3801
        %v4689 = vunpack.c.l.b16 %v3802
        %v4690 = vunpack.c.h.b16 %v3802
        %v4691 = vunpack.c.l.b16 %v3803
        %v4692 = vpack.c.b16 %v4551, %v4548
        %v4693 = vpack.c.b16 %v4552, %v4549
        %v4694 = vpack.c.b16 %v4553, %v4550
        %v4695 = vpack.c.b16 %v4557, %v4554
        %v4696 = vpack.c.b16 %v4558, %v4555
        %v4697 = vpack.c.b16 %v4559, %v4556
        %v4698 = vpack.c.b16 %v4563, %v4560
        %v4699 = vpack.c.b16 %v4564, %v4561
        %v4700 = vpack.c.b16 %v4565, %v4562
        %v4701 = vpack.c.b16 %v4569, %v4566
        %v4702 = vpack.c.b16 %v4570, %v4567
        %v4703 = vpack.c.b16 %v4571, %v4568
        %v4704 = vpack.c.b16 %v4575, %v4572
        %v4705 = vpack.c.b16 %v4576, %v4573
        %v4706 = vpack.c.b16 %v4577, %v4574
        %v4707 = vpack.c.b16 %v4581, %v4578
        %v4708 = vpack.c.b16 %v4582, %v4579
        %v4709 = vpack.c.b16 %v4583, %v4580
        %v4710 = vpack.c.b16 %v4587, %v4584
        %v4711 = vpack.c.b16 %v4588, %v4585
        %v4712 = vpack.c.b16 %v4589, %v4586
        %v4713 = vpack.c.b16 %v4593, %v4590
        %v4714 = vpack.c.b16 %v4594, %v4591
        %v4715 = vpack.c.b16 %v4595, %v4592
        %v4716 = vpack.c.b16 %v4599, %v4596
        %v4717 = vpack.c.b16 %v4600, %v4597
        %v4718 = vpack.c.b16 %v4601, %v4598
        %v4719 = vpack.c.b16 %v4605, %v4602
        %v4720 = vpack.c.b16 %v4606, %v4603
        %v4721 = vpack.c.b16 %v4607, %v4604
        %v4722 = vpack.c.b16 %v4611, %v4608
        %v4723 = vpack.c.b16 %v4612, %v4609
        %v4724 = vpack.c.b16 %v4613, %v4610
        %v4725 = vpack.c.b16 %v4617, %v4614
        %v4726 = vpack.c.b16 %v4618, %v4615
        %v4727 = vpack.c.b16 %v4619, %v4616
        %v4728 = vpack.c.b16 %v4623, %v4620
        %v4729 = vpack.c.b16 %v4624, %v4621
        %v4730 = vpack.c.b16 %v4625, %v4622
        %v4731 = vpack.c.b16 %v4629, %v4626
        %v4732 = vpack.c.b16 %v4630, %v4627
        %v4733 = vpack.c.b16 %v4631, %v4628
        %v4734 = vpack.c.b16 %v4635, %v4632
        %v4735 = vpack.c.b16 %v4636, %v4633
        %v4736 = vpack.c.b16 %v4637, %v4634
        %v4737 = vpack.c.b16 %v4641, %v4638
        %v4738 = vpack.c.b16 %v4642, %v4639
        %v4739 = vpack.c.b16 %v4643, %v4640
        %v4740 = vpack.c.b16 %v4647, %v4644
        %v4741 = vpack.c.b16 %v4648, %v4645
        %v4742 = vpack.c.b16 %v4649, %v4646
        %v4743 = vpack.c.b16 %v4653, %v4650
        %v4744 = vpack.c.b16 %v4654, %v4651
        %v4745 = vpack.c.b16 %v4655, %v4652
        %v4746 = vpack.c.b16 %v4659, %v4656
        %v4747 = vpack.c.b16 %v4660, %v4657
        %v4748 = vpack.c.b16 %v4661, %v4658
        %v4749 = vpack.c.b16 %v4665, %v4662
        %v4750 = vpack.c.b16 %v4666, %v4663
        %v4751 = vpack.c.b16 %v4667, %v4664
        %v4752 = vpack.c.b16 %v4671, %v4668
        %v4753 = vpack.c.b16 %v4672, %v4669
        %v4754 = vpack.c.b16 %v4673, %v4670
        %v4755 = vpack.c.b16 %v4677, %v4674
        %v4756 = vpack.c.b16 %v4678, %v4675
        %v4757 = vpack.c.b16 %v4679, %v4676
        %v4758 = vpack.c.b16 %v4683, %v4680
        %v4759 = vpack.c.b16 %v4684, %v4681
        %v4760 = vpack.c.b16 %v4685, %v4682
        %v4761 = vpack.c.b16 %v4689, %v4686
        %v4762 = vpack.c.b16 %v4690, %v4687
        %v4763 = vpack.c.b16 %v4691, %v4688
        %4836 = vmatprep.subr.bf16.mxu0 %v4693
        %4837 = vmatpush1.bf16.msra.mxu0 %v4692
        %4838 = vmatprep.subr.bf16.mxu0 %v4696
        %4839 = vmatpush1.bf16.msra.mxu0 %v4695
        %4840 = vmatprep.subr.bf16.mxu0 %v4699
        %4841 = vmatpush1.bf16.msra.mxu0 %v4698
        %4842 = vmatprep.subr.bf16.mxu0 %v4702
        %4843 = vmatpush1.bf16.msra.mxu0 %v4701
        %4844 = vmatprep.subr.bf16.mxu0 %v4705
        %4845 = vmatpush1.bf16.msra.mxu0 %v4704
        %4846 = vmatprep.subr.bf16.mxu0 %v4708
        %4847 = vmatpush1.bf16.msra.mxu0 %v4707
        %4848 = vmatprep.subr.bf16.mxu0 %v4711
        %4849 = vmatpush1.bf16.msra.mxu0 %v4710
        %4850 = vmatprep.subr.bf16.mxu0 %v4714
        %4851 = vmatpush1.bf16.msra.mxu0 %v4713
        %4852 = vmatprep.subr.bf16.mxu0 %v4717
        %4853 = vmatpush1.bf16.msra.mxu0 %v4716
        %4854 = vmatprep.subr.bf16.mxu0 %v4720
        %4855 = vmatpush1.bf16.msra.mxu0 %v4719
        %4856 = vmatprep.subr.bf16.mxu0 %v4723
        %4857 = vmatpush1.bf16.msra.mxu0 %v4722
        %4858 = vmatprep.subr.bf16.mxu0 %v4726
        %4859 = vmatpush1.bf16.msra.mxu0 %v4725
        %4860 = vmatprep.subr.bf16.mxu0 %v4729
        %4861 = vmatpush1.bf16.msra.mxu0 %v4728
        %4862 = vmatprep.subr.bf16.mxu0 %v4732
        %4863 = vmatpush1.bf16.msra.mxu0 %v4731
        %4864 = vmatprep.subr.bf16.mxu0 %v4735
        %4865 = vmatpush1.bf16.msra.mxu0 %v4734
        %4866 = vmatprep.subr.bf16.mxu0 %v4738
        %4867 = vmatpush1.bf16.msra.mxu0 %v4737
        %4868 = vmatprep.mubr.bf16.mxu0 %v3805
        %4869 = vmatmul.mubr.bf16.gmra.mrb[0].mxu0 %v3804
        %v4870 = vpop.f32.mrb[0].mxu0
        %v4871 = vadd.f32 %v4366, %v4870
        %v4872 = vpop.f32.mrb[0].mxu0
        %v4873 = vadd.f32 %v4368, %v4872
        %v4874 = vpop.f32.mrb[0].mxu0
        %v4875 = vpop.f32.mrb[0].mxu0
        %4876 = vdwg.mxu0
        %4877 = vmatprep.subr.bf16.mxu0 %v4741
        %4878 = vmatpush1.bf16.msra.mxu0 %v4740
        %4879 = vmatprep.subr.bf16.mxu0 %v4744
        %4880 = vmatpush1.bf16.msra.mxu0 %v4743
        %4881 = vmatprep.subr.bf16.mxu0 %v4747
        %4882 = vmatpush1.bf16.msra.mxu0 %v4746
        %4883 = vmatprep.subr.bf16.mxu0 %v4750
        %4884 = vmatpush1.bf16.msra.mxu0 %v4749
        %4885 = vmatprep.subr.bf16.mxu0 %v4753
        %4886 = vmatpush1.bf16.msra.mxu0 %v4752
        %4887 = vmatprep.subr.bf16.mxu0 %v4756
        %4888 = vmatpush1.bf16.msra.mxu0 %v4755
        %4889 = vmatprep.subr.bf16.mxu0 %v4759
        %4890 = vmatpush1.bf16.msra.mxu0 %v4758
        %4891 = vmatprep.subr.bf16.mxu0 %v4762
        %4892 = vmatpush1.bf16.msra.mxu0 %v4761
        %4893 = vmatprep.subr.bf16.mxu0 0
        %4894 = vmatpush1.bf16.msra.mxu0 0
        %4895 = vmatprep.subr.bf16.mxu0 0
        %4896 = vmatpush1.bf16.msra.mxu0 0
        %4897 = vmatprep.subr.bf16.mxu0 0
        %4898 = vmatpush1.bf16.msra.mxu0 0
        %4899 = vmatprep.subr.bf16.mxu0 0
        %4900 = vmatpush1.bf16.msra.mxu0 0
        %4901 = vmatprep.subr.bf16.mxu0 0
        %4902 = vmatpush1.bf16.msra.mxu0 0
        %4903 = vmatprep.subr.bf16.mxu0 0
        %4904 = vmatpush1.bf16.msra.mxu0 0
        %4905 = vmatprep.subr.bf16.mxu0 0
        %4906 = vmatpush1.bf16.msra.mxu0 0
        %4907 = vmatprep.subr.bf16.mxu0 0
        %4908 = vmatpush1.bf16.msra.mxu0 0
        %4909 = vmatprep.mubr.bf16.mxu0 0
        %4910 = vmatmul.mubr.bf16.gmra.mrb[0].mxu0 %v3806
        %v4911 = vpop.f32.mrb[0].mxu0
        %v4912 = vadd.f32 %v4871, %v4911
        %v4913 = vpop.f32.mrb[0].mxu0
        %v4914 = vadd.f32 %v4873, %v4913
        %v4915 = vpop.f32.mrb[0].mxu0
        %v4916 = vpop.f32.mrb[0].mxu0
        %4917 = vdwg.mxu0
        %4918 = vmatprep.subr.bf16.mxu0 0
        %4919 = vmatpush1.bf16.msra.mxu0 %v4694
        %4920 = vmatprep.subr.bf16.mxu0 0
        %4921 = vmatpush1.bf16.msra.mxu0 %v4697
        %4922 = vmatprep.subr.bf16.mxu0 0
        %4923 = vmatpush1.bf16.msra.mxu0 %v4700
        %4924 = vmatprep.subr.bf16.mxu0 0
        %4925 = vmatpush1.bf16.msra.mxu0 %v4703
        %4926 = vmatprep.subr.bf16.mxu0 0
        %4927 = vmatpush1.bf16.msra.mxu0 %v4706
        %4928 = vmatprep.subr.bf16.mxu0 0
        %4929 = vmatpush1.bf16.msra.mxu0 %v4709
        %4930 = vmatprep.subr.bf16.mxu0 0
        %4931 = vmatpush1.bf16.msra.mxu0 %v4712
        %4932 = vmatprep.subr.bf16.mxu0 0
        %4933 = vmatpush1.bf16.msra.mxu0 %v4715
        %4934 = vmatprep.subr.bf16.mxu0 0
        %4935 = vmatpush1.bf16.msra.mxu0 %v4718
        %4936 = vmatprep.subr.bf16.mxu0 0
        %4937 = vmatpush1.bf16.msra.mxu0 %v4721
        %4938 = vmatprep.subr.bf16.mxu0 0
        %4939 = vmatpush1.bf16.msra.mxu0 %v4724
        %4940 = vmatprep.subr.bf16.mxu0 0
        %4941 = vmatpush1.bf16.msra.mxu0 %v4727
        %4942 = vmatprep.subr.bf16.mxu0 0
        %4943 = vmatpush1.bf16.msra.mxu0 %v4730
        %4944 = vmatprep.subr.bf16.mxu0 0
        %4945 = vmatpush1.bf16.msra.mxu0 %v4733
        %4946 = vmatprep.subr.bf16.mxu0 0
        %4947 = vmatpush1.bf16.msra.mxu0 %v4736
        %4948 = vmatprep.subr.bf16.mxu0 0
        %4949 = vmatpush1.bf16.msra.mxu0 %v4739
        %4950 = vmatprep.mubr.bf16.mxu0 %v3805
        %4951 = vmatmul.mubr.bf16.gmra.mrb[0].mxu0 %v3804
        %v4952 = vpop.f32.mrb[0].mxu0
        %v4953 = vadd.f32 %v4447, %v4952
        %v4954 = vpop.f32.mrb[0].mxu0
        %v4955 = vpop.f32.mrb[0].mxu0
        %v4956 = vpop.f32.mrb[0].mxu0
        %4957 = vdwg.mxu0
        %4958 = vmatprep.subr.bf16.mxu0 0
        %4959 = vmatpush1.bf16.msra.mxu0 %v4742
        %4960 = vmatprep.subr.bf16.mxu0 0
        %4961 = vmatpush1.bf16.msra.mxu0 %v4745
        %4962 = vmatprep.subr.bf16.mxu0 0
        %4963 = vmatpush1.bf16.msra.mxu0 %v4748
        %4964 = vmatprep.subr.bf16.mxu0 0
        %4965 = vmatpush1.bf16.msra.mxu0 %v4751
        %4966 = vmatprep.subr.bf16.mxu0 0
        %4967 = vmatpush1.bf16.msra.mxu0 %v4754
        %4968 = vmatprep.subr.bf16.mxu0 0
        %4969 = vmatpush1.bf16.msra.mxu0 %v4757
        %4970 = vmatprep.subr.bf16.mxu0 0
        %4971 = vmatpush1.bf16.msra.mxu0 %v4760
        %4972 = vmatprep.subr.bf16.mxu0 0
        %4973 = vmatpush1.bf16.msra.mxu0 %v4763
        %4974 = vmatprep.subr.bf16.mxu0 0
        %4975 = vmatpush1.bf16.msra.mxu0 0
        %4976 = vmatprep.subr.bf16.mxu0 0
        %4977 = vmatpush1.bf16.msra.mxu0 0
        %4978 = vmatprep.subr.bf16.mxu0 0
        %4979 = vmatpush1.bf16.msra.mxu0 0
        %4980 = vmatprep.subr.bf16.mxu0 0
        %4981 = vmatpush1.bf16.msra.mxu0 0
        %4982 = vmatprep.subr.bf16.mxu0 0
        %4983 = vmatpush1.bf16.msra.mxu0 0
        %4984 = vmatprep.subr.bf16.mxu0 0
        %4985 = vmatpush1.bf16.msra.mxu0 0
        %4986 = vmatprep.subr.bf16.mxu0 0
        %4987 = vmatpush1.bf16.msra.mxu0 0
        %4988 = vmatprep.subr.bf16.mxu0 0
        %4989 = vmatpush1.bf16.msra.mxu0 0
        %4990 = vmatprep.mubr.bf16.mxu0 0
        %4991 = vmatmul.mubr.bf16.gmra.mrb[0].mxu0 %v3806
        %v4992 = vpop.f32.mrb[0].mxu0
        %v4993 = vadd.f32 %v4953, %v4992
        %v4994 = vpop.f32.mrb[0].mxu0
        %v4995 = vpop.f32.mrb[0].mxu0
        %v4996 = vpop.f32.mrb[0].mxu0
        %4997 = vdwg.mxu0
        %v4998 = vadd.f32 %v644, %v4912
        %v4999 = vadd.f32 %v645, %v4914
        %v5000 = vadd.f32 %v646, %v4993
        %5001 = vst [vmem:[#allocation2] sm:$0xff] %v4998
        %5002 = vst [vmem:[#allocation2 + $0x8] sm:$0xff] %v4999
        %5003 = vst [vmem:[#allocation2 + $0x10] sm:$0xff] %v5000
        %p5004 = scmp.eq.s32.totalorder %s40, 7
        // Predicated region
        $region97: #{tpu_custom_call.1} parent=55 // pred_check
          %p5005 = pneg %p5004
        $region98: #{tpu_custom_call.1} parent=55 // pred_check_branch
          %5007 = sbr.rel (%p5005) target = $region100
        $region99: #{tpu_custom_call.1} parent=55 // pred_region
          %v5008 = vld [vmem:[#allocation8] sm:$0x7]
          %v5009 = vld [vmem:[#allocation10] sm:$0x7]
          %v5010 = vadd.f32 %v4998, %v4999
          %v5011 = vadd.f32 %v5010, %v5000
          %5012 = vadd.xlane.f32.xlu0 %v5011
          %v5013 = vpop.xlane.xlu0 %5012
          %v5014 = vmul.f32 %v5013, %v653
          %v5015 = vsub.f32 %v4998, %v5014
          %v5016 = vsub.f32 %v4999, %v5014
          %v5017 = vsub.f32 %v5000, %v5014
          %v5018 = vmul.f32 %v5015, %v5015
          %v5019 = vmul.f32 %v5016, %v5016
          %v5020 = vmul.f32 %v5017, %v5017
          %v5021 = vadd.f32 %v5018, %v5019
          %v5022 = vadd.f32 %v5021, %v5020
          %5023 = vadd.xlane.f32.xlu0 %v5022
          %v5024 = vpop.xlane.xlu0 %5023
          %v5025 = vmul.f32 %v5024, %v653
          %v5026 = vadd.f32 %v5025, 1e-05
          %v5027 = vrsqrt.pop %v5026
          %v5028 = vmul.f32 %v5015, %v5027
          %v5029 = vmul.f32 %v5016, %v5027
          %v5030 = vmul.f32 %v5017, %v5027
          %v5032 = vlaneseq
          %v5033 = vshrl.u32 %v5032, 7
          %v5034 = vsub.s32 0, %v5033
          %v5035 = vrot.slane %v5008, %v5034
          %v5036 = vlaneseq
          %v5037 = vshrl.u32 %v5036, 7
          %v5038 = vsub.s32 1, %v5037
          %v5039 = vrot.slane %v5008, %v5038
          %v5040 = vlaneseq
          %v5041 = vshrl.u32 %v5040, 7
          %v5042 = vsub.s32 2, %v5041
          %v5043 = vrot.slane %v5008, %v5042
          %v5047 = vmul.f32 %v5028, %v5035
          %v5048 = vmul.f32 %v5029, %v5039
          %v5049 = vmul.f32 %v5030, %v5043
          %v5051 = vlaneseq
          %v5052 = vshrl.u32 %v5051, 7
          %v5053 = vsub.s32 0, %v5052
          %v5054 = vrot.slane %v5009, %v5053
          %v5055 = vlaneseq
          %v5056 = vshrl.u32 %v5055, 7
          %v5057 = vsub.s32 1, %v5056
          %v5058 = vrot.slane %v5009, %v5057
          %v5059 = vlaneseq
          %v5060 = vshrl.u32 %v5059, 7
          %v5061 = vsub.s32 2, %v5060
          %v5062 = vrot.slane %v5009, %v5061
          %v5066 = vadd.f32 %v5047, %v5054
          %v5067 = vadd.f32 %v5048, %v5058
          %v5068 = vadd.f32 %v5049, %v5062
          %v5069 = vld [vmem:[#allocation18] sm:$0xf]
          %v5070 = vld [vmem:[#allocation18 + $0x4] sm:$0xf]
          %v5071 = vld [vmem:[#allocation18 + $0x8] sm:$0xf]
          %v5072 = vld [vmem:[#allocation18 + $0xc] sm:$0xf]
          %v5073 = vld [vmem:[#allocation18 + $0x10] sm:$0xf]
          %v5074 = vld [vmem:[#allocation18 + $0x14] sm:$0xf]
          %v5075 = vld [vmem:[#allocation18 + $0x18] sm:$0xf]
          %v5076 = vld [vmem:[#allocation18 + $0x1c] sm:$0xf]
          %v5077 = vld [vmem:[#allocation18 + $0x20] sm:$0xf]
          %v5078 = vld [vmem:[#allocation18 + $0x24] sm:$0xf]
          %v5079 = vld [vmem:[#allocation18 + $0x28] sm:$0xf]
          %v5080 = vld [vmem:[#allocation18 + $0x2c] sm:$0xf]
          %v5081 = vld [vmem:[#allocation18 + $0x30] sm:$0xf]
          %v5082 = vld [vmem:[#allocation18 + $0x34] sm:$0xf]
          %v5083 = vld [vmem:[#allocation18 + $0x38] sm:$0xf]
          %v5084 = vld [vmem:[#allocation18 + $0x3c] sm:$0xf]
          %v5085 = vld [vmem:[#allocation18 + $0x40] sm:$0xf]
          %v5086 = vld [vmem:[#allocation18 + $0x44] sm:$0xf]
          %v5087 = vld [vmem:[#allocation18 + $0x48] sm:$0xf]
          %v5088 = vld [vmem:[#allocation18 + $0x4c] sm:$0xf]
          %v5089 = vld [vmem:[#allocation18 + $0x50] sm:$0xf]
          %v5090 = vld [vmem:[#allocation18 + $0x54] sm:$0xf]
          %v5091 = vld [vmem:[#allocation18 + $0x58] sm:$0xf]
          %v5092 = vld [vmem:[#allocation18 + $0x5c] sm:$0xf]
          %v5093 = vld [vmem:[#allocation18 + $0x60] sm:$0xf]
          %v5094 = vld [vmem:[#allocation18 + $0x64] sm:$0xf]
          %v5095 = vld [vmem:[#allocation18 + $0x68] sm:$0xf]
          %v5096 = vld [vmem:[#allocation18 + $0x6c] sm:$0xf]
          %v5097 = vld [vmem:[#allocation18 + $0x70] sm:$0xf]
          %v5098 = vld [vmem:[#allocation18 + $0x74] sm:$0xf]
          %v5099 = vld [vmem:[#allocation18 + $0x78] sm:$0xf]
          %v5100 = vld [vmem:[#allocation18 + $0x7c] sm:$0xf]
          %v5101 = vld [vmem:[#allocation18 + $0x80] sm:$0xf]
          %v5102 = vld [vmem:[#allocation18 + $0x84] sm:$0xf]
          %v5103 = vld [vmem:[#allocation18 + $0x88] sm:$0xf]
          %v5104 = vld [vmem:[#allocation18 + $0x8c] sm:$0xf]
          %v5105 = vld [vmem:[#allocation18 + $0x90] sm:$0xf]
          %v5106 = vld [vmem:[#allocation18 + $0x94] sm:$0xf]
          %v5107 = vld [vmem:[#allocation18 + $0x98] sm:$0xf]
          %v5108 = vld [vmem:[#allocation18 + $0x9c] sm:$0xf]
          %v5109 = vld [vmem:[#allocation18 + $0xa0] sm:$0xf]
          %v5110 = vld [vmem:[#allocation18 + $0xa4] sm:$0xf]
          %v5111 = vld [vmem:[#allocation18 + $0xa8] sm:$0xf]
          %v5112 = vld [vmem:[#allocation18 + $0xac] sm:$0xf]
          %v5113 = vld [vmem:[#allocation18 + $0xb0] sm:$0xf]
          %v5114 = vld [vmem:[#allocation18 + $0xb4] sm:$0xf]
          %v5115 = vld [vmem:[#allocation18 + $0xb8] sm:$0xf]
          %v5116 = vld [vmem:[#allocation18 + $0xbc] sm:$0xf]
          %v5117 = vpack.c.bf16 %v5066, %v5066
          %v5118 = vpack.c.bf16 %v5067, %v5067
          %v5119 = vpack.c.bf16 %v5068, %v5068
          %v5168 = vunpack.c.l.b16 %v5069
          %v5169 = vunpack.c.l.b16 %v5070
          %v5170 = vunpack.c.l.b16 %v5071
          %v5171 = vunpack.c.l.b16 %v5072
          %v5172 = vunpack.c.l.b16 %v5073
          %v5173 = vunpack.c.l.b16 %v5074
          %v5174 = vunpack.c.l.b16 %v5075
          %v5175 = vunpack.c.l.b16 %v5076
          %v5176 = vunpack.c.l.b16 %v5077
          %v5177 = vunpack.c.l.b16 %v5078
          %v5178 = vunpack.c.l.b16 %v5079
          %v5179 = vunpack.c.l.b16 %v5080
          %v5180 = vunpack.c.l.b16 %v5081
          %v5181 = vunpack.c.l.b16 %v5082
          %v5182 = vunpack.c.l.b16 %v5083
          %v5183 = vunpack.c.l.b16 %v5084
          %v5184 = vunpack.c.l.b16 %v5085
          %v5185 = vunpack.c.l.b16 %v5086
          %v5186 = vunpack.c.l.b16 %v5087
          %v5187 = vunpack.c.l.b16 %v5088
          %v5188 = vunpack.c.l.b16 %v5089
          %v5189 = vunpack.c.l.b16 %v5090
          %v5190 = vunpack.c.l.b16 %v5091
          %v5191 = vunpack.c.l.b16 %v5092
          %v5192 = vunpack.c.l.b16 %v5093
          %v5193 = vunpack.c.l.b16 %v5094
          %v5194 = vunpack.c.l.b16 %v5095
          %v5195 = vunpack.c.l.b16 %v5096
          %v5196 = vunpack.c.l.b16 %v5097
          %v5197 = vunpack.c.l.b16 %v5098
          %v5198 = vunpack.c.l.b16 %v5099
          %v5199 = vunpack.c.l.b16 %v5100
          %v5200 = vunpack.c.l.b16 %v5101
          %v5201 = vunpack.c.l.b16 %v5102
          %v5202 = vunpack.c.l.b16 %v5103
          %v5203 = vunpack.c.l.b16 %v5104
          %v5204 = vunpack.c.l.b16 %v5105
          %v5205 = vunpack.c.l.b16 %v5106
          %v5206 = vunpack.c.l.b16 %v5107
          %v5207 = vunpack.c.l.b16 %v5108
          %v5208 = vunpack.c.l.b16 %v5109
          %v5209 = vunpack.c.l.b16 %v5110
          %v5210 = vunpack.c.l.b16 %v5111
          %v5211 = vunpack.c.l.b16 %v5112
          %v5212 = vunpack.c.l.b16 %v5113
          %v5213 = vunpack.c.l.b16 %v5114
          %v5214 = vunpack.c.l.b16 %v5115
          %v5215 = vunpack.c.l.b16 %v5116
          %v5216 = vpack.c.b16 %v5169, %v5168
          %v5217 = vpack.c.b16 %v5171, %v5170
          %v5218 = vpack.c.b16 %v5173, %v5172
          %v5219 = vpack.c.b16 %v5175, %v5174
          %v5220 = vpack.c.b16 %v5177, %v5176
          %v5221 = vpack.c.b16 %v5179, %v5178
          %v5222 = vpack.c.b16 %v5181, %v5180
          %v5223 = vpack.c.b16 %v5183, %v5182
          %v5224 = vpack.c.b16 %v5185, %v5184
          %v5225 = vpack.c.b16 %v5187, %v5186
          %v5226 = vpack.c.b16 %v5189, %v5188
          %v5227 = vpack.c.b16 %v5191, %v5190
          %v5228 = vpack.c.b16 %v5193, %v5192
          %v5229 = vpack.c.b16 %v5195, %v5194
          %v5230 = vpack.c.b16 %v5197, %v5196
          %v5231 = vpack.c.b16 %v5199, %v5198
          %v5232 = vpack.c.b16 %v5201, %v5200
          %v5233 = vpack.c.b16 %v5203, %v5202
          %v5234 = vpack.c.b16 %v5205, %v5204
          %v5235 = vpack.c.b16 %v5207, %v5206
          %v5236 = vpack.c.b16 %v5209, %v5208
          %v5237 = vpack.c.b16 %v5211, %v5210
          %v5238 = vpack.c.b16 %v5213, %v5212
          %v5239 = vpack.c.b16 %v5215, %v5214
          %5264 = vmatprep.subr.bf16.mxu0 0
          %5265 = vmatpush1.bf16.msra.mxu0 %v5216
          %5266 = vmatprep.subr.bf16.mxu0 0
          %5267 = vmatpush1.bf16.msra.mxu0 %v5217
          %5268 = vmatprep.subr.bf16.mxu0 0
          %5269 = vmatpush1.bf16.msra.mxu0 %v5218
          %5270 = vmatprep.subr.bf16.mxu0 0
          %5271 = vmatpush1.bf16.msra.mxu0 %v5219
          %5272 = vmatprep.subr.bf16.mxu0 0
          %5273 = vmatpush1.bf16.msra.mxu0 %v5220
          %5274 = vmatprep.subr.bf16.mxu0 0
          %5275 = vmatpush1.bf16.msra.mxu0 %v5221
          %5276 = vmatprep.subr.bf16.mxu0 0
          %5277 = vmatpush1.bf16.msra.mxu0 %v5222
          %5278 = vmatprep.subr.bf16.mxu0 0
          %5279 = vmatpush1.bf16.msra.mxu0 %v5223
          %5280 = vmatprep.subr.bf16.mxu0 0
          %5281 = vmatpush1.bf16.msra.mxu0 %v5224
          %5282 = vmatprep.subr.bf16.mxu0 0
          %5283 = vmatpush1.bf16.msra.mxu0 %v5225
          %5284 = vmatprep.subr.bf16.mxu0 0
          %5285 = vmatpush1.bf16.msra.mxu0 %v5226
          %5286 = vmatprep.subr.bf16.mxu0 0
          %5287 = vmatpush1.bf16.msra.mxu0 %v5227
          %5288 = vmatprep.subr.bf16.mxu0 0
          %5289 = vmatpush1.bf16.msra.mxu0 %v5228
          %5290 = vmatprep.subr.bf16.mxu0 0
          %5291 = vmatpush1.bf16.msra.mxu0 %v5229
          %5292 = vmatprep.subr.bf16.mxu0 0
          %5293 = vmatpush1.bf16.msra.mxu0 %v5230
          %5294 = vmatprep.subr.bf16.mxu0 0
          %5295 = vmatpush1.bf16.msra.mxu0 %v5231
          %5296 = vmatprep.mubr.bf16.mxu0 %v5118
          %5297 = vmatmul.mubr.bf16.gmra.mrb[0].mxu0 %v5117
          %v5298 = vpop.f32.mrb[0].mxu0
          %v5299 = vadd.f32 0.0, %v5298
          %v5300 = vpop.f32.mrb[0].mxu0
          %v5301 = vpop.f32.mrb[0].mxu0
          %v5302 = vpop.f32.mrb[0].mxu0
          %5303 = vdwg.mxu0
          %5304 = vmatprep.subr.bf16.mxu0 0
          %5305 = vmatpush1.bf16.msra.mxu0 %v5232
          %5306 = vmatprep.subr.bf16.mxu0 0
          %5307 = vmatpush1.bf16.msra.mxu0 %v5233
          %5308 = vmatprep.subr.bf16.mxu0 0
          %5309 = vmatpush1.bf16.msra.mxu0 %v5234
          %5310 = vmatprep.subr.bf16.mxu0 0
          %5311 = vmatpush1.bf16.msra.mxu0 %v5235
          %5312 = vmatprep.subr.bf16.mxu0 0
          %5313 = vmatpush1.bf16.msra.mxu0 %v5236
          %5314 = vmatprep.subr.bf16.mxu0 0
          %5315 = vmatpush1.bf16.msra.mxu0 %v5237
          %5316 = vmatprep.subr.bf16.mxu0 0
          %5317 = vmatpush1.bf16.msra.mxu0 %v5238
          %5318 = vmatprep.subr.bf16.mxu0 0
          %5319 = vmatpush1.bf16.msra.mxu0 %v5239
          %5320 = vmatprep.subr.bf16.mxu0 0
          %5321 = vmatpush1.bf16.msra.mxu0 0
          %5322 = vmatprep.subr.bf16.mxu0 0
          %5323 = vmatpush1.bf16.msra.mxu0 0
          %5324 = vmatprep.subr.bf16.mxu0 0
          %5325 = vmatpush1.bf16.msra.mxu0 0
          %5326 = vmatprep.subr.bf16.mxu0 0
          %5327 = vmatpush1.bf16.msra.mxu0 0
          %5328 = vmatprep.subr.bf16.mxu0 0
          %5329 = vmatpush1.bf16.msra.mxu0 0
          %5330 = vmatprep.subr.bf16.mxu0 0
          %5331 = vmatpush1.bf16.msra.mxu0 0
          %5332 = vmatprep.subr.bf16.mxu0 0
          %5333 = vmatpush1.bf16.msra.mxu0 0
          %5334 = vmatprep.subr.bf16.mxu0 0
          %5335 = vmatpush1.bf16.msra.mxu0 0
          %5336 = vmatprep.mubr.bf16.mxu0 0
          %5337 = vmatmul.mubr.bf16.gmra.mrb[0].mxu0 %v5119
          %v5338 = vpop.f32.mrb[0].mxu0
          %v5339 = vadd.f32 %v5299, %v5338
          %v5340 = vpop.f32.mrb[0].mxu0
          %v5341 = vpop.f32.mrb[0].mxu0
          %v5342 = vpop.f32.mrb[0].mxu0
          %5343 = vdwg.mxu0
          %5344 = vst [vmem:[%s562] sm:$0xff] %v5339
        $region100: #{tpu_custom_call.1} parent=55 // pred_fallthru
          _
        %s5345 = sand.u32 %s269, 1
        %s5346 = scalar_lea.sflag [#allocation6], %s5345
        %s5347 = sand.u32 %s269, 1
        %s5348 = smul.addr %s5347, 8
        %s5349 = scalar_lea.vmem [#allocation20], %s5348
        // Predicated region
        $region101: #{tpu_custom_call.1} parent=55 // pred_check
          %p5350 = pneg %p279
        $region102: #{tpu_custom_call.1} parent=55 // pred_check_branch
          %5352 = sbr.rel (%p5350) target = $region104
        $region103: #{tpu_custom_call.1} parent=55 // pred_region
          %s5354 = ssub.s32 128, 128
          %5355 = vsyncadd %s5346, %s5354
          %s5356 = smul.addr %s39, 128
          %s5357 = scalar_lea.hbm %s9, %s5356
          %s5359 = sshll.u32 %s5349, 4
          %s5360 = int_to_ptr.vmem [resolvable:$true] %s5359
          %5362 = dma.vmem_to_hbm [thread:$0]  %s5360, 128, %s5357, %s5346
        $region104: #{tpu_custom_call.1} parent=55 // pred_fallthru
          _
      $region56: #{tpu_custom_call.1} parent=5 // pred_fallthru
        _
      %p5363 = scmp.le.s32.totalorder 2, %s30
      // Predicated region
      $region105: #{tpu_custom_call.1} parent=5 // pred_check
        %p5364 = pneg %p5363
      $region106: #{tpu_custom_call.1} parent=5 // pred_check_branch
        %5366 = sbr.rel (%p5364) target = $region108
      $region107: #{tpu_custom_call.1} parent=5 // pred_region
        %s5367 = ssub.s32 %s30, 2
        // Predicated region
        $region109: #{tpu_custom_call.1} parent=107 // pred_check
          %p5368 = pneg %p285
        $region110: #{tpu_custom_call.1} parent=107 // pred_check_branch
          %5370 = sbr.rel (%p5368) target = $region112
        $region111: #{tpu_custom_call.1} parent=107 // pred_region
          %s5371 = sand.u32 %s270, 1
          %s5372 = scalar_lea.sflag [#allocation6], %s5371
          %s5373 = sand.u32 %s270, 1
          %s5374 = smul.addr %s5373, 8
          %s5375 = scalar_lea.vmem [#allocation20], %s5374
          %5376 = dma.done %s5372, 128
        $region112: #{tpu_custom_call.1} parent=107 // pred_fallthru
          _
      $region108: #{tpu_custom_call.1} parent=5 // pred_fallthru
        _
    $region6: #{tpu_custom_call.1} parent=1 // loop_footer
      %s34 = sadd.s32 1, %s30
    $region7: #{tpu_custom_call.1} parent=1 // loop_footer_branch
      %29 = sbr.rel target = $region3
    $region8: #{tpu_custom_call.1} parent=1 // loop_exit
      _
    %5377 = vsyncpa [#allocation5], 1
    %s5378 = scalar_lea.sflag [#allocation5], 1
    %5379 = vsyncpa %s5378, 1
    %5380 = vsyncpa [#allocation9], 1
    %5381 = vsyncpa [#allocation12], 1
    %s5382 = scalar_lea.sflag [#allocation12], 1
    %5383 = vsyncpa %s5382, 1
    %5384 = vsyncpa [#allocation15], 1
    %s5385 = scalar_lea.sflag [#allocation15], 1
    %5386 = vsyncpa %s5385, 1
    %5387 = vsyncpa [#allocation19], 1
    %5388 = vsyncpa [#allocation6], 1
    %s5389 = scalar_lea.sflag [#allocation6], 1
    %5390 = vsyncpa %s5389, 1
    %5391 = vsyncpa [#allocation7], 1
    %s5392 = scalar_lea.sflag [#allocation7], 1
    %5393 = vsyncpa %s5392, 1

</llo_original>
